<compile_context>
chip_gen: v5e
topology: v5e:2x2
jax: 0.10.0
libtpu: 0.0.40
codegen_flags: <defaults>
</compile_context>

<pallas_src>
import functools

import jax
import jax.numpy as jnp
from jax import lax
from jax.experimental import pallas as pl
from jax.experimental.pallas import tpu as pltpu


# ----------------------------------------------------------------------------
# Pallas kernel: one bidirectional LSTM layer, both directions fused, whole seq
# ----------------------------------------------------------------------------
def _bilstm_layer_kernel(x_ref, wih_ref, whh_ref, b_ref, out_ref, gx_scr,
                         *, seq_len, bp, hidden):
  """Single invocation (grid=(1,)); both directions run fused, in lockstep.

  x_ref:   (T*Bp, Din)  f32   time-major rows (row = t*Bp + b), batch padded to Bp
  wih_ref: (Din, 8H)    bf16  packed input weights  [fwd: i,f,o,g | bwd: i,f,o,g]
  whh_ref: (2H, 8H)     bf16  block-diagonal hidden weights (rows [0:H] -> fwd columns,
                              rows [H:2H] -> bwd columns, zeros elsewhere)
  b_ref:   (1, 8H)      f32   combined bias (b_ih + b_hh), same packing
  out_ref: (T*Bp, 2H)   f32   out[t*Bp+b, :H] = h_fwd[t,b], out[..., H:] = h_bwd[t,b]
  gx_scr:  (T*Bp, 8H)   f32   hoisted input projection (natural time order, both dirs)
  """
  H = hidden

  # Hoisted input projection: one big MXU matmul feeding both directions at once.
  gx_scr[...] = jnp.dot(x_ref[...].astype(jnp.bfloat16), wih_ref[...],
                        preferred_element_type=jnp.float32) + b_ref[...]

  def step(s, carry):
    h2, c_f, c_b = carry                                    # (Bp,2H), (Bp,H), (Bp,H)
    # Forward direction processes time s; backward processes time T-1-s (lockstep).
    row_f = pl.multiple_of(s * bp, bp)
    row_b = pl.multiple_of((seq_len - 1 - s) * bp, bp)

    # Single block-diagonal hidden matmul for BOTH directions: (Bp,2H)@(2H,8H), bf16 in,
    # f32 accumulation.
    hw = jnp.dot(h2.astype(jnp.bfloat16), whh_ref[...],
                 preferred_element_type=jnp.float32)         # (Bp, 8H)

    gates_f = gx_scr[pl.ds(row_f, bp), pl.ds(0, 4 * H)] + hw[:, 0:4 * H]
    gates_b = gx_scr[pl.ds(row_b, bp), pl.ds(4 * H, 4 * H)] + hw[:, 4 * H:8 * H]

    # Per-direction gate layout [i, f, o, g]: one sigmoid over i|f|o, one tanh for g.
    sig_f = jax.nn.sigmoid(gates_f[:, 0:3 * H])
    sig_b = jax.nn.sigmoid(gates_b[:, 0:3 * H])
    g_f = jnp.tanh(gates_f[:, 3 * H:4 * H])
    g_b = jnp.tanh(gates_b[:, 3 * H:4 * H])

    c_f_new = sig_f[:, H:2 * H] * c_f + sig_f[:, 0:H] * g_f
    c_b_new = sig_b[:, H:2 * H] * c_b + sig_b[:, 0:H] * g_b
    h_f = sig_f[:, 2 * H:3 * H] * jnp.tanh(c_f_new)
    h_b = sig_b[:, 2 * H:3 * H] * jnp.tanh(c_b_new)

    # Tile-aligned (8-sublane) stores into the VMEM-resident output block; the HBM
    # writeback of the whole (T*Bp, 2H) block happens once after the kernel body.
    out_ref[pl.ds(row_f, bp), pl.ds(0, H)] = h_f
    out_ref[pl.ds(row_b, bp), pl.ds(H, H)] = h_b

    return (jnp.concatenate([h_f, h_b], axis=-1), c_f_new, c_b_new)

  init = (jnp.zeros((bp, 2 * H), jnp.float32),
          jnp.zeros((bp, H), jnp.float32),
          jnp.zeros((bp, H), jnp.float32))
  # Partial unroll: LLO scheduling visibility without vreg-pressure blowup at large T.
  lax.fori_loop(0, seq_len, step, init, unroll=min(seq_len, 8))


# ----------------------------------------------------------------------------
# Wrappers
# ----------------------------------------------------------------------------
def _run_bilstm_layer(x_flat, wih, whh, bias, *, seq_len, bp):
  """x_flat: (T*Bp, Din); wih: (Din, 8H) bf16; whh: (2H, 8H) bf16; bias: (1, 8H) f32.

  Returns (T*Bp, 2H) f32: per-time-step [fwd | bwd] hidden states, time-ordered.
  """
  tbp, d_in = x_flat.shape
  H = whh.shape[0] // 2
  kernel = functools.partial(_bilstm_layer_kernel, seq_len=seq_len, bp=bp, hidden=H)
  return pl.pallas_call(
      kernel,
      out_shape=jax.ShapeDtypeStruct((tbp, 2 * H), jnp.float32),
      grid_spec=pltpu.PrefetchScalarGridSpec(
          num_scalar_prefetch=0,
          grid=(1,),                                # single invocation, whole sequence
          in_specs=[
              pl.BlockSpec((tbp, d_in), lambda i: (0, 0)),
              pl.BlockSpec((d_in, 8 * H), lambda i: (0, 0)),
              pl.BlockSpec((2 * H, 8 * H), lambda i: (0, 0)),
              pl.BlockSpec((1, 8 * H), lambda i: (0, 0)),
          ],
          out_specs=pl.BlockSpec((tbp, 2 * H), lambda i: (0, 0)),
          scratch_shapes=[pltpu.VMEM((tbp, 8 * H), jnp.float32)],
      ),
      compiler_params=pltpu.CompilerParams(
          dimension_semantics=("arbitrary",)),
  )(x_flat, wih, whh, bias)


def prepare_params(lstm_params, hidden_dim):
  """One-time weight packing (hoisted out of the jitted forward).

  Per layer returns:
    wih (Din, 8H) bf16, whh (2H, 8H) bf16 block-diagonal, bias (1, 8H) f32,
  with per-direction gate order repacked from PyTorch [i,f,g,o] to [i,f,o,g].
  """
  H = hidden_dim
  perm = jnp.concatenate([jnp.arange(0, 2 * H),        # i, f
                          jnp.arange(3 * H, 4 * H),    # o
                          jnp.arange(2 * H, 3 * H)])   # g
  packed = []
  for p in lstm_params:
    wih_f = p["w_ih_f"][perm].T                        # (Din, 4H)
    wih_b = p["w_ih_b"][perm].T
    wih = jnp.concatenate([wih_f, wih_b], axis=1).astype(jnp.bfloat16)      # (Din, 8H)

    whh_f = p["w_hh_f"][perm].T                        # (H, 4H)
    whh_b = p["w_hh_b"][perm].T
    z = jnp.zeros((H, 4 * H), jnp.float32)
    whh = jnp.concatenate(
        [jnp.concatenate([whh_f, z], axis=1),
         jnp.concatenate([z, whh_b], axis=1)], axis=0).astype(jnp.bfloat16)  # (2H, 8H)

    b_f = (p["b_ih_f"] + p["b_hh_f"])[perm]
    b_b = (p["b_ih_b"] + p["b_hh_b"])[perm]
    bias = jnp.concatenate([b_f, b_b]).reshape(1, 8 * H).astype(jnp.float32)

    packed.append((wih, whh, bias))
  return packed


@jax.jit
def bilstm_forward(x, packed_layers, fc_w, fc_b):
  """Forward pass of the PyTorch biLSTM module (eval mode).

  x: (B, T, D) float32 (batch_first).  packed_layers: output of prepare_params.
  Returns (B, output_dim).
  """
  B, T, D = x.shape
  Bp = ((B + 7) // 8) * 8                       # pad batch to a full 8-sublane group
  x_tb = jnp.transpose(x, (1, 0, 2)).astype(jnp.float32)      # (T, B, D) time-major
  if Bp != B:
    x_tb = jnp.pad(x_tb, ((0, 0), (0, Bp - B), (0, 0)))
  layer_in = x_tb.reshape(T * Bp, D)            # row = t*Bp + b

  for wih, whh, bias in packed_layers:
    layer_in = _run_bilstm_layer(layer_in, wih, whh, bias, seq_len=T, bp=Bp)
    # TODO(synk): PyTorch applies dropout(0.2) here between layers in training mode;
    # eval semantics (identity) are used.

  last = layer_in[(T - 1) * Bp:(T - 1) * Bp + B]               # (B, 2H) == out[:, -1, :]
  # Final Linear: (B, 2H) @ (2H, O) — too small to justify a Pallas launch.
  return last @ fc_w.T.astype(jnp.float32) + fc_b.astype(jnp.float32)


# ----------------------------------------------------------------------------
# Pure-JAX f32 reference (for correctness check)
# ----------------------------------------------------------------------------
def _ref_lstm_dir(x_tbd, w_ih, w_hh, b_ih, b_hh):
  T, B, _ = x_tbd.shape
  H = w_hh.shape[1]

  def step(carry, x_t):
    h, c = carry
    gates = x_t @ w_ih.T + h @ w_hh.T + b_ih + b_hh
    i = jax.nn.sigmoid(gates[:, 0 * H:1 * H])
    f = jax.nn.sigmoid(gates[:, 1 * H:2 * H])
    g = jnp.tanh(gates[:, 2 * H:3 * H])
    o = jax.nn.sigmoid(gates[:, 3 * H:4 * H])
    c_new = f * c + i * g
    h_new = o * jnp.tanh(c_new)
    return (h_new, c_new), h_new

  init = (jnp.zeros((B, H), jnp.float32), jnp.zeros((B, H), jnp.float32))
  _, hs = lax.scan(step, init, x_tbd)
  return hs


def _ref_forward(x, lstm_params, fc_w, fc_b, num_layers):
  layer_in = jnp.transpose(x, (1, 0, 2)).astype(jnp.float32)
  for l in range(num_layers):
    p = lstm_params[l]
    out_f = _ref_lstm_dir(layer_in, p["w_ih_f"], p["w_hh_f"],
                          p["b_ih_f"], p["b_hh_f"])
    out_b = _ref_lstm_dir(layer_in[::-1], p["w_ih_b"], p["w_hh_b"],
                          p["b_ih_b"], p["b_hh_b"])[::-1]
    layer_in = jnp.concatenate([out_f, out_b], axis=-1)
  last = layer_in[-1]
  return last @ fc_w.T + fc_b


# ----------------------------------------------------------------------------
# Parameter init (deterministic, PyTorch-style U(-1/sqrt(H), 1/sqrt(H)))
# ----------------------------------------------------------------------------
def init_params(key, input_dim, hidden_dim, num_layers, output_dim):
  stdv = 1.0 / jnp.sqrt(hidden_dim)
  params = []
  for l in range(num_layers):
    d_in = input_dim if l == 0 else 2 * hidden_dim
    layer = {}
    for tag in ("f", "b"):
      key, k1, k2, k3, k4 = jax.random.split(key, 5)
      layer[f"w_ih_{tag}"] = jax.random.uniform(
          k1, (4 * hidden_dim, d_in), jnp.float32, -stdv, stdv)
      layer[f"w_hh_{tag}"] = jax.random.uniform(
          k2, (4 * hidden_dim, hidden_dim), jnp.float32, -stdv, stdv)
      layer[f"b_ih_{tag}"] = jax.random.uniform(
          k3, (4 * hidden_dim,), jnp.float32, -stdv, stdv)
      layer[f"b_hh_{tag}"] = jax.random.uniform(
          k4, (4 * hidden_dim,), jnp.float32, -stdv, stdv)
    params.append(layer)
  key, kw, kb = jax.random.split(key, 3)
  fc_stdv = 1.0 / jnp.sqrt(2 * hidden_dim)
  fc_w = jax.random.uniform(kw, (output_dim, 2 * hidden_dim), jnp.float32,
                            -fc_stdv, fc_stdv)
  fc_b = jax.random.uniform(kb, (output_dim,), jnp.float32, -fc_stdv, fc_stdv)
  return params, fc_w, fc_b


# ----------------------------------------------------------------------------
if __name__ == "__main__":
  INPUT_DIM = 4
  HIDDEN_DIM = 32
  NUM_LAYERS = 2
  OUTPUT_DIM = 1
  BATCH = 2
  SEQ = 8

  key = jax.random.PRNGKey(0)
  key, kx = jax.random.split(key)
  x = jax.random.normal(kx, (BATCH, SEQ, INPUT_DIM), jnp.float32)

  lstm_params, fc_w, fc_b = init_params(
      key, INPUT_DIM, HIDDEN_DIM, NUM_LAYERS, OUTPUT_DIM)

  # One-time weight packing (kept outside the jitted forward).
  packed_layers = prepare_params(lstm_params, HIDDEN_DIM)

  out = bilstm_forward(x, packed_layers, fc_w, fc_b)
  out = jax.block_until_ready(out)

  ref = _ref_forward(x, lstm_params, fc_w, fc_b, NUM_LAYERS)
  assert out.shape == (BATCH, OUTPUT_DIM), out.shape
  # bf16 matmul operands with f32 accumulation -> tolerance looser than pure-f32
  # (observed error is O(1e-3); 2e-2 leaves >5x margin).
  assert jnp.allclose(out, ref, atol=2e-2, rtol=2e-2), (out, ref)

  print("KERNEL_OK")
</pallas_src>

<mosaic_0001>
module attributes {stable_mosaic.version = 11 : i64} {
  func.func @_bilstm_layer_kernel(%arg0: i32, %arg1: memref<64x64xf32, #tpu.memory_space<vmem>>, %arg2: memref<64x256xbf16, #tpu.memory_space<vmem>>, %arg3: memref<64x256xbf16, #tpu.memory_space<vmem>>, %arg4: memref<1x256xf32, #tpu.memory_space<vmem>>, %arg5: memref<64x64xf32, #tpu.memory_space<vmem>>, %arg6: memref<64x256xf32, #tpu.memory_space<vmem>>) attributes {dimension_semantics = [#tpu.dimension_semantics<arbitrary>], iteration_bounds = array<i64: 1>, scalar_prefetch = 0 : i64, scratch_operands = 1 : i64, tpu.core_type = #tpu.core_type<tc>, window_params = [{pipeline_mode = #tpu.pipeline_mode<synchronous>, transform_indices = @transform_0, window_bounds = array<i64: 64, 64>}, {pipeline_mode = #tpu.pipeline_mode<synchronous>, transform_indices = @transform_1, window_bounds = array<i64: 64, 256>}, {pipeline_mode = #tpu.pipeline_mode<synchronous>, transform_indices = @transform_2, window_bounds = array<i64: 64, 256>}, {pipeline_mode = #tpu.pipeline_mode<synchronous>, transform_indices = @transform_3, window_bounds = array<i64: 1, 256>}, {pipeline_mode = #tpu.pipeline_mode<synchronous>, transform_indices = @transform_4, window_bounds = array<i64: 64, 64>}]} {
    %c0 = arith.constant 0 : index
    %c0_0 = arith.constant 0 : index
    %0 = vector.load %arg1[%c0, %c0_0] : memref<64x64xf32, #tpu.memory_space<vmem>>, vector<64x64xf32>
    %1 = arith.truncf %0 : vector<64x64xf32> to vector<64x64xbf16>
    %c0_1 = arith.constant 0 : index
    %c0_2 = arith.constant 0 : index
    %2 = vector.load %arg2[%c0_1, %c0_2] : memref<64x256xbf16, #tpu.memory_space<vmem>>, vector<64x256xbf16>
    %cst = arith.constant dense<0.000000e+00> : vector<64x256xf32>
    %3 = tpu.matmul %1, %2, %cst {dimension_numbers = #tpu.dot_dimension_numbers<[1], [0], [0], [1], [0, 0, 1, 1], [], []>} : vector<64x64xbf16>, vector<64x256xbf16>, vector<64x256xf32> -> vector<64x256xf32>
    %c0_3 = arith.constant 0 : index
    %c0_4 = arith.constant 0 : index
    %4 = vector.load %arg4[%c0_3, %c0_4] : memref<1x256xf32, #tpu.memory_space<vmem>>, vector<1x256xf32>
    %5 = vector.broadcast %4 : vector<1x256xf32> to vector<64x256xf32>
    %6 = arith.addf %3, %5 : vector<64x256xf32>
    %c0_5 = arith.constant 0 : index
    %c0_6 = arith.constant 0 : index
    %7 = vector.load %arg6[%c0_5, %c0_6] : memref<64x256xf32, #tpu.memory_space<vmem>>, vector<64x256xf32>
    tpu.vector_store %arg6[%c0_5, %c0_6], %6 {strides = array<i32>} : memref<64x256xf32, #tpu.memory_space<vmem>>, vector<64x256xf32>,
    %cst_7 = arith.constant 0.000000e+00 : f32
    %8 = vector.broadcast %cst_7 : f32 to vector<8x64xf32>
    %cst_8 = arith.constant 0.000000e+00 : f32
    %9 = vector.broadcast %cst_8 : f32 to vector<8x32xf32>
    %cst_9 = arith.constant 0.000000e+00 : f32
    %10 = vector.broadcast %cst_9 : f32 to vector<8x32xf32>
    %c0_i32 = arith.constant 0 : i32
    %c8_i32 = arith.constant 8 : i32
    %11 = arith.muli %c0_i32, %c8_i32 : i32
    %12 = tpu.assume_multiple %11, 8 : i32
    %c7_i32 = arith.constant 7 : i32
    %13 = arith.subi %c7_i32, %c0_i32 : i32
    %c8_i32_10 = arith.constant 8 : i32
    %14 = arith.muli %13, %c8_i32_10 : i32
    %15 = tpu.assume_multiple %14, 8 : i32
    %16 = arith.truncf %8 : vector<8x64xf32> to vector<8x64xbf16>
    %c0_11 = arith.constant 0 : index
    %c0_12 = arith.constant 0 : index
    %17 = vector.load %arg3[%c0_11, %c0_12] : memref<64x256xbf16, #tpu.memory_space<vmem>>, vector<64x256xbf16>
    %cst_13 = arith.constant dense<0.000000e+00> : vector<8x256xf32>
    %18 = tpu.matmul %16, %17, %cst_13 {dimension_numbers = #tpu.dot_dimension_numbers<[1], [0], [0], [1], [0, 0, 1, 1], [], []>} : vector<8x64xbf16>, vector<64x256xbf16>, vector<8x256xf32> -> vector<8x256xf32>
    %19 = arith.index_cast %12 : i32 to index
    %c0_14 = arith.constant 0 : index
    %20 = vector.load %arg6[%19, %c0_14] : memref<64x256xf32, #tpu.memory_space<vmem>>, vector<8x128xf32>
    %21 = vector.extract_strided_slice %18 {offsets = [0, 0], sizes = [8, 128], strides = [1, 1]} : vector<8x256xf32> to vector<8x128xf32>
    %22 = arith.addf %20, %21 : vector<8x128xf32>
    %23 = arith.index_cast %15 : i32 to index
    %c128 = arith.constant 128 : index
    %24 = vector.load %arg6[%23, %c128] : memref<64x256xf32, #tpu.memory_space<vmem>>, vector<8x128xf32>
    %25 = vector.extract_strided_slice %18 {offsets = [0, 128], sizes = [8, 128], strides = [1, 1]} : vector<8x256xf32> to vector<8x128xf32>
    %26 = arith.addf %24, %25 : vector<8x128xf32>
    %27 = vector.extract_strided_slice %22 {offsets = [0, 0], sizes = [8, 96], strides = [1, 1]} : vector<8x128xf32> to vector<8x96xf32>
    %28 = arith.negf %27 : vector<8x96xf32>
    %29 = math.exp %28 : vector<8x96xf32>
    %cst_15 = arith.constant 1.000000e+00 : f32
    %30 = vector.broadcast %cst_15 : f32 to vector<8x96xf32>
    %31 = arith.addf %30, %29 : vector<8x96xf32>
    %32 = arith.divf %30, %31 : vector<8x96xf32>
    %33 = vector.extract_strided_slice %26 {offsets = [0, 0], sizes = [8, 96], strides = [1, 1]} : vector<8x128xf32> to vector<8x96xf32>
    %34 = arith.negf %33 : vector<8x96xf32>
    %35 = math.exp %34 : vector<8x96xf32>
    %cst_16 = arith.constant 1.000000e+00 : f32
    %36 = vector.broadcast %cst_16 : f32 to vector<8x96xf32>
    %37 = arith.addf %36, %35 : vector<8x96xf32>
    %38 = arith.divf %36, %37 : vector<8x96xf32>
    %39 = vector.extract_strided_slice %22 {offsets = [0, 96], sizes = [8, 32], strides = [1, 1]} : vector<8x128xf32> to vector<8x32xf32>
    %40 = math.tanh %39 : vector<8x32xf32>
    %41 = vector.extract_strided_slice %26 {offsets = [0, 96], sizes = [8, 32], strides = [1, 1]} : vector<8x128xf32> to vector<8x32xf32>
    %42 = math.tanh %41 : vector<8x32xf32>
    %43 = vector.extract_strided_slice %32 {offsets = [0, 32], sizes = [8, 32], strides = [1, 1]} : vector<8x96xf32> to vector<8x32xf32>
    %44 = arith.mulf %43, %9 : vector<8x32xf32>
    %45 = vector.extract_strided_slice %32 {offsets = [0, 0], sizes = [8, 32], strides = [1, 1]} : vector<8x96xf32> to vector<8x32xf32>
    %46 = arith.mulf %45, %40 : vector<8x32xf32>
    %47 = arith.addf %44, %46 : vector<8x32xf32>
    %48 = vector.extract_strided_slice %38 {offsets = [0, 32], sizes = [8, 32], strides = [1, 1]} : vector<8x96xf32> to vector<8x32xf32>
    %49 = arith.mulf %48, %10 : vector<8x32xf32>
    %50 = vector.extract_strided_slice %38 {offsets = [0, 0], sizes = [8, 32], strides = [1, 1]} : vector<8x96xf32> to vector<8x32xf32>
    %51 = arith.mulf %50, %42 : vector<8x32xf32>
    %52 = arith.addf %49, %51 : vector<8x32xf32>
    %53 = vector.extract_strided_slice %32 {offsets = [0, 64], sizes = [8, 32], strides = [1, 1]} : vector<8x96xf32> to vector<8x32xf32>
    %54 = math.tanh %47 : vector<8x32xf32>
    %55 = arith.mulf %53, %54 : vector<8x32xf32>
    %56 = vector.extract_strided_slice %38 {offsets = [0, 64], sizes = [8, 32], strides = [1, 1]} : vector<8x96xf32> to vector<8x32xf32>
    %57 = math.tanh %52 : vector<8x32xf32>
    %58 = arith.mulf %56, %57 : vector<8x32xf32>
    %59 = arith.index_cast %12 : i32 to index
    %c0_17 = arith.constant 0 : index
    %60 = vector.load %arg5[%59, %c0_17] : memref<64x64xf32, #tpu.memory_space<vmem>>, vector<8x32xf32>
    tpu.vector_store %arg5[%59, %c0_17], %55 {strides = array<i32>} : memref<64x64xf32, #tpu.memory_space<vmem>>, vector<8x32xf32>,
    %61 = arith.index_cast %15 : i32 to index
    %c32 = arith.constant 32 : index
    %62 = vector.load %arg5[%61, %c32] : memref<64x64xf32, #tpu.memory_space<vmem>>, vector<8x32xf32>
    tpu.vector_store %arg5[%61, %c32], %58 {strides = array<i32>} : memref<64x64xf32, #tpu.memory_space<vmem>>, vector<8x32xf32>,
    %63 = tpu.concatenate %55, %58 in 1 : vector<8x32xf32>, vector<8x32xf32> -> vector<8x64xf32>
    %c1_i32 = arith.constant 1 : i32
    %c8_i32_18 = arith.constant 8 : i32
    %64 = arith.muli %c1_i32, %c8_i32_18 : i32
    %65 = tpu.assume_multiple %64, 8 : i32
    %c7_i32_19 = arith.constant 7 : i32
    %66 = arith.subi %c7_i32_19, %c1_i32 : i32
    %c8_i32_20 = arith.constant 8 : i32
    %67 = arith.muli %66, %c8_i32_20 : i32
    %68 = tpu.assume_multiple %67, 8 : i32
    %69 = arith.truncf %63 : vector<8x64xf32> to vector<8x64xbf16>
    %c0_21 = arith.constant 0 : index
    %c0_22 = arith.constant 0 : index
    %70 = vector.load %arg3[%c0_21, %c0_22] : memref<64x256xbf16, #tpu.memory_space<vmem>>, vector<64x256xbf16>
    %cst_23 = arith.constant dense<0.000000e+00> : vector<8x256xf32>
    %71 = tpu.matmul %69, %70, %cst_23 {dimension_numbers = #tpu.dot_dimension_numbers<[1], [0], [0], [1], [0, 0, 1, 1], [], []>} : vector<8x64xbf16>, vector<64x256xbf16>, vector<8x256xf32> -> vector<8x256xf32>
    %72 = arith.index_cast %65 : i32 to index
    %c0_24 = arith.constant 0 : index
    %73 = vector.load %arg6[%72, %c0_24] : memref<64x256xf32, #tpu.memory_space<vmem>>, vector<8x128xf32>
    %74 = vector.extract_strided_slice %71 {offsets = [0, 0], sizes = [8, 128], strides = [1, 1]} : vector<8x256xf32> to vector<8x128xf32>
    %75 = arith.addf %73, %74 : vector<8x128xf32>
    %76 = arith.index_cast %68 : i32 to index
    %c128_25 = arith.constant 128 : index
    %77 = vector.load %arg6[%76, %c128_25] : memref<64x256xf32, #tpu.memory_space<vmem>>, vector<8x128xf32>
    %78 = vector.extract_strided_slice %71 {offsets = [0, 128], sizes = [8, 128], strides = [1, 1]} : vector<8x256xf32> to vector<8x128xf32>
    %79 = arith.addf %77, %78 : vector<8x128xf32>
    %80 = vector.extract_strided_slice %75 {offsets = [0, 0], sizes = [8, 96], strides = [1, 1]} : vector<8x128xf32> to vector<8x96xf32>
    %81 = arith.negf %80 : vector<8x96xf32>
    %82 = math.exp %81 : vector<8x96xf32>
    %cst_26 = arith.constant 1.000000e+00 : f32
    %83 = vector.broadcast %cst_26 : f32 to vector<8x96xf32>
    %84 = arith.addf %83, %82 : vector<8x96xf32>
    %85 = arith.divf %83, %84 : vector<8x96xf32>
    %86 = vector.extract_strided_slice %79 {offsets = [0, 0], sizes = [8, 96], strides = [1, 1]} : vector<8x128xf32> to vector<8x96xf32>
    %87 = arith.negf %86 : vector<8x96xf32>
    %88 = math.exp %87 : vector<8x96xf32>
    %cst_27 = arith.constant 1.000000e+00 : f32
    %89 = vector.broadcast %cst_27 : f32 to vector<8x96xf32>
    %90 = arith.addf %89, %88 : vector<8x96xf32>
    %91 = arith.divf %89, %90 : vector<8x96xf32>
    %92 = vector.extract_strided_slice %75 {offsets = [0, 96], sizes = [8, 32], strides = [1, 1]} : vector<8x128xf32> to vector<8x32xf32>
    %93 = math.tanh %92 : vector<8x32xf32>
    %94 = vector.extract_strided_slice %79 {offsets = [0, 96], sizes = [8, 32], strides = [1, 1]} : vector<8x128xf32> to vector<8x32xf32>
    %95 = math.tanh %94 : vector<8x32xf32>
    %96 = vector.extract_strided_slice %85 {offsets = [0, 32], sizes = [8, 32], strides = [1, 1]} : vector<8x96xf32> to vector<8x32xf32>
    %97 = arith.mulf %96, %47 : vector<8x32xf32>
    %98 = vector.extract_strided_slice %85 {offsets = [0, 0], sizes = [8, 32], strides = [1, 1]} : vector<8x96xf32> to vector<8x32xf32>
    %99 = arith.mulf %98, %93 : vector<8x32xf32>
    %100 = arith.addf %97, %99 : vector<8x32xf32>
    %101 = vector.extract_strided_slice %91 {offsets = [0, 32], sizes = [8, 32], strides = [1, 1]} : vector<8x96xf32> to vector<8x32xf32>
    %102 = arith.mulf %101, %52 : vector<8x32xf32>
    %103 = vector.extract_strided_slice %91 {offsets = [0, 0], sizes = [8, 32], strides = [1, 1]} : vector<8x96xf32> to vector<8x32xf32>
    %104 = arith.mulf %103, %95 : vector<8x32xf32>
    %105 = arith.addf %102, %104 : vector<8x32xf32>
    %106 = vector.extract_strided_slice %85 {offsets = [0, 64], sizes = [8, 32], strides = [1, 1]} : vector<8x96xf32> to vector<8x32xf32>
    %107 = math.tanh %100 : vector<8x32xf32>
    %108 = arith.mulf %106, %107 : vector<8x32xf32>
    %109 = vector.extract_strided_slice %91 {offsets = [0, 64], sizes = [8, 32], strides = [1, 1]} : vector<8x96xf32> to vector<8x32xf32>
    %110 = math.tanh %105 : vector<8x32xf32>
    %111 = arith.mulf %109, %110 : vector<8x32xf32>
    %112 = arith.index_cast %65 : i32 to index
    %c0_28 = arith.constant 0 : index
    %113 = vector.load %arg5[%112, %c0_28] : memref<64x64xf32, #tpu.memory_space<vmem>>, vector<8x32xf32>
    tpu.vector_store %arg5[%112, %c0_28], %108 {strides = array<i32>} : memref<64x64xf32, #tpu.memory_space<vmem>>, vector<8x32xf32>,
    %114 = arith.index_cast %68 : i32 to index
    %c32_29 = arith.constant 32 : index
    %115 = vector.load %arg5[%114, %c32_29] : memref<64x64xf32, #tpu.memory_space<vmem>>, vector<8x32xf32>
    tpu.vector_store %arg5[%114, %c32_29], %111 {strides = array<i32>} : memref<64x64xf32, #tpu.memory_space<vmem>>, vector<8x32xf32>,
    %116 = tpu.concatenate %108, %111 in 1 : vector<8x32xf32>, vector<8x32xf32> -> vector<8x64xf32>
    %c2_i32 = arith.constant 2 : i32
    %c8_i32_30 = arith.constant 8 : i32
    %117 = arith.muli %c2_i32, %c8_i32_30 : i32
    %118 = tpu.assume_multiple %117, 8 : i32
    %c7_i32_31 = arith.constant 7 : i32
    %119 = arith.subi %c7_i32_31, %c2_i32 : i32
    %c8_i32_32 = arith.constant 8 : i32
    %120 = arith.muli %119, %c8_i32_32 : i32
    %121 = tpu.assume_multiple %120, 8 : i32
    %122 = arith.truncf %116 : vector<8x64xf32> to vector<8x64xbf16>
    %c0_33 = arith.constant 0 : index
    %c0_34 = arith.constant 0 : index
    %123 = vector.load %arg3[%c0_33, %c0_34] : memref<64x256xbf16, #tpu.memory_space<vmem>>, vector<64x256xbf16>
    %cst_35 = arith.constant dense<0.000000e+00> : vector<8x256xf32>
    %124 = tpu.matmul %122, %123, %cst_35 {dimension_numbers = #tpu.dot_dimension_numbers<[1], [0], [0], [1], [0, 0, 1, 1], [], []>} : vector<8x64xbf16>, vector<64x256xbf16>, vector<8x256xf32> -> vector<8x256xf32>
    %125 = arith.index_cast %118 : i32 to index
    %c0_36 = arith.constant 0 : index
    %126 = vector.load %arg6[%125, %c0_36] : memref<64x256xf32, #tpu.memory_space<vmem>>, vector<8x128xf32>
    %127 = vector.extract_strided_slice %124 {offsets = [0, 0], sizes = [8, 128], strides = [1, 1]} : vector<8x256xf32> to vector<8x128xf32>
    %128 = arith.addf %126, %127 : vector<8x128xf32>
    %129 = arith.index_cast %121 : i32 to index
    %c128_37 = arith.constant 128 : index
    %130 = vector.load %arg6[%129, %c128_37] : memref<64x256xf32, #tpu.memory_space<vmem>>, vector<8x128xf32>
    %131 = vector.extract_strided_slice %124 {offsets = [0, 128], sizes = [8, 128], strides = [1, 1]} : vector<8x256xf32> to vector<8x128xf32>
    %132 = arith.addf %130, %131 : vector<8x128xf32>
    %133 = vector.extract_strided_slice %128 {offsets = [0, 0], sizes = [8, 96], strides = [1, 1]} : vector<8x128xf32> to vector<8x96xf32>
    %134 = arith.negf %133 : vector<8x96xf32>
    %135 = math.exp %134 : vector<8x96xf32>
    %cst_38 = arith.constant 1.000000e+00 : f32
    %136 = vector.broadcast %cst_38 : f32 to vector<8x96xf32>
    %137 = arith.addf %136, %135 : vector<8x96xf32>
    %138 = arith.divf %136, %137 : vector<8x96xf32>
    %139 = vector.extract_strided_slice %132 {offsets = [0, 0], sizes = [8, 96], strides = [1, 1]} : vector<8x128xf32> to vector<8x96xf32>
    %140 = arith.negf %139 : vector<8x96xf32>
    %141 = math.exp %140 : vector<8x96xf32>
    %cst_39 = arith.constant 1.000000e+00 : f32
    %142 = vector.broadcast %cst_39 : f32 to vector<8x96xf32>
    %143 = arith.addf %142, %141 : vector<8x96xf32>
    %144 = arith.divf %142, %143 : vector<8x96xf32>
    %145 = vector.extract_strided_slice %128 {offsets = [0, 96], sizes = [8, 32], strides = [1, 1]} : vector<8x128xf32> to vector<8x32xf32>
    %146 = math.tanh %145 : vector<8x32xf32>
    %147 = vector.extract_strided_slice %132 {offsets = [0, 96], sizes = [8, 32], strides = [1, 1]} : vector<8x128xf32> to vector<8x32xf32>
    %148 = math.tanh %147 : vector<8x32xf32>
    %149 = vector.extract_strided_slice %138 {offsets = [0, 32], sizes = [8, 32], strides = [1, 1]} : vector<8x96xf32> to vector<8x32xf32>
    %150 = arith.mulf %149, %100 : vector<8x32xf32>
    %151 = vector.extract_strided_slice %138 {offsets = [0, 0], sizes = [8, 32], strides = [1, 1]} : vector<8x96xf32> to vector<8x32xf32>
    %152 = arith.mulf %151, %146 : vector<8x32xf32>
    %153 = arith.addf %150, %152 : vector<8x32xf32>
    %154 = vector.extract_strided_slice %144 {offsets = [0, 32], sizes = [8, 32], strides = [1, 1]} : vector<8x96xf32> to vector<8x32xf32>
    %155 = arith.mulf %154, %105 : vector<8x32xf32>
    %156 = vector.extract_strided_slice %144 {offsets = [0, 0], sizes = [8, 32], strides = [1, 1]} : vector<8x96xf32> to vector<8x32xf32>
    %157 = arith.mulf %156, %148 : vector<8x32xf32>
    %158 = arith.addf %155, %157 : vector<8x32xf32>
    %159 = vector.extract_strided_slice %138 {offsets = [0, 64], sizes = [8, 32], strides = [1, 1]} : vector<8x96xf32> to vector<8x32xf32>
    %160 = math.tanh %153 : vector<8x32xf32>
    %161 = arith.mulf %159, %160 : vector<8x32xf32>
    %162 = vector.extract_strided_slice %144 {offsets = [0, 64], sizes = [8, 32], strides = [1, 1]} : vector<8x96xf32> to vector<8x32xf32>
    %163 = math.tanh %158 : vector<8x32xf32>
    %164 = arith.mulf %162, %163 : vector<8x32xf32>
    %165 = arith.index_cast %118 : i32 to index
    %c0_40 = arith.constant 0 : index
    %166 = vector.load %arg5[%165, %c0_40] : memref<64x64xf32, #tpu.memory_space<vmem>>, vector<8x32xf32>
    tpu.vector_store %arg5[%165, %c0_40], %161 {strides = array<i32>} : memref<64x64xf32, #tpu.memory_space<vmem>>, vector<8x32xf32>,
    %167 = arith.index_cast %121 : i32 to index
    %c32_41 = arith.constant 32 : index
    %168 = vector.load %arg5[%167, %c32_41] : memref<64x64xf32, #tpu.memory_space<vmem>>, vector<8x32xf32>
    tpu.vector_store %arg5[%167, %c32_41], %164 {strides = array<i32>} : memref<64x64xf32, #tpu.memory_space<vmem>>, vector<8x32xf32>,
    %169 = tpu.concatenate %161, %164 in 1 : vector<8x32xf32>, vector<8x32xf32> -> vector<8x64xf32>
    %c3_i32 = arith.constant 3 : i32
    %c8_i32_42 = arith.constant 8 : i32
    %170 = arith.muli %c3_i32, %c8_i32_42 : i32
    %171 = tpu.assume_multiple %170, 8 : i32
    %c7_i32_43 = arith.constant 7 : i32
    %172 = arith.subi %c7_i32_43, %c3_i32 : i32
    %c8_i32_44 = arith.constant 8 : i32
    %173 = arith.muli %172, %c8_i32_44 : i32
    %174 = tpu.assume_multiple %173, 8 : i32
    %175 = arith.truncf %169 : vector<8x64xf32> to vector<8x64xbf16>
    %c0_45 = arith.constant 0 : index
    %c0_46 = arith.constant 0 : index
    %176 = vector.load %arg3[%c0_45, %c0_46] : memref<64x256xbf16, #tpu.memory_space<vmem>>, vector<64x256xbf16>
    %cst_47 = arith.constant dense<0.000000e+00> : vector<8x256xf32>
    %177 = tpu.matmul %175, %176, %cst_47 {dimension_numbers = #tpu.dot_dimension_numbers<[1], [0], [0], [1], [0, 0, 1, 1], [], []>} : vector<8x64xbf16>, vector<64x256xbf16>, vector<8x256xf32> -> vector<8x256xf32>
    %178 = arith.index_cast %171 : i32 to index
    %c0_48 = arith.constant 0 : index
    %179 = vector.load %arg6[%178, %c0_48] : memref<64x256xf32, #tpu.memory_space<vmem>>, vector<8x128xf32>
    %180 = vector.extract_strided_slice %177 {offsets = [0, 0], sizes = [8, 128], strides = [1, 1]} : vector<8x256xf32> to vector<8x128xf32>
    %181 = arith.addf %179, %180 : vector<8x128xf32>
    %182 = arith.index_cast %174 : i32 to index
    %c128_49 = arith.constant 128 : index
    %183 = vector.load %arg6[%182, %c128_49] : memref<64x256xf32, #tpu.memory_space<vmem>>, vector<8x128xf32>
    %184 = vector.extract_strided_slice %177 {offsets = [0, 128], sizes = [8, 128], strides = [1, 1]} : vector<8x256xf32> to vector<8x128xf32>
    %185 = arith.addf %183, %184 : vector<8x128xf32>
    %186 = vector.extract_strided_slice %181 {offsets = [0, 0], sizes = [8, 96], strides = [1, 1]} : vector<8x128xf32> to vector<8x96xf32>
    %187 = arith.negf %186 : vector<8x96xf32>
    %188 = math.exp %187 : vector<8x96xf32>
    %cst_50 = arith.constant 1.000000e+00 : f32
    %189 = vector.broadcast %cst_50 : f32 to vector<8x96xf32>
    %190 = arith.addf %189, %188 : vector<8x96xf32>
    %191 = arith.divf %189, %190 : vector<8x96xf32>
    %192 = vector.extract_strided_slice %185 {offsets = [0, 0], sizes = [8, 96], strides = [1, 1]} : vector<8x128xf32> to vector<8x96xf32>
    %193 = arith.negf %192 : vector<8x96xf32>
    %194 = math.exp %193 : vector<8x96xf32>
    %cst_51 = arith.constant 1.000000e+00 : f32
    %195 = vector.broadcast %cst_51 : f32 to vector<8x96xf32>
    %196 = arith.addf %195, %194 : vector<8x96xf32>
    %197 = arith.divf %195, %196 : vector<8x96xf32>
    %198 = vector.extract_strided_slice %181 {offsets = [0, 96], sizes = [8, 32], strides = [1, 1]} : vector<8x128xf32> to vector<8x32xf32>
    %199 = math.tanh %198 : vector<8x32xf32>
    %200 = vector.extract_strided_slice %185 {offsets = [0, 96], sizes = [8, 32], strides = [1, 1]} : vector<8x128xf32> to vector<8x32xf32>
    %201 = math.tanh %200 : vector<8x32xf32>
    %202 = vector.extract_strided_slice %191 {offsets = [0, 32], sizes = [8, 32], strides = [1, 1]} : vector<8x96xf32> to vector<8x32xf32>
    %203 = arith.mulf %202, %153 : vector<8x32xf32>
    %204 = vector.extract_strided_slice %191 {offsets = [0, 0], sizes = [8, 32], strides = [1, 1]} : vector<8x96xf32> to vector<8x32xf32>
    %205 = arith.mulf %204, %199 : vector<8x32xf32>
    %206 = arith.addf %203, %205 : vector<8x32xf32>
    %207 = vector.extract_strided_slice %197 {offsets = [0, 32], sizes = [8, 32], strides = [1, 1]} : vector<8x96xf32> to vector<8x32xf32>
    %208 = arith.mulf %207, %158 : vector<8x32xf32>
    %209 = vector.extract_strided_slice %197 {offsets = [0, 0], sizes = [8, 32], strides = [1, 1]} : vector<8x96xf32> to vector<8x32xf32>
    %210 = arith.mulf %209, %201 : vector<8x32xf32>
    %211 = arith.addf %208, %210 : vector<8x32xf32>
    %212 = vector.extract_strided_slice %191 {offsets = [0, 64], sizes = [8, 32], strides = [1, 1]} : vector<8x96xf32> to vector<8x32xf32>
    %213 = math.tanh %206 : vector<8x32xf32>
    %214 = arith.mulf %212, %213 : vector<8x32xf32>
    %215 = vector.extract_strided_slice %197 {offsets = [0, 64], sizes = [8, 32], strides = [1, 1]} : vector<8x96xf32> to vector<8x32xf32>
    %216 = math.tanh %211 : vector<8x32xf32>
    %217 = arith.mulf %215, %216 : vector<8x32xf32>
    %218 = arith.index_cast %171 : i32 to index
    %c0_52 = arith.constant 0 : index
    %219 = vector.load %arg5[%218, %c0_52] : memref<64x64xf32, #tpu.memory_space<vmem>>, vector<8x32xf32>
    tpu.vector_store %arg5[%218, %c0_52], %214 {strides = array<i32>} : memref<64x64xf32, #tpu.memory_space<vmem>>, vector<8x32xf32>,
    %220 = arith.index_cast %174 : i32 to index
    %c32_53 = arith.constant 32 : index
    %221 = vector.load %arg5[%220, %c32_53] : memref<64x64xf32, #tpu.memory_space<vmem>>, vector<8x32xf32>
    tpu.vector_store %arg5[%220, %c32_53], %217 {strides = array<i32>} : memref<64x64xf32, #tpu.memory_space<vmem>>, vector<8x32xf32>,
    %222 = tpu.concatenate %214, %217 in 1 : vector<8x32xf32>, vector<8x32xf32> -> vector<8x64xf32>
    %c4_i32 = arith.constant 4 : i32
    %c8_i32_54 = arith.constant 8 : i32
    %223 = arith.muli %c4_i32, %c8_i32_54 : i32
    %224 = tpu.assume_multiple %223, 8 : i32
    %c7_i32_55 = arith.constant 7 : i32
    %225 = arith.subi %c7_i32_55, %c4_i32 : i32
    %c8_i32_56 = arith.constant 8 : i32
    %226 = arith.muli %225, %c8_i32_56 : i32
    %227 = tpu.assume_multiple %226, 8 : i32
    %228 = arith.truncf %222 : vector<8x64xf32> to vector<8x64xbf16>
    %c0_57 = arith.constant 0 : index
    %c0_58 = arith.constant 0 : index
    %229 = vector.load %arg3[%c0_57, %c0_58] : memref<64x256xbf16, #tpu.memory_space<vmem>>, vector<64x256xbf16>
    %cst_59 = arith.constant dense<0.000000e+00> : vector<8x256xf32>
    %230 = tpu.matmul %228, %229, %cst_59 {dimension_numbers = #tpu.dot_dimension_numbers<[1], [0], [0], [1], [0, 0, 1, 1], [], []>} : vector<8x64xbf16>, vector<64x256xbf16>, vector<8x256xf32> -> vector<8x256xf32>
    %231 = arith.index_cast %224 : i32 to index
    %c0_60 = arith.constant 0 : index
    %232 = vector.load %arg6[%231, %c0_60] : memref<64x256xf32, #tpu.memory_space<vmem>>, vector<8x128xf32>
    %233 = vector.extract_strided_slice %230 {offsets = [0, 0], sizes = [8, 128], strides = [1, 1]} : vector<8x256xf32> to vector<8x128xf32>
    %234 = arith.addf %232, %233 : vector<8x128xf32>
    %235 = arith.index_cast %227 : i32 to index
    %c128_61 = arith.constant 128 : index
    %236 = vector.load %arg6[%235, %c128_61] : memref<64x256xf32, #tpu.memory_space<vmem>>, vector<8x128xf32>
    %237 = vector.extract_strided_slice %230 {offsets = [0, 128], sizes = [8, 128], strides = [1, 1]} : vector<8x256xf32> to vector<8x128xf32>
    %238 = arith.addf %236, %237 : vector<8x128xf32>
    %239 = vector.extract_strided_slice %234 {offsets = [0, 0], sizes = [8, 96], strides = [1, 1]} : vector<8x128xf32> to vector<8x96xf32>
    %240 = arith.negf %239 : vector<8x96xf32>
    %241 = math.exp %240 : vector<8x96xf32>
    %cst_62 = arith.constant 1.000000e+00 : f32
    %242 = vector.broadcast %cst_62 : f32 to vector<8x96xf32>
    %243 = arith.addf %242, %241 : vector<8x96xf32>
    %244 = arith.divf %242, %243 : vector<8x96xf32>
    %245 = vector.extract_strided_slice %238 {offsets = [0, 0], sizes = [8, 96], strides = [1, 1]} : vector<8x128xf32> to vector<8x96xf32>
    %246 = arith.negf %245 : vector<8x96xf32>
    %247 = math.exp %246 : vector<8x96xf32>
    %cst_63 = arith.constant 1.000000e+00 : f32
    %248 = vector.broadcast %cst_63 : f32 to vector<8x96xf32>
    %249 = arith.addf %248, %247 : vector<8x96xf32>
    %250 = arith.divf %248, %249 : vector<8x96xf32>
    %251 = vector.extract_strided_slice %234 {offsets = [0, 96], sizes = [8, 32], strides = [1, 1]} : vector<8x128xf32> to vector<8x32xf32>
    %252 = math.tanh %251 : vector<8x32xf32>
    %253 = vector.extract_strided_slice %238 {offsets = [0, 96], sizes = [8, 32], strides = [1, 1]} : vector<8x128xf32> to vector<8x32xf32>
    %254 = math.tanh %253 : vector<8x32xf32>
    %255 = vector.extract_strided_slice %244 {offsets = [0, 32], sizes = [8, 32], strides = [1, 1]} : vector<8x96xf32> to vector<8x32xf32>
    %256 = arith.mulf %255, %206 : vector<8x32xf32>
    %257 = vector.extract_strided_slice %244 {offsets = [0, 0], sizes = [8, 32], strides = [1, 1]} : vector<8x96xf32> to vector<8x32xf32>
    %258 = arith.mulf %257, %252 : vector<8x32xf32>
    %259 = arith.addf %256, %258 : vector<8x32xf32>
    %260 = vector.extract_strided_slice %250 {offsets = [0, 32], sizes = [8, 32], strides = [1, 1]} : vector<8x96xf32> to vector<8x32xf32>
    %261 = arith.mulf %260, %211 : vector<8x32xf32>
    %262 = vector.extract_strided_slice %250 {offsets = [0, 0], sizes = [8, 32], strides = [1, 1]} : vector<8x96xf32> to vector<8x32xf32>
    %263 = arith.mulf %262, %254 : vector<8x32xf32>
    %264 = arith.addf %261, %263 : vector<8x32xf32>
    %265 = vector.extract_strided_slice %244 {offsets = [0, 64], sizes = [8, 32], strides = [1, 1]} : vector<8x96xf32> to vector<8x32xf32>
    %266 = math.tanh %259 : vector<8x32xf32>
    %267 = arith.mulf %265, %266 : vector<8x32xf32>
    %268 = vector.extract_strided_slice %250 {offsets = [0, 64], sizes = [8, 32], strides = [1, 1]} : vector<8x96xf32> to vector<8x32xf32>
    %269 = math.tanh %264 : vector<8x32xf32>
    %270 = arith.mulf %268, %269 : vector<8x32xf32>
    %271 = arith.index_cast %224 : i32 to index
    %c0_64 = arith.constant 0 : index
    %272 = vector.load %arg5[%271, %c0_64] : memref<64x64xf32, #tpu.memory_space<vmem>>, vector<8x32xf32>
    tpu.vector_store %arg5[%271, %c0_64], %267 {strides = array<i32>} : memref<64x64xf32, #tpu.memory_space<vmem>>, vector<8x32xf32>,
    %273 = arith.index_cast %227 : i32 to index
    %c32_65 = arith.constant 32 : index
    %274 = vector.load %arg5[%273, %c32_65] : memref<64x64xf32, #tpu.memory_space<vmem>>, vector<8x32xf32>
    tpu.vector_store %arg5[%273, %c32_65], %270 {strides = array<i32>} : memref<64x64xf32, #tpu.memory_space<vmem>>, vector<8x32xf32>,
    %275 = tpu.concatenate %267, %270 in 1 : vector<8x32xf32>, vector<8x32xf32> -> vector<8x64xf32>
    %c5_i32 = arith.constant 5 : i32
    %c8_i32_66 = arith.constant 8 : i32
    %276 = arith.muli %c5_i32, %c8_i32_66 : i32
    %277 = tpu.assume_multiple %276, 8 : i32
    %c7_i32_67 = arith.constant 7 : i32
    %278 = arith.subi %c7_i32_67, %c5_i32 : i32
    %c8_i32_68 = arith.constant 8 : i32
    %279 = arith.muli %278, %c8_i32_68 : i32
    %280 = tpu.assume_multiple %279, 8 : i32
    %281 = arith.truncf %275 : vector<8x64xf32> to vector<8x64xbf16>
    %c0_69 = arith.constant 0 : index
    %c0_70 = arith.constant 0 : index
    %282 = vector.load %arg3[%c0_69, %c0_70] : memref<64x256xbf16, #tpu.memory_space<vmem>>, vector<64x256xbf16>
    %cst_71 = arith.constant dense<0.000000e+00> : vector<8x256xf32>
    %283 = tpu.matmul %281, %282, %cst_71 {dimension_numbers = #tpu.dot_dimension_numbers<[1], [0], [0], [1], [0, 0, 1, 1], [], []>} : vector<8x64xbf16>, vector<64x256xbf16>, vector<8x256xf32> -> vector<8x256xf32>
    %284 = arith.index_cast %277 : i32 to index
    %c0_72 = arith.constant 0 : index
    %285 = vector.load %arg6[%284, %c0_72] : memref<64x256xf32, #tpu.memory_space<vmem>>, vector<8x128xf32>
    %286 = vector.extract_strided_slice %283 {offsets = [0, 0], sizes = [8, 128], strides = [1, 1]} : vector<8x256xf32> to vector<8x128xf32>
    %287 = arith.addf %285, %286 : vector<8x128xf32>
    %288 = arith.index_cast %280 : i32 to index
    %c128_73 = arith.constant 128 : index
    %289 = vector.load %arg6[%288, %c128_73] : memref<64x256xf32, #tpu.memory_space<vmem>>, vector<8x128xf32>
    %290 = vector.extract_strided_slice %283 {offsets = [0, 128], sizes = [8, 128], strides = [1, 1]} : vector<8x256xf32> to vector<8x128xf32>
    %291 = arith.addf %289, %290 : vector<8x128xf32>
    %292 = vector.extract_strided_slice %287 {offsets = [0, 0], sizes = [8, 96], strides = [1, 1]} : vector<8x128xf32> to vector<8x96xf32>
    %293 = arith.negf %292 : vector<8x96xf32>
    %294 = math.exp %293 : vector<8x96xf32>
    %cst_74 = arith.constant 1.000000e+00 : f32
    %295 = vector.broadcast %cst_74 : f32 to vector<8x96xf32>
    %296 = arith.addf %295, %294 : vector<8x96xf32>
    %297 = arith.divf %295, %296 : vector<8x96xf32>
    %298 = vector.extract_strided_slice %291 {offsets = [0, 0], sizes = [8, 96], strides = [1, 1]} : vector<8x128xf32> to vector<8x96xf32>
    %299 = arith.negf %298 : vector<8x96xf32>
    %300 = math.exp %299 : vector<8x96xf32>
    %cst_75 = arith.constant 1.000000e+00 : f32
    %301 = vector.broadcast %cst_75 : f32 to vector<8x96xf32>
    %302 = arith.addf %301, %300 : vector<8x96xf32>
    %303 = arith.divf %301, %302 : vector<8x96xf32>
    %304 = vector.extract_strided_slice %287 {offsets = [0, 96], sizes = [8, 32], strides = [1, 1]} : vector<8x128xf32> to vector<8x32xf32>
    %305 = math.tanh %304 : vector<8x32xf32>
    %306 = vector.extract_strided_slice %291 {offsets = [0, 96], sizes = [8, 32], strides = [1, 1]} : vector<8x128xf32> to vector<8x32xf32>
    %307 = math.tanh %306 : vector<8x32xf32>
    %308 = vector.extract_strided_slice %297 {offsets = [0, 32], sizes = [8, 32], strides = [1, 1]} : vector<8x96xf32> to vector<8x32xf32>
    %309 = arith.mulf %308, %259 : vector<8x32xf32>
    %310 = vector.extract_strided_slice %297 {offsets = [0, 0], sizes = [8, 32], strides = [1, 1]} : vector<8x96xf32> to vector<8x32xf32>
    %311 = arith.mulf %310, %305 : vector<8x32xf32>
    %312 = arith.addf %309, %311 : vector<8x32xf32>
    %313 = vector.extract_strided_slice %303 {offsets = [0, 32], sizes = [8, 32], strides = [1, 1]} : vector<8x96xf32> to vector<8x32xf32>
    %314 = arith.mulf %313, %264 : vector<8x32xf32>
    %315 = vector.extract_strided_slice %303 {offsets = [0, 0], sizes = [8, 32], strides = [1, 1]} : vector<8x96xf32> to vector<8x32xf32>
    %316 = arith.mulf %315, %307 : vector<8x32xf32>
    %317 = arith.addf %314, %316 : vector<8x32xf32>
    %318 = vector.extract_strided_slice %297 {offsets = [0, 64], sizes = [8, 32], strides = [1, 1]} : vector<8x96xf32> to vector<8x32xf32>
    %319 = math.tanh %312 : vector<8x32xf32>
    %320 = arith.mulf %318, %319 : vector<8x32xf32>
    %321 = vector.extract_strided_slice %303 {offsets = [0, 64], sizes = [8, 32], strides = [1, 1]} : vector<8x96xf32> to vector<8x32xf32>
    %322 = math.tanh %317 : vector<8x32xf32>
    %323 = arith.mulf %321, %322 : vector<8x32xf32>
    %324 = arith.index_cast %277 : i32 to index
    %c0_76 = arith.constant 0 : index
    %325 = vector.load %arg5[%324, %c0_76] : memref<64x64xf32, #tpu.memory_space<vmem>>, vector<8x32xf32>
    tpu.vector_store %arg5[%324, %c0_76], %320 {strides = array<i32>} : memref<64x64xf32, #tpu.memory_space<vmem>>, vector<8x32xf32>,
    %326 = arith.index_cast %280 : i32 to index
    %c32_77 = arith.constant 32 : index
    %327 = vector.load %arg5[%326, %c32_77] : memref<64x64xf32, #tpu.memory_space<vmem>>, vector<8x32xf32>
    tpu.vector_store %arg5[%326, %c32_77], %323 {strides = array<i32>} : memref<64x64xf32, #tpu.memory_space<vmem>>, vector<8x32xf32>,
    %328 = tpu.concatenate %320, %323 in 1 : vector<8x32xf32>, vector<8x32xf32> -> vector<8x64xf32>
    %c6_i32 = arith.constant 6 : i32
    %c8_i32_78 = arith.constant 8 : i32
    %329 = arith.muli %c6_i32, %c8_i32_78 : i32
    %330 = tpu.assume_multiple %329, 8 : i32
    %c7_i32_79 = arith.constant 7 : i32
    %331 = arith.subi %c7_i32_79, %c6_i32 : i32
    %c8_i32_80 = arith.constant 8 : i32
    %332 = arith.muli %331, %c8_i32_80 : i32
    %333 = tpu.assume_multiple %332, 8 : i32
    %334 = arith.truncf %328 : vector<8x64xf32> to vector<8x64xbf16>
    %c0_81 = arith.constant 0 : index
    %c0_82 = arith.constant 0 : index
    %335 = vector.load %arg3[%c0_81, %c0_82] : memref<64x256xbf16, #tpu.memory_space<vmem>>, vector<64x256xbf16>
    %cst_83 = arith.constant dense<0.000000e+00> : vector<8x256xf32>
    %336 = tpu.matmul %334, %335, %cst_83 {dimension_numbers = #tpu.dot_dimension_numbers<[1], [0], [0], [1], [0, 0, 1, 1], [], []>} : vector<8x64xbf16>, vector<64x256xbf16>, vector<8x256xf32> -> vector<8x256xf32>
    %337 = arith.index_cast %330 : i32 to index
    %c0_84 = arith.constant 0 : index
    %338 = vector.load %arg6[%337, %c0_84] : memref<64x256xf32, #tpu.memory_space<vmem>>, vector<8x128xf32>
    %339 = vector.extract_strided_slice %336 {offsets = [0, 0], sizes = [8, 128], strides = [1, 1]} : vector<8x256xf32> to vector<8x128xf32>
    %340 = arith.addf %338, %339 : vector<8x128xf32>
    %341 = arith.index_cast %333 : i32 to index
    %c128_85 = arith.constant 128 : index
    %342 = vector.load %arg6[%341, %c128_85] : memref<64x256xf32, #tpu.memory_space<vmem>>, vector<8x128xf32>
    %343 = vector.extract_strided_slice %336 {offsets = [0, 128], sizes = [8, 128], strides = [1, 1]} : vector<8x256xf32> to vector<8x128xf32>
    %344 = arith.addf %342, %343 : vector<8x128xf32>
    %345 = vector.extract_strided_slice %340 {offsets = [0, 0], sizes = [8, 96], strides = [1, 1]} : vector<8x128xf32> to vector<8x96xf32>
    %346 = arith.negf %345 : vector<8x96xf32>
    %347 = math.exp %346 : vector<8x96xf32>
    %cst_86 = arith.constant 1.000000e+00 : f32
    %348 = vector.broadcast %cst_86 : f32 to vector<8x96xf32>
    %349 = arith.addf %348, %347 : vector<8x96xf32>
    %350 = arith.divf %348, %349 : vector<8x96xf32>
    %351 = vector.extract_strided_slice %344 {offsets = [0, 0], sizes = [8, 96], strides = [1, 1]} : vector<8x128xf32> to vector<8x96xf32>
    %352 = arith.negf %351 : vector<8x96xf32>
    %353 = math.exp %352 : vector<8x96xf32>
    %cst_87 = arith.constant 1.000000e+00 : f32
    %354 = vector.broadcast %cst_87 : f32 to vector<8x96xf32>
    %355 = arith.addf %354, %353 : vector<8x96xf32>
    %356 = arith.divf %354, %355 : vector<8x96xf32>
    %357 = vector.extract_strided_slice %340 {offsets = [0, 96], sizes = [8, 32], strides = [1, 1]} : vector<8x128xf32> to vector<8x32xf32>
    %358 = math.tanh %357 : vector<8x32xf32>
    %359 = vector.extract_strided_slice %344 {offsets = [0, 96], sizes = [8, 32], strides = [1, 1]} : vector<8x128xf32> to vector<8x32xf32>
    %360 = math.tanh %359 : vector<8x32xf32>
    %361 = vector.extract_strided_slice %350 {offsets = [0, 32], sizes = [8, 32], strides = [1, 1]} : vector<8x96xf32> to vector<8x32xf32>
    %362 = arith.mulf %361, %312 : vector<8x32xf32>
    %363 = vector.extract_strided_slice %350 {offsets = [0, 0], sizes = [8, 32], strides = [1, 1]} : vector<8x96xf32> to vector<8x32xf32>
    %364 = arith.mulf %363, %358 : vector<8x32xf32>
    %365 = arith.addf %362, %364 : vector<8x32xf32>
    %366 = vector.extract_strided_slice %356 {offsets = [0, 32], sizes = [8, 32], strides = [1, 1]} : vector<8x96xf32> to vector<8x32xf32>
    %367 = arith.mulf %366, %317 : vector<8x32xf32>
    %368 = vector.extract_strided_slice %356 {offsets = [0, 0], sizes = [8, 32], strides = [1, 1]} : vector<8x96xf32> to vector<8x32xf32>
    %369 = arith.mulf %368, %360 : vector<8x32xf32>
    %370 = arith.addf %367, %369 : vector<8x32xf32>
    %371 = vector.extract_strided_slice %350 {offsets = [0, 64], sizes = [8, 32], strides = [1, 1]} : vector<8x96xf32> to vector<8x32xf32>
    %372 = math.tanh %365 : vector<8x32xf32>
    %373 = arith.mulf %371, %372 : vector<8x32xf32>
    %374 = vector.extract_strided_slice %356 {offsets = [0, 64], sizes = [8, 32], strides = [1, 1]} : vector<8x96xf32> to vector<8x32xf32>
    %375 = math.tanh %370 : vector<8x32xf32>
    %376 = arith.mulf %374, %375 : vector<8x32xf32>
    %377 = arith.index_cast %330 : i32 to index
    %c0_88 = arith.constant 0 : index
    %378 = vector.load %arg5[%377, %c0_88] : memref<64x64xf32, #tpu.memory_space<vmem>>, vector<8x32xf32>
    tpu.vector_store %arg5[%377, %c0_88], %373 {strides = array<i32>} : memref<64x64xf32, #tpu.memory_space<vmem>>, vector<8x32xf32>,
    %379 = arith.index_cast %333 : i32 to index
    %c32_89 = arith.constant 32 : index
    %380 = vector.load %arg5[%379, %c32_89] : memref<64x64xf32, #tpu.memory_space<vmem>>, vector<8x32xf32>
    tpu.vector_store %arg5[%379, %c32_89], %376 {strides = array<i32>} : memref<64x64xf32, #tpu.memory_space<vmem>>, vector<8x32xf32>,
    %381 = tpu.concatenate %373, %376 in 1 : vector<8x32xf32>, vector<8x32xf32> -> vector<8x64xf32>
    %c7_i32_90 = arith.constant 7 : i32
    %c8_i32_91 = arith.constant 8 : i32
    %382 = arith.muli %c7_i32_90, %c8_i32_91 : i32
    %383 = tpu.assume_multiple %382, 8 : i32
    %c7_i32_92 = arith.constant 7 : i32
    %384 = arith.subi %c7_i32_92, %c7_i32_90 : i32
    %c8_i32_93 = arith.constant 8 : i32
    %385 = arith.muli %384, %c8_i32_93 : i32
    %386 = tpu.assume_multiple %385, 8 : i32
    %387 = arith.truncf %381 : vector<8x64xf32> to vector<8x64xbf16>
    %c0_94 = arith.constant 0 : index
    %c0_95 = arith.constant 0 : index
    %388 = vector.load %arg3[%c0_94, %c0_95] : memref<64x256xbf16, #tpu.memory_space<vmem>>, vector<64x256xbf16>
    %cst_96 = arith.constant dense<0.000000e+00> : vector<8x256xf32>
    %389 = tpu.matmul %387, %388, %cst_96 {dimension_numbers = #tpu.dot_dimension_numbers<[1], [0], [0], [1], [0, 0, 1, 1], [], []>} : vector<8x64xbf16>, vector<64x256xbf16>, vector<8x256xf32> -> vector<8x256xf32>
    %390 = arith.index_cast %383 : i32 to index
    %c0_97 = arith.constant 0 : index
    %391 = vector.load %arg6[%390, %c0_97] : memref<64x256xf32, #tpu.memory_space<vmem>>, vector<8x128xf32>
    %392 = vector.extract_strided_slice %389 {offsets = [0, 0], sizes = [8, 128], strides = [1, 1]} : vector<8x256xf32> to vector<8x128xf32>
    %393 = arith.addf %391, %392 : vector<8x128xf32>
    %394 = arith.index_cast %386 : i32 to index
    %c128_98 = arith.constant 128 : index
    %395 = vector.load %arg6[%394, %c128_98] : memref<64x256xf32, #tpu.memory_space<vmem>>, vector<8x128xf32>
    %396 = vector.extract_strided_slice %389 {offsets = [0, 128], sizes = [8, 128], strides = [1, 1]} : vector<8x256xf32> to vector<8x128xf32>
    %397 = arith.addf %395, %396 : vector<8x128xf32>
    %398 = vector.extract_strided_slice %393 {offsets = [0, 0], sizes = [8, 96], strides = [1, 1]} : vector<8x128xf32> to vector<8x96xf32>
    %399 = arith.negf %398 : vector<8x96xf32>
    %400 = math.exp %399 : vector<8x96xf32>
    %cst_99 = arith.constant 1.000000e+00 : f32
    %401 = vector.broadcast %cst_99 : f32 to vector<8x96xf32>
    %402 = arith.addf %401, %400 : vector<8x96xf32>
    %403 = arith.divf %401, %402 : vector<8x96xf32>
    %404 = vector.extract_strided_slice %397 {offsets = [0, 0], sizes = [8, 96], strides = [1, 1]} : vector<8x128xf32> to vector<8x96xf32>
    %405 = arith.negf %404 : vector<8x96xf32>
    %406 = math.exp %405 : vector<8x96xf32>
    %cst_100 = arith.constant 1.000000e+00 : f32
    %407 = vector.broadcast %cst_100 : f32 to vector<8x96xf32>
    %408 = arith.addf %407, %406 : vector<8x96xf32>
    %409 = arith.divf %407, %408 : vector<8x96xf32>
    %410 = vector.extract_strided_slice %393 {offsets = [0, 96], sizes = [8, 32], strides = [1, 1]} : vector<8x128xf32> to vector<8x32xf32>
    %411 = math.tanh %410 : vector<8x32xf32>
    %412 = vector.extract_strided_slice %397 {offsets = [0, 96], sizes = [8, 32], strides = [1, 1]} : vector<8x128xf32> to vector<8x32xf32>
    %413 = math.tanh %412 : vector<8x32xf32>
    %414 = vector.extract_strided_slice %403 {offsets = [0, 32], sizes = [8, 32], strides = [1, 1]} : vector<8x96xf32> to vector<8x32xf32>
    %415 = arith.mulf %414, %365 : vector<8x32xf32>
    %416 = vector.extract_strided_slice %403 {offsets = [0, 0], sizes = [8, 32], strides = [1, 1]} : vector<8x96xf32> to vector<8x32xf32>
    %417 = arith.mulf %416, %411 : vector<8x32xf32>
    %418 = arith.addf %415, %417 : vector<8x32xf32>
    %419 = vector.extract_strided_slice %409 {offsets = [0, 32], sizes = [8, 32], strides = [1, 1]} : vector<8x96xf32> to vector<8x32xf32>
    %420 = arith.mulf %419, %370 : vector<8x32xf32>
    %421 = vector.extract_strided_slice %409 {offsets = [0, 0], sizes = [8, 32], strides = [1, 1]} : vector<8x96xf32> to vector<8x32xf32>
    %422 = arith.mulf %421, %413 : vector<8x32xf32>
    %423 = arith.addf %420, %422 : vector<8x32xf32>
    %424 = vector.extract_strided_slice %403 {offsets = [0, 64], sizes = [8, 32], strides = [1, 1]} : vector<8x96xf32> to vector<8x32xf32>
    %425 = math.tanh %418 : vector<8x32xf32>
    %426 = arith.mulf %424, %425 : vector<8x32xf32>
    %427 = vector.extract_strided_slice %409 {offsets = [0, 64], sizes = [8, 32], strides = [1, 1]} : vector<8x96xf32> to vector<8x32xf32>
    %428 = math.tanh %423 : vector<8x32xf32>
    %429 = arith.mulf %427, %428 : vector<8x32xf32>
    %430 = arith.index_cast %383 : i32 to index
    %c0_101 = arith.constant 0 : index
    %431 = vector.load %arg5[%430, %c0_101] : memref<64x64xf32, #tpu.memory_space<vmem>>, vector<8x32xf32>
    tpu.vector_store %arg5[%430, %c0_101], %426 {strides = array<i32>} : memref<64x64xf32, #tpu.memory_space<vmem>>, vector<8x32xf32>,
    %432 = arith.index_cast %386 : i32 to index
    %c32_102 = arith.constant 32 : index
    %433 = vector.load %arg5[%432, %c32_102] : memref<64x64xf32, #tpu.memory_space<vmem>>, vector<8x32xf32>
    tpu.vector_store %arg5[%432, %c32_102], %429 {strides = array<i32>} : memref<64x64xf32, #tpu.memory_space<vmem>>, vector<8x32xf32>,
    %434 = tpu.concatenate %426, %429 in 1 : vector<8x32xf32>, vector<8x32xf32> -> vector<8x64xf32>
    %c8_i32_103 = arith.constant 8 : i32
    return
  }
  func.func @transform_0(%arg0: i32) -> (i32, i32) {
    %c0_i32 = arith.constant 0 : i32
    %c0_i32_0 = arith.constant 0 : i32
    %c0_i32_1 = arith.constant 0 : i32
    return %c0_i32, %c0_i32_0 : i32, i32
  }
  func.func @transform_1(%arg0: i32) -> (i32, i32) {
    %c0_i32 = arith.constant 0 : i32
    %c0_i32_0 = arith.constant 0 : i32
    %c0_i32_1 = arith.constant 0 : i32
    return %c0_i32, %c0_i32_0 : i32, i32
  }
  func.func @transform_2(%arg0: i32) -> (i32, i32) {
    %c0_i32 = arith.constant 0 : i32
    %c0_i32_0 = arith.constant 0 : i32
    %c0_i32_1 = arith.constant 0 : i32
    return %c0_i32, %c0_i32_0 : i32, i32
  }
  func.func @transform_3(%arg0: i32) -> (i32, i32) {
    %c0_i32 = arith.constant 0 : i32
    %c0_i32_0 = arith.constant 0 : i32
    %c0_i32_1 = arith.constant 0 : i32
    return %c0_i32, %c0_i32_0 : i32, i32
  }
  func.func @transform_4(%arg0: i32) -> (i32, i32) {
    %c0_i32 = arith.constant 0 : i32
    %c0_i32_0 = arith.constant 0 : i32
    %c0_i32_1 = arith.constant 0 : i32
    return %c0_i32, %c0_i32_0 : i32, i32
  }
}

module attributes {stable_mosaic.version = 11 : i64} {
  func.func @_bilstm_layer_kernel(%arg0: i32, %arg1: memref<64x4xf32, #tpu.memory_space<vmem>>, %arg2: memref<4x256xbf16, #tpu.memory_space<vmem>>, %arg3: memref<64x256xbf16, #tpu.memory_space<vmem>>, %arg4: memref<1x256xf32, #tpu.memory_space<vmem>>, %arg5: memref<64x64xf32, #tpu.memory_space<vmem>>, %arg6: memref<64x256xf32, #tpu.memory_space<vmem>>) attributes {dimension_semantics = [#tpu.dimension_semantics<arbitrary>], iteration_bounds = array<i64: 1>, scalar_prefetch = 0 : i64, scratch_operands = 1 : i64, tpu.core_type = #tpu.core_type<tc>, window_params = [{pipeline_mode = #tpu.pipeline_mode<synchronous>, transform_indices = @transform_0, window_bounds = array<i64: 64, 4>}, {pipeline_mode = #tpu.pipeline_mode<synchronous>, transform_indices = @transform_1, window_bounds = array<i64: 4, 256>}, {pipeline_mode = #tpu.pipeline_mode<synchronous>, transform_indices = @transform_2, window_bounds = array<i64: 64, 256>}, {pipeline_mode = #tpu.pipeline_mode<synchronous>, transform_indices = @transform_3, window_bounds = array<i64: 1, 256>}, {pipeline_mode = #tpu.pipeline_mode<synchronous>, transform_indices = @transform_4, window_bounds = array<i64: 64, 64>}]} {
    %c0 = arith.constant 0 : index
    %c0_0 = arith.constant 0 : index
    %0 = vector.load %arg1[%c0, %c0_0] : memref<64x4xf32, #tpu.memory_space<vmem>>, vector<64x4xf32>
    %1 = arith.truncf %0 : vector<64x4xf32> to vector<64x4xbf16>
    %c0_1 = arith.constant 0 : index
    %c0_2 = arith.constant 0 : index
    %2 = vector.load %arg2[%c0_1, %c0_2] : memref<4x256xbf16, #tpu.memory_space<vmem>>, vector<4x256xbf16>
    %cst = arith.constant dense<0.000000e+00> : vector<64x256xf32>
    %3 = tpu.matmul %1, %2, %cst {dimension_numbers = #tpu.dot_dimension_numbers<[1], [0], [0], [1], [0, 0, 1, 1], [], []>} : vector<64x4xbf16>, vector<4x256xbf16>, vector<64x256xf32> -> vector<64x256xf32>
    %c0_3 = arith.constant 0 : index
    %c0_4 = arith.constant 0 : index
    %4 = vector.load %arg4[%c0_3, %c0_4] : memref<1x256xf32, #tpu.memory_space<vmem>>, vector<1x256xf32>
    %5 = vector.broadcast %4 : vector<1x256xf32> to vector<64x256xf32>
    %6 = arith.addf %3, %5 : vector<64x256xf32>
    %c0_5 = arith.constant 0 : index
    %c0_6 = arith.constant 0 : index
    %7 = vector.load %arg6[%c0_5, %c0_6] : memref<64x256xf32, #tpu.memory_space<vmem>>, vector<64x256xf32>
    tpu.vector_store %arg6[%c0_5, %c0_6], %6 {strides = array<i32>} : memref<64x256xf32, #tpu.memory_space<vmem>>, vector<64x256xf32>,
    %cst_7 = arith.constant 0.000000e+00 : f32
    %8 = vector.broadcast %cst_7 : f32 to vector<8x64xf32>
    %cst_8 = arith.constant 0.000000e+00 : f32
    %9 = vector.broadcast %cst_8 : f32 to vector<8x32xf32>
    %cst_9 = arith.constant 0.000000e+00 : f32
    %10 = vector.broadcast %cst_9 : f32 to vector<8x32xf32>
    %c0_i32 = arith.constant 0 : i32
    %c8_i32 = arith.constant 8 : i32
    %11 = arith.muli %c0_i32, %c8_i32 : i32
    %12 = tpu.assume_multiple %11, 8 : i32
    %c7_i32 = arith.constant 7 : i32
    %13 = arith.subi %c7_i32, %c0_i32 : i32
    %c8_i32_10 = arith.constant 8 : i32
    %14 = arith.muli %13, %c8_i32_10 : i32
    %15 = tpu.assume_multiple %14, 8 : i32
    %16 = arith.truncf %8 : vector<8x64xf32> to vector<8x64xbf16>
    %c0_11 = arith.constant 0 : index
    %c0_12 = arith.constant 0 : index
    %17 = vector.load %arg3[%c0_11, %c0_12] : memref<64x256xbf16, #tpu.memory_space<vmem>>, vector<64x256xbf16>
    %cst_13 = arith.constant dense<0.000000e+00> : vector<8x256xf32>
    %18 = tpu.matmul %16, %17, %cst_13 {dimension_numbers = #tpu.dot_dimension_numbers<[1], [0], [0], [1], [0, 0, 1, 1], [], []>} : vector<8x64xbf16>, vector<64x256xbf16>, vector<8x256xf32> -> vector<8x256xf32>
    %19 = arith.index_cast %12 : i32 to index
    %c0_14 = arith.constant 0 : index
    %20 = vector.load %arg6[%19, %c0_14] : memref<64x256xf32, #tpu.memory_space<vmem>>, vector<8x128xf32>
    %21 = vector.extract_strided_slice %18 {offsets = [0, 0], sizes = [8, 128], strides = [1, 1]} : vector<8x256xf32> to vector<8x128xf32>
    %22 = arith.addf %20, %21 : vector<8x128xf32>
    %23 = arith.index_cast %15 : i32 to index
    %c128 = arith.constant 128 : index
    %24 = vector.load %arg6[%23, %c128] : memref<64x256xf32, #tpu.memory_space<vmem>>, vector<8x128xf32>
    %25 = vector.extract_strided_slice %18 {offsets = [0, 128], sizes = [8, 128], strides = [1, 1]} : vector<8x256xf32> to vector<8x128xf32>
    %26 = arith.addf %24, %25 : vector<8x128xf32>
    %27 = vector.extract_strided_slice %22 {offsets = [0, 0], sizes = [8, 96], strides = [1, 1]} : vector<8x128xf32> to vector<8x96xf32>
    %28 = arith.negf %27 : vector<8x96xf32>
    %29 = math.exp %28 : vector<8x96xf32>
    %cst_15 = arith.constant 1.000000e+00 : f32
    %30 = vector.broadcast %cst_15 : f32 to vector<8x96xf32>
    %31 = arith.addf %30, %29 : vector<8x96xf32>
    %32 = arith.divf %30, %31 : vector<8x96xf32>
    %33 = vector.extract_strided_slice %26 {offsets = [0, 0], sizes = [8, 96], strides = [1, 1]} : vector<8x128xf32> to vector<8x96xf32>
    %34 = arith.negf %33 : vector<8x96xf32>
    %35 = math.exp %34 : vector<8x96xf32>
    %cst_16 = arith.constant 1.000000e+00 : f32
    %36 = vector.broadcast %cst_16 : f32 to vector<8x96xf32>
    %37 = arith.addf %36, %35 : vector<8x96xf32>
    %38 = arith.divf %36, %37 : vector<8x96xf32>
    %39 = vector.extract_strided_slice %22 {offsets = [0, 96], sizes = [8, 32], strides = [1, 1]} : vector<8x128xf32> to vector<8x32xf32>
    %40 = math.tanh %39 : vector<8x32xf32>
    %41 = vector.extract_strided_slice %26 {offsets = [0, 96], sizes = [8, 32], strides = [1, 1]} : vector<8x128xf32> to vector<8x32xf32>
    %42 = math.tanh %41 : vector<8x32xf32>
    %43 = vector.extract_strided_slice %32 {offsets = [0, 32], sizes = [8, 32], strides = [1, 1]} : vector<8x96xf32> to vector<8x32xf32>
    %44 = arith.mulf %43, %9 : vector<8x32xf32>
    %45 = vector.extract_strided_slice %32 {offsets = [0, 0], sizes = [8, 32], strides = [1, 1]} : vector<8x96xf32> to vector<8x32xf32>
    %46 = arith.mulf %45, %40 : vector<8x32xf32>
    %47 = arith.addf %44, %46 : vector<8x32xf32>
    %48 = vector.extract_strided_slice %38 {offsets = [0, 32], sizes = [8, 32], strides = [1, 1]} : vector<8x96xf32> to vector<8x32xf32>
    %49 = arith.mulf %48, %10 : vector<8x32xf32>
    %50 = vector.extract_strided_slice %38 {offsets = [0, 0], sizes = [8, 32], strides = [1, 1]} : vector<8x96xf32> to vector<8x32xf32>
    %51 = arith.mulf %50, %42 : vector<8x32xf32>
    %52 = arith.addf %49, %51 : vector<8x32xf32>
    %53 = vector.extract_strided_slice %32 {offsets = [0, 64], sizes = [8, 32], strides = [1, 1]} : vector<8x96xf32> to vector<8x32xf32>
    %54 = math.tanh %47 : vector<8x32xf32>
    %55 = arith.mulf %53, %54 : vector<8x32xf32>
    %56 = vector.extract_strided_slice %38 {offsets = [0, 64], sizes = [8, 32], strides = [1, 1]} : vector<8x96xf32> to vector<8x32xf32>
    %57 = math.tanh %52 : vector<8x32xf32>
    %58 = arith.mulf %56, %57 : vector<8x32xf32>
    %59 = arith.index_cast %12 : i32 to index
    %c0_17 = arith.constant 0 : index
    %60 = vector.load %arg5[%59, %c0_17] : memref<64x64xf32, #tpu.memory_space<vmem>>, vector<8x32xf32>
    tpu.vector_store %arg5[%59, %c0_17], %55 {strides = array<i32>} : memref<64x64xf32, #tpu.memory_space<vmem>>, vector<8x32xf32>,
    %61 = arith.index_cast %15 : i32 to index
    %c32 = arith.constant 32 : index
    %62 = vector.load %arg5[%61, %c32] : memref<64x64xf32, #tpu.memory_space<vmem>>, vector<8x32xf32>
    tpu.vector_store %arg5[%61, %c32], %58 {strides = array<i32>} : memref<64x64xf32, #tpu.memory_space<vmem>>, vector<8x32xf32>,
    %63 = tpu.concatenate %55, %58 in 1 : vector<8x32xf32>, vector<8x32xf32> -> vector<8x64xf32>
    %c1_i32 = arith.constant 1 : i32
    %c8_i32_18 = arith.constant 8 : i32
    %64 = arith.muli %c1_i32, %c8_i32_18 : i32
    %65 = tpu.assume_multiple %64, 8 : i32
    %c7_i32_19 = arith.constant 7 : i32
    %66 = arith.subi %c7_i32_19, %c1_i32 : i32
    %c8_i32_20 = arith.constant 8 : i32
    %67 = arith.muli %66, %c8_i32_20 : i32
    %68 = tpu.assume_multiple %67, 8 : i32
    %69 = arith.truncf %63 : vector<8x64xf32> to vector<8x64xbf16>
    %c0_21 = arith.constant 0 : index
    %c0_22 = arith.constant 0 : index
    %70 = vector.load %arg3[%c0_21, %c0_22] : memref<64x256xbf16, #tpu.memory_space<vmem>>, vector<64x256xbf16>
    %cst_23 = arith.constant dense<0.000000e+00> : vector<8x256xf32>
    %71 = tpu.matmul %69, %70, %cst_23 {dimension_numbers = #tpu.dot_dimension_numbers<[1], [0], [0], [1], [0, 0, 1, 1], [], []>} : vector<8x64xbf16>, vector<64x256xbf16>, vector<8x256xf32> -> vector<8x256xf32>
    %72 = arith.index_cast %65 : i32 to index
    %c0_24 = arith.constant 0 : index
    %73 = vector.load %arg6[%72, %c0_24] : memref<64x256xf32, #tpu.memory_space<vmem>>, vector<8x128xf32>
    %74 = vector.extract_strided_slice %71 {offsets = [0, 0], sizes = [8, 128], strides = [1, 1]} : vector<8x256xf32> to vector<8x128xf32>
    %75 = arith.addf %73, %74 : vector<8x128xf32>
    %76 = arith.index_cast %68 : i32 to index
    %c128_25 = arith.constant 128 : index
    %77 = vector.load %arg6[%76, %c128_25] : memref<64x256xf32, #tpu.memory_space<vmem>>, vector<8x128xf32>
    %78 = vector.extract_strided_slice %71 {offsets = [0, 128], sizes = [8, 128], strides = [1, 1]} : vector<8x256xf32> to vector<8x128xf32>
    %79 = arith.addf %77, %78 : vector<8x128xf32>
    %80 = vector.extract_strided_slice %75 {offsets = [0, 0], sizes = [8, 96], strides = [1, 1]} : vector<8x128xf32> to vector<8x96xf32>
    %81 = arith.negf %80 : vector<8x96xf32>
    %82 = math.exp %81 : vector<8x96xf32>
    %cst_26 = arith.constant 1.000000e+00 : f32
    %83 = vector.broadcast %cst_26 : f32 to vector<8x96xf32>
    %84 = arith.addf %83, %82 : vector<8x96xf32>
    %85 = arith.divf %83, %84 : vector<8x96xf32>
    %86 = vector.extract_strided_slice %79 {offsets = [0, 0], sizes = [8, 96], strides = [1, 1]} : vector<8x128xf32> to vector<8x96xf32>
    %87 = arith.negf %86 : vector<8x96xf32>
    %88 = math.exp %87 : vector<8x96xf32>
    %cst_27 = arith.constant 1.000000e+00 : f32
    %89 = vector.broadcast %cst_27 : f32 to vector<8x96xf32>
    %90 = arith.addf %89, %88 : vector<8x96xf32>
    %91 = arith.divf %89, %90 : vector<8x96xf32>
    %92 = vector.extract_strided_slice %75 {offsets = [0, 96], sizes = [8, 32], strides = [1, 1]} : vector<8x128xf32> to vector<8x32xf32>
    %93 = math.tanh %92 : vector<8x32xf32>
    %94 = vector.extract_strided_slice %79 {offsets = [0, 96], sizes = [8, 32], strides = [1, 1]} : vector<8x128xf32> to vector<8x32xf32>
    %95 = math.tanh %94 : vector<8x32xf32>
    %96 = vector.extract_strided_slice %85 {offsets = [0, 32], sizes = [8, 32], strides = [1, 1]} : vector<8x96xf32> to vector<8x32xf32>
    %97 = arith.mulf %96, %47 : vector<8x32xf32>
    %98 = vector.extract_strided_slice %85 {offsets = [0, 0], sizes = [8, 32], strides = [1, 1]} : vector<8x96xf32> to vector<8x32xf32>
    %99 = arith.mulf %98, %93 : vector<8x32xf32>
    %100 = arith.addf %97, %99 : vector<8x32xf32>
    %101 = vector.extract_strided_slice %91 {offsets = [0, 32], sizes = [8, 32], strides = [1, 1]} : vector<8x96xf32> to vector<8x32xf32>
    %102 = arith.mulf %101, %52 : vector<8x32xf32>
    %103 = vector.extract_strided_slice %91 {offsets = [0, 0], sizes = [8, 32], strides = [1, 1]} : vector<8x96xf32> to vector<8x32xf32>
    %104 = arith.mulf %103, %95 : vector<8x32xf32>
    %105 = arith.addf %102, %104 : vector<8x32xf32>
    %106 = vector.extract_strided_slice %85 {offsets = [0, 64], sizes = [8, 32], strides = [1, 1]} : vector<8x96xf32> to vector<8x32xf32>
    %107 = math.tanh %100 : vector<8x32xf32>
    %108 = arith.mulf %106, %107 : vector<8x32xf32>
    %109 = vector.extract_strided_slice %91 {offsets = [0, 64], sizes = [8, 32], strides = [1, 1]} : vector<8x96xf32> to vector<8x32xf32>
    %110 = math.tanh %105 : vector<8x32xf32>
    %111 = arith.mulf %109, %110 : vector<8x32xf32>
    %112 = arith.index_cast %65 : i32 to index
    %c0_28 = arith.constant 0 : index
    %113 = vector.load %arg5[%112, %c0_28] : memref<64x64xf32, #tpu.memory_space<vmem>>, vector<8x32xf32>
    tpu.vector_store %arg5[%112, %c0_28], %108 {strides = array<i32>} : memref<64x64xf32, #tpu.memory_space<vmem>>, vector<8x32xf32>,
    %114 = arith.index_cast %68 : i32 to index
    %c32_29 = arith.constant 32 : index
    %115 = vector.load %arg5[%114, %c32_29] : memref<64x64xf32, #tpu.memory_space<vmem>>, vector<8x32xf32>
    tpu.vector_store %arg5[%114, %c32_29], %111 {strides = array<i32>} : memref<64x64xf32, #tpu.memory_space<vmem>>, vector<8x32xf32>,
    %116 = tpu.concatenate %108, %111 in 1 : vector<8x32xf32>, vector<8x32xf32> -> vector<8x64xf32>
    %c2_i32 = arith.constant 2 : i32
    %c8_i32_30 = arith.constant 8 : i32
    %117 = arith.muli %c2_i32, %c8_i32_30 : i32
    %118 = tpu.assume_multiple %117, 8 : i32
    %c7_i32_31 = arith.constant 7 : i32
    %119 = arith.subi %c7_i32_31, %c2_i32 : i32
    %c8_i32_32 = arith.constant 8 : i32
    %120 = arith.muli %119, %c8_i32_32 : i32
    %121 = tpu.assume_multiple %120, 8 : i32
    %122 = arith.truncf %116 : vector<8x64xf32> to vector<8x64xbf16>
    %c0_33 = arith.constant 0 : index
    %c0_34 = arith.constant 0 : index
    %123 = vector.load %arg3[%c0_33, %c0_34] : memref<64x256xbf16, #tpu.memory_space<vmem>>, vector<64x256xbf16>
    %cst_35 = arith.constant dense<0.000000e+00> : vector<8x256xf32>
    %124 = tpu.matmul %122, %123, %cst_35 {dimension_numbers = #tpu.dot_dimension_numbers<[1], [0], [0], [1], [0, 0, 1, 1], [], []>} : vector<8x64xbf16>, vector<64x256xbf16>, vector<8x256xf32> -> vector<8x256xf32>
    %125 = arith.index_cast %118 : i32 to index
    %c0_36 = arith.constant 0 : index
    %126 = vector.load %arg6[%125, %c0_36] : memref<64x256xf32, #tpu.memory_space<vmem>>, vector<8x128xf32>
    %127 = vector.extract_strided_slice %124 {offsets = [0, 0], sizes = [8, 128], strides = [1, 1]} : vector<8x256xf32> to vector<8x128xf32>
    %128 = arith.addf %126, %127 : vector<8x128xf32>
    %129 = arith.index_cast %121 : i32 to index
    %c128_37 = arith.constant 128 : index
    %130 = vector.load %arg6[%129, %c128_37] : memref<64x256xf32, #tpu.memory_space<vmem>>, vector<8x128xf32>
    %131 = vector.extract_strided_slice %124 {offsets = [0, 128], sizes = [8, 128], strides = [1, 1]} : vector<8x256xf32> to vector<8x128xf32>
    %132 = arith.addf %130, %131 : vector<8x128xf32>
    %133 = vector.extract_strided_slice %128 {offsets = [0, 0], sizes = [8, 96], strides = [1, 1]} : vector<8x128xf32> to vector<8x96xf32>
    %134 = arith.negf %133 : vector<8x96xf32>
    %135 = math.exp %134 : vector<8x96xf32>
    %cst_38 = arith.constant 1.000000e+00 : f32
    %136 = vector.broadcast %cst_38 : f32 to vector<8x96xf32>
    %137 = arith.addf %136, %135 : vector<8x96xf32>
    %138 = arith.divf %136, %137 : vector<8x96xf32>
    %139 = vector.extract_strided_slice %132 {offsets = [0, 0], sizes = [8, 96], strides = [1, 1]} : vector<8x128xf32> to vector<8x96xf32>
    %140 = arith.negf %139 : vector<8x96xf32>
    %141 = math.exp %140 : vector<8x96xf32>
    %cst_39 = arith.constant 1.000000e+00 : f32
    %142 = vector.broadcast %cst_39 : f32 to vector<8x96xf32>
    %143 = arith.addf %142, %141 : vector<8x96xf32>
    %144 = arith.divf %142, %143 : vector<8x96xf32>
    %145 = vector.extract_strided_slice %128 {offsets = [0, 96], sizes = [8, 32], strides = [1, 1]} : vector<8x128xf32> to vector<8x32xf32>
    %146 = math.tanh %145 : vector<8x32xf32>
    %147 = vector.extract_strided_slice %132 {offsets = [0, 96], sizes = [8, 32], strides = [1, 1]} : vector<8x128xf32> to vector<8x32xf32>
    %148 = math.tanh %147 : vector<8x32xf32>
    %149 = vector.extract_strided_slice %138 {offsets = [0, 32], sizes = [8, 32], strides = [1, 1]} : vector<8x96xf32> to vector<8x32xf32>
    %150 = arith.mulf %149, %100 : vector<8x32xf32>
    %151 = vector.extract_strided_slice %138 {offsets = [0, 0], sizes = [8, 32], strides = [1, 1]} : vector<8x96xf32> to vector<8x32xf32>
    %152 = arith.mulf %151, %146 : vector<8x32xf32>
    %153 = arith.addf %150, %152 : vector<8x32xf32>
    %154 = vector.extract_strided_slice %144 {offsets = [0, 32], sizes = [8, 32], strides = [1, 1]} : vector<8x96xf32> to vector<8x32xf32>
    %155 = arith.mulf %154, %105 : vector<8x32xf32>
    %156 = vector.extract_strided_slice %144 {offsets = [0, 0], sizes = [8, 32], strides = [1, 1]} : vector<8x96xf32> to vector<8x32xf32>
    %157 = arith.mulf %156, %148 : vector<8x32xf32>
    %158 = arith.addf %155, %157 : vector<8x32xf32>
    %159 = vector.extract_strided_slice %138 {offsets = [0, 64], sizes = [8, 32], strides = [1, 1]} : vector<8x96xf32> to vector<8x32xf32>
    %160 = math.tanh %153 : vector<8x32xf32>
    %161 = arith.mulf %159, %160 : vector<8x32xf32>
    %162 = vector.extract_strided_slice %144 {offsets = [0, 64], sizes = [8, 32], strides = [1, 1]} : vector<8x96xf32> to vector<8x32xf32>
    %163 = math.tanh %158 : vector<8x32xf32>
    %164 = arith.mulf %162, %163 : vector<8x32xf32>
    %165 = arith.index_cast %118 : i32 to index
    %c0_40 = arith.constant 0 : index
    %166 = vector.load %arg5[%165, %c0_40] : memref<64x64xf32, #tpu.memory_space<vmem>>, vector<8x32xf32>
    tpu.vector_store %arg5[%165, %c0_40], %161 {strides = array<i32>} : memref<64x64xf32, #tpu.memory_space<vmem>>, vector<8x32xf32>,
    %167 = arith.index_cast %121 : i32 to index
    %c32_41 = arith.constant 32 : index
    %168 = vector.load %arg5[%167, %c32_41] : memref<64x64xf32, #tpu.memory_space<vmem>>, vector<8x32xf32>
    tpu.vector_store %arg5[%167, %c32_41], %164 {strides = array<i32>} : memref<64x64xf32, #tpu.memory_space<vmem>>, vector<8x32xf32>,
    %169 = tpu.concatenate %161, %164 in 1 : vector<8x32xf32>, vector<8x32xf32> -> vector<8x64xf32>
    %c3_i32 = arith.constant 3 : i32
    %c8_i32_42 = arith.constant 8 : i32
    %170 = arith.muli %c3_i32, %c8_i32_42 : i32
    %171 = tpu.assume_multiple %170, 8 : i32
    %c7_i32_43 = arith.constant 7 : i32
    %172 = arith.subi %c7_i32_43, %c3_i32 : i32
    %c8_i32_44 = arith.constant 8 : i32
    %173 = arith.muli %172, %c8_i32_44 : i32
    %174 = tpu.assume_multiple %173, 8 : i32
    %175 = arith.truncf %169 : vector<8x64xf32> to vector<8x64xbf16>
    %c0_45 = arith.constant 0 : index
    %c0_46 = arith.constant 0 : index
    %176 = vector.load %arg3[%c0_45, %c0_46] : memref<64x256xbf16, #tpu.memory_space<vmem>>, vector<64x256xbf16>
    %cst_47 = arith.constant dense<0.000000e+00> : vector<8x256xf32>
    %177 = tpu.matmul %175, %176, %cst_47 {dimension_numbers = #tpu.dot_dimension_numbers<[1], [0], [0], [1], [0, 0, 1, 1], [], []>} : vector<8x64xbf16>, vector<64x256xbf16>, vector<8x256xf32> -> vector<8x256xf32>
    %178 = arith.index_cast %171 : i32 to index
    %c0_48 = arith.constant 0 : index
    %179 = vector.load %arg6[%178, %c0_48] : memref<64x256xf32, #tpu.memory_space<vmem>>, vector<8x128xf32>
    %180 = vector.extract_strided_slice %177 {offsets = [0, 0], sizes = [8, 128], strides = [1, 1]} : vector<8x256xf32> to vector<8x128xf32>
    %181 = arith.addf %179, %180 : vector<8x128xf32>
    %182 = arith.index_cast %174 : i32 to index
    %c128_49 = arith.constant 128 : index
    %183 = vector.load %arg6[%182, %c128_49] : memref<64x256xf32, #tpu.memory_space<vmem>>, vector<8x128xf32>
    %184 = vector.extract_strided_slice %177 {offsets = [0, 128], sizes = [8, 128], strides = [1, 1]} : vector<8x256xf32> to vector<8x128xf32>
    %185 = arith.addf %183, %184 : vector<8x128xf32>
    %186 = vector.extract_strided_slice %181 {offsets = [0, 0], sizes = [8, 96], strides = [1, 1]} : vector<8x128xf32> to vector<8x96xf32>
    %187 = arith.negf %186 : vector<8x96xf32>
    %188 = math.exp %187 : vector<8x96xf32>
    %cst_50 = arith.constant 1.000000e+00 : f32
    %189 = vector.broadcast %cst_50 : f32 to vector<8x96xf32>
    %190 = arith.addf %189, %188 : vector<8x96xf32>
    %191 = arith.divf %189, %190 : vector<8x96xf32>
    %192 = vector.extract_strided_slice %185 {offsets = [0, 0], sizes = [8, 96], strides = [1, 1]} : vector<8x128xf32> to vector<8x96xf32>
    %193 = arith.negf %192 : vector<8x96xf32>
    %194 = math.exp %193 : vector<8x96xf32>
    %cst_51 = arith.constant 1.000000e+00 : f32
    %195 = vector.broadcast %cst_51 : f32 to vector<8x96xf32>
    %196 = arith.addf %195, %194 : vector<8x96xf32>
    %197 = arith.divf %195, %196 : vector<8x96xf32>
    %198 = vector.extract_strided_slice %181 {offsets = [0, 96], sizes = [8, 32], strides = [1, 1]} : vector<8x128xf32> to vector<8x32xf32>
    %199 = math.tanh %198 : vector<8x32xf32>
    %200 = vector.extract_strided_slice %185 {offsets = [0, 96], sizes = [8, 32], strides = [1, 1]} : vector<8x128xf32> to vector<8x32xf32>
    %201 = math.tanh %200 : vector<8x32xf32>
    %202 = vector.extract_strided_slice %191 {offsets = [0, 32], sizes = [8, 32], strides = [1, 1]} : vector<8x96xf32> to vector<8x32xf32>
    %203 = arith.mulf %202, %153 : vector<8x32xf32>
    %204 = vector.extract_strided_slice %191 {offsets = [0, 0], sizes = [8, 32], strides = [1, 1]} : vector<8x96xf32> to vector<8x32xf32>
    %205 = arith.mulf %204, %199 : vector<8x32xf32>
    %206 = arith.addf %203, %205 : vector<8x32xf32>
    %207 = vector.extract_strided_slice %197 {offsets = [0, 32], sizes = [8, 32], strides = [1, 1]} : vector<8x96xf32> to vector<8x32xf32>
    %208 = arith.mulf %207, %158 : vector<8x32xf32>
    %209 = vector.extract_strided_slice %197 {offsets = [0, 0], sizes = [8, 32], strides = [1, 1]} : vector<8x96xf32> to vector<8x32xf32>
    %210 = arith.mulf %209, %201 : vector<8x32xf32>
    %211 = arith.addf %208, %210 : vector<8x32xf32>
    %212 = vector.extract_strided_slice %191 {offsets = [0, 64], sizes = [8, 32], strides = [1, 1]} : vector<8x96xf32> to vector<8x32xf32>
    %213 = math.tanh %206 : vector<8x32xf32>
    %214 = arith.mulf %212, %213 : vector<8x32xf32>
    %215 = vector.extract_strided_slice %197 {offsets = [0, 64], sizes = [8, 32], strides = [1, 1]} : vector<8x96xf32> to vector<8x32xf32>
    %216 = math.tanh %211 : vector<8x32xf32>
    %217 = arith.mulf %215, %216 : vector<8x32xf32>
    %218 = arith.index_cast %171 : i32 to index
    %c0_52 = arith.constant 0 : index
    %219 = vector.load %arg5[%218, %c0_52] : memref<64x64xf32, #tpu.memory_space<vmem>>, vector<8x32xf32>
    tpu.vector_store %arg5[%218, %c0_52], %214 {strides = array<i32>} : memref<64x64xf32, #tpu.memory_space<vmem>>, vector<8x32xf32>,
    %220 = arith.index_cast %174 : i32 to index
    %c32_53 = arith.constant 32 : index
    %221 = vector.load %arg5[%220, %c32_53] : memref<64x64xf32, #tpu.memory_space<vmem>>, vector<8x32xf32>
    tpu.vector_store %arg5[%220, %c32_53], %217 {strides = array<i32>} : memref<64x64xf32, #tpu.memory_space<vmem>>, vector<8x32xf32>,
    %222 = tpu.concatenate %214, %217 in 1 : vector<8x32xf32>, vector<8x32xf32> -> vector<8x64xf32>
    %c4_i32 = arith.constant 4 : i32
    %c8_i32_54 = arith.constant 8 : i32
    %223 = arith.muli %c4_i32, %c8_i32_54 : i32
    %224 = tpu.assume_multiple %223, 8 : i32
    %c7_i32_55 = arith.constant 7 : i32
    %225 = arith.subi %c7_i32_55, %c4_i32 : i32
    %c8_i32_56 = arith.constant 8 : i32
    %226 = arith.muli %225, %c8_i32_56 : i32
    %227 = tpu.assume_multiple %226, 8 : i32
    %228 = arith.truncf %222 : vector<8x64xf32> to vector<8x64xbf16>
    %c0_57 = arith.constant 0 : index
    %c0_58 = arith.constant 0 : index
    %229 = vector.load %arg3[%c0_57, %c0_58] : memref<64x256xbf16, #tpu.memory_space<vmem>>, vector<64x256xbf16>
    %cst_59 = arith.constant dense<0.000000e+00> : vector<8x256xf32>
    %230 = tpu.matmul %228, %229, %cst_59 {dimension_numbers = #tpu.dot_dimension_numbers<[1], [0], [0], [1], [0, 0, 1, 1], [], []>} : vector<8x64xbf16>, vector<64x256xbf16>, vector<8x256xf32> -> vector<8x256xf32>
    %231 = arith.index_cast %224 : i32 to index
    %c0_60 = arith.constant 0 : index
    %232 = vector.load %arg6[%231, %c0_60] : memref<64x256xf32, #tpu.memory_space<vmem>>, vector<8x128xf32>
    %233 = vector.extract_strided_slice %230 {offsets = [0, 0], sizes = [8, 128], strides = [1, 1]} : vector<8x256xf32> to vector<8x128xf32>
    %234 = arith.addf %232, %233 : vector<8x128xf32>
    %235 = arith.index_cast %227 : i32 to index
    %c128_61 = arith.constant 128 : index
    %236 = vector.load %arg6[%235, %c128_61] : memref<64x256xf32, #tpu.memory_space<vmem>>, vector<8x128xf32>
    %237 = vector.extract_strided_slice %230 {offsets = [0, 128], sizes = [8, 128], strides = [1, 1]} : vector<8x256xf32> to vector<8x128xf32>
    %238 = arith.addf %236, %237 : vector<8x128xf32>
    %239 = vector.extract_strided_slice %234 {offsets = [0, 0], sizes = [8, 96], strides = [1, 1]} : vector<8x128xf32> to vector<8x96xf32>
    %240 = arith.negf %239 : vector<8x96xf32>
    %241 = math.exp %240 : vector<8x96xf32>
    %cst_62 = arith.constant 1.000000e+00 : f32
    %242 = vector.broadcast %cst_62 : f32 to vector<8x96xf32>
    %243 = arith.addf %242, %241 : vector<8x96xf32>
    %244 = arith.divf %242, %243 : vector<8x96xf32>
    %245 = vector.extract_strided_slice %238 {offsets = [0, 0], sizes = [8, 96], strides = [1, 1]} : vector<8x128xf32> to vector<8x96xf32>
    %246 = arith.negf %245 : vector<8x96xf32>
    %247 = math.exp %246 : vector<8x96xf32>
    %cst_63 = arith.constant 1.000000e+00 : f32
    %248 = vector.broadcast %cst_63 : f32 to vector<8x96xf32>
    %249 = arith.addf %248, %247 : vector<8x96xf32>
    %250 = arith.divf %248, %249 : vector<8x96xf32>
    %251 = vector.extract_strided_slice %234 {offsets = [0, 96], sizes = [8, 32], strides = [1, 1]} : vector<8x128xf32> to vector<8x32xf32>
    %252 = math.tanh %251 : vector<8x32xf32>
    %253 = vector.extract_strided_slice %238 {offsets = [0, 96], sizes = [8, 32], strides = [1, 1]} : vector<8x128xf32> to vector<8x32xf32>
    %254 = math.tanh %253 : vector<8x32xf32>
    %255 = vector.extract_strided_slice %244 {offsets = [0, 32], sizes = [8, 32], strides = [1, 1]} : vector<8x96xf32> to vector<8x32xf32>
    %256 = arith.mulf %255, %206 : vector<8x32xf32>
    %257 = vector.extract_strided_slice %244 {offsets = [0, 0], sizes = [8, 32], strides = [1, 1]} : vector<8x96xf32> to vector<8x32xf32>
    %258 = arith.mulf %257, %252 : vector<8x32xf32>
    %259 = arith.addf %256, %258 : vector<8x32xf32>
    %260 = vector.extract_strided_slice %250 {offsets = [0, 32], sizes = [8, 32], strides = [1, 1]} : vector<8x96xf32> to vector<8x32xf32>
    %261 = arith.mulf %260, %211 : vector<8x32xf32>
    %262 = vector.extract_strided_slice %250 {offsets = [0, 0], sizes = [8, 32], strides = [1, 1]} : vector<8x96xf32> to vector<8x32xf32>
    %263 = arith.mulf %262, %254 : vector<8x32xf32>
    %264 = arith.addf %261, %263 : vector<8x32xf32>
    %265 = vector.extract_strided_slice %244 {offsets = [0, 64], sizes = [8, 32], strides = [1, 1]} : vector<8x96xf32> to vector<8x32xf32>
    %266 = math.tanh %259 : vector<8x32xf32>
    %267 = arith.mulf %265, %266 : vector<8x32xf32>
    %268 = vector.extract_strided_slice %250 {offsets = [0, 64], sizes = [8, 32], strides = [1, 1]} : vector<8x96xf32> to vector<8x32xf32>
    %269 = math.tanh %264 : vector<8x32xf32>
    %270 = arith.mulf %268, %269 : vector<8x32xf32>
    %271 = arith.index_cast %224 : i32 to index
    %c0_64 = arith.constant 0 : index
    %272 = vector.load %arg5[%271, %c0_64] : memref<64x64xf32, #tpu.memory_space<vmem>>, vector<8x32xf32>
    tpu.vector_store %arg5[%271, %c0_64], %267 {strides = array<i32>} : memref<64x64xf32, #tpu.memory_space<vmem>>, vector<8x32xf32>,
    %273 = arith.index_cast %227 : i32 to index
    %c32_65 = arith.constant 32 : index
    %274 = vector.load %arg5[%273, %c32_65] : memref<64x64xf32, #tpu.memory_space<vmem>>, vector<8x32xf32>
    tpu.vector_store %arg5[%273, %c32_65], %270 {strides = array<i32>} : memref<64x64xf32, #tpu.memory_space<vmem>>, vector<8x32xf32>,
    %275 = tpu.concatenate %267, %270 in 1 : vector<8x32xf32>, vector<8x32xf32> -> vector<8x64xf32>
    %c5_i32 = arith.constant 5 : i32
    %c8_i32_66 = arith.constant 8 : i32
    %276 = arith.muli %c5_i32, %c8_i32_66 : i32
    %277 = tpu.assume_multiple %276, 8 : i32
    %c7_i32_67 = arith.constant 7 : i32
    %278 = arith.subi %c7_i32_67, %c5_i32 : i32
    %c8_i32_68 = arith.constant 8 : i32
    %279 = arith.muli %278, %c8_i32_68 : i32
    %280 = tpu.assume_multiple %279, 8 : i32
    %281 = arith.truncf %275 : vector<8x64xf32> to vector<8x64xbf16>
    %c0_69 = arith.constant 0 : index
    %c0_70 = arith.constant 0 : index
    %282 = vector.load %arg3[%c0_69, %c0_70] : memref<64x256xbf16, #tpu.memory_space<vmem>>, vector<64x256xbf16>
    %cst_71 = arith.constant dense<0.000000e+00> : vector<8x256xf32>
    %283 = tpu.matmul %281, %282, %cst_71 {dimension_numbers = #tpu.dot_dimension_numbers<[1], [0], [0], [1], [0, 0, 1, 1], [], []>} : vector<8x64xbf16>, vector<64x256xbf16>, vector<8x256xf32> -> vector<8x256xf32>
    %284 = arith.index_cast %277 : i32 to index
    %c0_72 = arith.constant 0 : index
    %285 = vector.load %arg6[%284, %c0_72] : memref<64x256xf32, #tpu.memory_space<vmem>>, vector<8x128xf32>
    %286 = vector.extract_strided_slice %283 {offsets = [0, 0], sizes = [8, 128], strides = [1, 1]} : vector<8x256xf32> to vector<8x128xf32>
    %287 = arith.addf %285, %286 : vector<8x128xf32>
    %288 = arith.index_cast %280 : i32 to index
    %c128_73 = arith.constant 128 : index
    %289 = vector.load %arg6[%288, %c128_73] : memref<64x256xf32, #tpu.memory_space<vmem>>, vector<8x128xf32>
    %290 = vector.extract_strided_slice %283 {offsets = [0, 128], sizes = [8, 128], strides = [1, 1]} : vector<8x256xf32> to vector<8x128xf32>
    %291 = arith.addf %289, %290 : vector<8x128xf32>
    %292 = vector.extract_strided_slice %287 {offsets = [0, 0], sizes = [8, 96], strides = [1, 1]} : vector<8x128xf32> to vector<8x96xf32>
    %293 = arith.negf %292 : vector<8x96xf32>
    %294 = math.exp %293 : vector<8x96xf32>
    %cst_74 = arith.constant 1.000000e+00 : f32
    %295 = vector.broadcast %cst_74 : f32 to vector<8x96xf32>
    %296 = arith.addf %295, %294 : vector<8x96xf32>
    %297 = arith.divf %295, %296 : vector<8x96xf32>
    %298 = vector.extract_strided_slice %291 {offsets = [0, 0], sizes = [8, 96], strides = [1, 1]} : vector<8x128xf32> to vector<8x96xf32>
    %299 = arith.negf %298 : vector<8x96xf32>
    %300 = math.exp %299 : vector<8x96xf32>
    %cst_75 = arith.constant 1.000000e+00 : f32
    %301 = vector.broadcast %cst_75 : f32 to vector<8x96xf32>
    %302 = arith.addf %301, %300 : vector<8x96xf32>
    %303 = arith.divf %301, %302 : vector<8x96xf32>
    %304 = vector.extract_strided_slice %287 {offsets = [0, 96], sizes = [8, 32], strides = [1, 1]} : vector<8x128xf32> to vector<8x32xf32>
    %305 = math.tanh %304 : vector<8x32xf32>
    %306 = vector.extract_strided_slice %291 {offsets = [0, 96], sizes = [8, 32], strides = [1, 1]} : vector<8x128xf32> to vector<8x32xf32>
    %307 = math.tanh %306 : vector<8x32xf32>
    %308 = vector.extract_strided_slice %297 {offsets = [0, 32], sizes = [8, 32], strides = [1, 1]} : vector<8x96xf32> to vector<8x32xf32>
    %309 = arith.mulf %308, %259 : vector<8x32xf32>
    %310 = vector.extract_strided_slice %297 {offsets = [0, 0], sizes = [8, 32], strides = [1, 1]} : vector<8x96xf32> to vector<8x32xf32>
    %311 = arith.mulf %310, %305 : vector<8x32xf32>
    %312 = arith.addf %309, %311 : vector<8x32xf32>
    %313 = vector.extract_strided_slice %303 {offsets = [0, 32], sizes = [8, 32], strides = [1, 1]} : vector<8x96xf32> to vector<8x32xf32>
    %314 = arith.mulf %313, %264 : vector<8x32xf32>
    %315 = vector.extract_strided_slice %303 {offsets = [0, 0], sizes = [8, 32], strides = [1, 1]} : vector<8x96xf32> to vector<8x32xf32>
    %316 = arith.mulf %315, %307 : vector<8x32xf32>
    %317 = arith.addf %314, %316 : vector<8x32xf32>
    %318 = vector.extract_strided_slice %297 {offsets = [0, 64], sizes = [8, 32], strides = [1, 1]} : vector<8x96xf32> to vector<8x32xf32>
    %319 = math.tanh %312 : vector<8x32xf32>
    %320 = arith.mulf %318, %319 : vector<8x32xf32>
    %321 = vector.extract_strided_slice %303 {offsets = [0, 64], sizes = [8, 32], strides = [1, 1]} : vector<8x96xf32> to vector<8x32xf32>
    %322 = math.tanh %317 : vector<8x32xf32>
    %323 = arith.mulf %321, %322 : vector<8x32xf32>
    %324 = arith.index_cast %277 : i32 to index
    %c0_76 = arith.constant 0 : index
    %325 = vector.load %arg5[%324, %c0_76] : memref<64x64xf32, #tpu.memory_space<vmem>>, vector<8x32xf32>
    tpu.vector_store %arg5[%324, %c0_76], %320 {strides = array<i32>} : memref<64x64xf32, #tpu.memory_space<vmem>>, vector<8x32xf32>,
    %326 = arith.index_cast %280 : i32 to index
    %c32_77 = arith.constant 32 : index
    %327 = vector.load %arg5[%326, %c32_77] : memref<64x64xf32, #tpu.memory_space<vmem>>, vector<8x32xf32>
    tpu.vector_store %arg5[%326, %c32_77], %323 {strides = array<i32>} : memref<64x64xf32, #tpu.memory_space<vmem>>, vector<8x32xf32>,
    %328 = tpu.concatenate %320, %323 in 1 : vector<8x32xf32>, vector<8x32xf32> -> vector<8x64xf32>
    %c6_i32 = arith.constant 6 : i32
    %c8_i32_78 = arith.constant 8 : i32
    %329 = arith.muli %c6_i32, %c8_i32_78 : i32
    %330 = tpu.assume_multiple %329, 8 : i32
    %c7_i32_79 = arith.constant 7 : i32
    %331 = arith.subi %c7_i32_79, %c6_i32 : i32
    %c8_i32_80 = arith.constant 8 : i32
    %332 = arith.muli %331, %c8_i32_80 : i32
    %333 = tpu.assume_multiple %332, 8 : i32
    %334 = arith.truncf %328 : vector<8x64xf32> to vector<8x64xbf16>
    %c0_81 = arith.constant 0 : index
    %c0_82 = arith.constant 0 : index
    %335 = vector.load %arg3[%c0_81, %c0_82] : memref<64x256xbf16, #tpu.memory_space<vmem>>, vector<64x256xbf16>
    %cst_83 = arith.constant dense<0.000000e+00> : vector<8x256xf32>
    %336 = tpu.matmul %334, %335, %cst_83 {dimension_numbers = #tpu.dot_dimension_numbers<[1], [0], [0], [1], [0, 0, 1, 1], [], []>} : vector<8x64xbf16>, vector<64x256xbf16>, vector<8x256xf32> -> vector<8x256xf32>
    %337 = arith.index_cast %330 : i32 to index
    %c0_84 = arith.constant 0 : index
    %338 = vector.load %arg6[%337, %c0_84] : memref<64x256xf32, #tpu.memory_space<vmem>>, vector<8x128xf32>
    %339 = vector.extract_strided_slice %336 {offsets = [0, 0], sizes = [8, 128], strides = [1, 1]} : vector<8x256xf32> to vector<8x128xf32>
    %340 = arith.addf %338, %339 : vector<8x128xf32>
    %341 = arith.index_cast %333 : i32 to index
    %c128_85 = arith.constant 128 : index
    %342 = vector.load %arg6[%341, %c128_85] : memref<64x256xf32, #tpu.memory_space<vmem>>, vector<8x128xf32>
    %343 = vector.extract_strided_slice %336 {offsets = [0, 128], sizes = [8, 128], strides = [1, 1]} : vector<8x256xf32> to vector<8x128xf32>
    %344 = arith.addf %342, %343 : vector<8x128xf32>
    %345 = vector.extract_strided_slice %340 {offsets = [0, 0], sizes = [8, 96], strides = [1, 1]} : vector<8x128xf32> to vector<8x96xf32>
    %346 = arith.negf %345 : vector<8x96xf32>
    %347 = math.exp %346 : vector<8x96xf32>
    %cst_86 = arith.constant 1.000000e+00 : f32
    %348 = vector.broadcast %cst_86 : f32 to vector<8x96xf32>
    %349 = arith.addf %348, %347 : vector<8x96xf32>
    %350 = arith.divf %348, %349 : vector<8x96xf32>
    %351 = vector.extract_strided_slice %344 {offsets = [0, 0], sizes = [8, 96], strides = [1, 1]} : vector<8x128xf32> to vector<8x96xf32>
    %352 = arith.negf %351 : vector<8x96xf32>
    %353 = math.exp %352 : vector<8x96xf32>
    %cst_87 = arith.constant 1.000000e+00 : f32
    %354 = vector.broadcast %cst_87 : f32 to vector<8x96xf32>
    %355 = arith.addf %354, %353 : vector<8x96xf32>
    %356 = arith.divf %354, %355 : vector<8x96xf32>
    %357 = vector.extract_strided_slice %340 {offsets = [0, 96], sizes = [8, 32], strides = [1, 1]} : vector<8x128xf32> to vector<8x32xf32>
    %358 = math.tanh %357 : vector<8x32xf32>
    %359 = vector.extract_strided_slice %344 {offsets = [0, 96], sizes = [8, 32], strides = [1, 1]} : vector<8x128xf32> to vector<8x32xf32>
    %360 = math.tanh %359 : vector<8x32xf32>
    %361 = vector.extract_strided_slice %350 {offsets = [0, 32], sizes = [8, 32], strides = [1, 1]} : vector<8x96xf32> to vector<8x32xf32>
    %362 = arith.mulf %361, %312 : vector<8x32xf32>
    %363 = vector.extract_strided_slice %350 {offsets = [0, 0], sizes = [8, 32], strides = [1, 1]} : vector<8x96xf32> to vector<8x32xf32>
    %364 = arith.mulf %363, %358 : vector<8x32xf32>
    %365 = arith.addf %362, %364 : vector<8x32xf32>
    %366 = vector.extract_strided_slice %356 {offsets = [0, 32], sizes = [8, 32], strides = [1, 1]} : vector<8x96xf32> to vector<8x32xf32>
    %367 = arith.mulf %366, %317 : vector<8x32xf32>
    %368 = vector.extract_strided_slice %356 {offsets = [0, 0], sizes = [8, 32], strides = [1, 1]} : vector<8x96xf32> to vector<8x32xf32>
    %369 = arith.mulf %368, %360 : vector<8x32xf32>
    %370 = arith.addf %367, %369 : vector<8x32xf32>
    %371 = vector.extract_strided_slice %350 {offsets = [0, 64], sizes = [8, 32], strides = [1, 1]} : vector<8x96xf32> to vector<8x32xf32>
    %372 = math.tanh %365 : vector<8x32xf32>
    %373 = arith.mulf %371, %372 : vector<8x32xf32>
    %374 = vector.extract_strided_slice %356 {offsets = [0, 64], sizes = [8, 32], strides = [1, 1]} : vector<8x96xf32> to vector<8x32xf32>
    %375 = math.tanh %370 : vector<8x32xf32>
    %376 = arith.mulf %374, %375 : vector<8x32xf32>
    %377 = arith.index_cast %330 : i32 to index
    %c0_88 = arith.constant 0 : index
    %378 = vector.load %arg5[%377, %c0_88] : memref<64x64xf32, #tpu.memory_space<vmem>>, vector<8x32xf32>
    tpu.vector_store %arg5[%377, %c0_88], %373 {strides = array<i32>} : memref<64x64xf32, #tpu.memory_space<vmem>>, vector<8x32xf32>,
    %379 = arith.index_cast %333 : i32 to index
    %c32_89 = arith.constant 32 : index
    %380 = vector.load %arg5[%379, %c32_89] : memref<64x64xf32, #tpu.memory_space<vmem>>, vector<8x32xf32>
    tpu.vector_store %arg5[%379, %c32_89], %376 {strides = array<i32>} : memref<64x64xf32, #tpu.memory_space<vmem>>, vector<8x32xf32>,
    %381 = tpu.concatenate %373, %376 in 1 : vector<8x32xf32>, vector<8x32xf32> -> vector<8x64xf32>
    %c7_i32_90 = arith.constant 7 : i32
    %c8_i32_91 = arith.constant 8 : i32
    %382 = arith.muli %c7_i32_90, %c8_i32_91 : i32
    %383 = tpu.assume_multiple %382, 8 : i32
    %c7_i32_92 = arith.constant 7 : i32
    %384 = arith.subi %c7_i32_92, %c7_i32_90 : i32
    %c8_i32_93 = arith.constant 8 : i32
    %385 = arith.muli %384, %c8_i32_93 : i32
    %386 = tpu.assume_multiple %385, 8 : i32
    %387 = arith.truncf %381 : vector<8x64xf32> to vector<8x64xbf16>
    %c0_94 = arith.constant 0 : index
    %c0_95 = arith.constant 0 : index
    %388 = vector.load %arg3[%c0_94, %c0_95] : memref<64x256xbf16, #tpu.memory_space<vmem>>, vector<64x256xbf16>
    %cst_96 = arith.constant dense<0.000000e+00> : vector<8x256xf32>
    %389 = tpu.matmul %387, %388, %cst_96 {dimension_numbers = #tpu.dot_dimension_numbers<[1], [0], [0], [1], [0, 0, 1, 1], [], []>} : vector<8x64xbf16>, vector<64x256xbf16>, vector<8x256xf32> -> vector<8x256xf32>
    %390 = arith.index_cast %383 : i32 to index
    %c0_97 = arith.constant 0 : index
    %391 = vector.load %arg6[%390, %c0_97] : memref<64x256xf32, #tpu.memory_space<vmem>>, vector<8x128xf32>
    %392 = vector.extract_strided_slice %389 {offsets = [0, 0], sizes = [8, 128], strides = [1, 1]} : vector<8x256xf32> to vector<8x128xf32>
    %393 = arith.addf %391, %392 : vector<8x128xf32>
    %394 = arith.index_cast %386 : i32 to index
    %c128_98 = arith.constant 128 : index
    %395 = vector.load %arg6[%394, %c128_98] : memref<64x256xf32, #tpu.memory_space<vmem>>, vector<8x128xf32>
    %396 = vector.extract_strided_slice %389 {offsets = [0, 128], sizes = [8, 128], strides = [1, 1]} : vector<8x256xf32> to vector<8x128xf32>
    %397 = arith.addf %395, %396 : vector<8x128xf32>
    %398 = vector.extract_strided_slice %393 {offsets = [0, 0], sizes = [8, 96], strides = [1, 1]} : vector<8x128xf32> to vector<8x96xf32>
    %399 = arith.negf %398 : vector<8x96xf32>
    %400 = math.exp %399 : vector<8x96xf32>
    %cst_99 = arith.constant 1.000000e+00 : f32
    %401 = vector.broadcast %cst_99 : f32 to vector<8x96xf32>
    %402 = arith.addf %401, %400 : vector<8x96xf32>
    %403 = arith.divf %401, %402 : vector<8x96xf32>
    %404 = vector.extract_strided_slice %397 {offsets = [0, 0], sizes = [8, 96], strides = [1, 1]} : vector<8x128xf32> to vector<8x96xf32>
    %405 = arith.negf %404 : vector<8x96xf32>
    %406 = math.exp %405 : vector<8x96xf32>
    %cst_100 = arith.constant 1.000000e+00 : f32
    %407 = vector.broadcast %cst_100 : f32 to vector<8x96xf32>
    %408 = arith.addf %407, %406 : vector<8x96xf32>
    %409 = arith.divf %407, %408 : vector<8x96xf32>
    %410 = vector.extract_strided_slice %393 {offsets = [0, 96], sizes = [8, 32], strides = [1, 1]} : vector<8x128xf32> to vector<8x32xf32>
    %411 = math.tanh %410 : vector<8x32xf32>
    %412 = vector.extract_strided_slice %397 {offsets = [0, 96], sizes = [8, 32], strides = [1, 1]} : vector<8x128xf32> to vector<8x32xf32>
    %413 = math.tanh %412 : vector<8x32xf32>
    %414 = vector.extract_strided_slice %403 {offsets = [0, 32], sizes = [8, 32], strides = [1, 1]} : vector<8x96xf32> to vector<8x32xf32>
    %415 = arith.mulf %414, %365 : vector<8x32xf32>
    %416 = vector.extract_strided_slice %403 {offsets = [0, 0], sizes = [8, 32], strides = [1, 1]} : vector<8x96xf32> to vector<8x32xf32>
    %417 = arith.mulf %416, %411 : vector<8x32xf32>
    %418 = arith.addf %415, %417 : vector<8x32xf32>
    %419 = vector.extract_strided_slice %409 {offsets = [0, 32], sizes = [8, 32], strides = [1, 1]} : vector<8x96xf32> to vector<8x32xf32>
    %420 = arith.mulf %419, %370 : vector<8x32xf32>
    %421 = vector.extract_strided_slice %409 {offsets = [0, 0], sizes = [8, 32], strides = [1, 1]} : vector<8x96xf32> to vector<8x32xf32>
    %422 = arith.mulf %421, %413 : vector<8x32xf32>
    %423 = arith.addf %420, %422 : vector<8x32xf32>
    %424 = vector.extract_strided_slice %403 {offsets = [0, 64], sizes = [8, 32], strides = [1, 1]} : vector<8x96xf32> to vector<8x32xf32>
    %425 = math.tanh %418 : vector<8x32xf32>
    %426 = arith.mulf %424, %425 : vector<8x32xf32>
    %427 = vector.extract_strided_slice %409 {offsets = [0, 64], sizes = [8, 32], strides = [1, 1]} : vector<8x96xf32> to vector<8x32xf32>
    %428 = math.tanh %423 : vector<8x32xf32>
    %429 = arith.mulf %427, %428 : vector<8x32xf32>
    %430 = arith.index_cast %383 : i32 to index
    %c0_101 = arith.constant 0 : index
    %431 = vector.load %arg5[%430, %c0_101] : memref<64x64xf32, #tpu.memory_space<vmem>>, vector<8x32xf32>
    tpu.vector_store %arg5[%430, %c0_101], %426 {strides = array<i32>} : memref<64x64xf32, #tpu.memory_space<vmem>>, vector<8x32xf32>,
    %432 = arith.index_cast %386 : i32 to index
    %c32_102 = arith.constant 32 : index
    %433 = vector.load %arg5[%432, %c32_102] : memref<64x64xf32, #tpu.memory_space<vmem>>, vector<8x32xf32>
    tpu.vector_store %arg5[%432, %c32_102], %429 {strides = array<i32>} : memref<64x64xf32, #tpu.memory_space<vmem>>, vector<8x32xf32>,
    %434 = tpu.concatenate %426, %429 in 1 : vector<8x32xf32>, vector<8x32xf32> -> vector<8x64xf32>
    %c8_i32_103 = arith.constant 8 : i32
    return
  }
  func.func @transform_0(%arg0: i32) -> (i32, i32) {
    %c0_i32 = arith.constant 0 : i32
    %c0_i32_0 = arith.constant 0 : i32
    %c0_i32_1 = arith.constant 0 : i32
    return %c0_i32, %c0_i32_0 : i32, i32
  }
  func.func @transform_1(%arg0: i32) -> (i32, i32) {
    %c0_i32 = arith.constant 0 : i32
    %c0_i32_0 = arith.constant 0 : i32
    %c0_i32_1 = arith.constant 0 : i32
    return %c0_i32, %c0_i32_0 : i32, i32
  }
  func.func @transform_2(%arg0: i32) -> (i32, i32) {
    %c0_i32 = arith.constant 0 : i32
    %c0_i32_0 = arith.constant 0 : i32
    %c0_i32_1 = arith.constant 0 : i32
    return %c0_i32, %c0_i32_0 : i32, i32
  }
  func.func @transform_3(%arg0: i32) -> (i32, i32) {
    %c0_i32 = arith.constant 0 : i32
    %c0_i32_0 = arith.constant 0 : i32
    %c0_i32_1 = arith.constant 0 : i32
    return %c0_i32, %c0_i32_0 : i32, i32
  }
  func.func @transform_4(%arg0: i32) -> (i32, i32) {
    %c0_i32 = arith.constant 0 : i32
    %c0_i32_0 = arith.constant 0 : i32
    %c0_i32_1 = arith.constant 0 : i32
    return %c0_i32, %c0_i32_0 : i32, i32
  }
}

</mosaic_0001>

<llo_original>
// kernel: bilstm_forward.3
$region0: #{bilstm_forward.3}
  #allocation0 [shape = 'u32[]', space=smem, size = 0x4, offset = 0x4, fixed_abs, tag = 'smem constant byte address 0x4 - core index']
  #allocation1 [shape = 'u32[72,128]{1,0:T(1,128)}', space=vmem, size = 0x9000, scoped, tag = 'internal scratch']
  #allocation2 [shape = 'f32[64,256]{1,0:T(8,128)}', space=vmem, size = 0x10000, scoped, tag = 'scratch operand']
  %s0 = inlined_call_operand.vmem [shape: f32[64,64], index: 0, kind: input, shape index: {}]
  %s1 = inlined_call_operand.hbm [shape: bf16[64,256], index: 1, kind: input, shape index: {}]
  %s2 = inlined_call_operand.hbm [shape: bf16[64,256], index: 2, kind: input, shape index: {}]
  %s3 = inlined_call_operand.vmem [shape: f32[1,256], index: 3, kind: input, shape index: {}]
  %s4 = inlined_call_operand.vmem [shape: f32[64,64], index: 4, kind: output, shape index: {}]
  %s5 = sld [smem:[#allocation0]]
  $region34: #{bilstm_forward.3} parent=0
    _
  %s7 = ssub.s32 1, %s5
  %s8 = scalar_select 0, %s7, %s5
  $region1: #{bilstm_forward.3} parent=0
    #allocation3 [shape = 'u8[32768]{0}', space=vmem, size = 0x8000, scoped, tag = 'input window, operand 1, single buffered']
    #allocation4 [shape = 's32[1]{0}', space=sflag, size = 0x4, scoped, tag = 'scoped memory for bilstm_forward.3']
    #allocation5 [shape = 'u8[32768]{0}', space=vmem, size = 0x8000, scoped, tag = 'input window, operand 2, single buffered']
    #allocation6 [shape = 's32[1]{0}', space=sflag, size = 0x4, scoped, tag = 'scoped memory for bilstm_forward.3']
    %9 = vsyncpa [#allocation4], 0
    %10 = vsyncpa [#allocation6], 0
    // Predicated region
    $region2: #{bilstm_forward.3} parent=1 // pred_check
      _
    $region3: #{bilstm_forward.3} parent=1 // pred_check_branch
      %12 = sbr.rel (0) target = $region5
    $region4: #{bilstm_forward.3} parent=1 // pred_region
      _
    $region5: #{bilstm_forward.3} parent=1 // pred_fallthru
      _
    // Predicated region
    $region6: #{bilstm_forward.3} parent=1 // pred_check
      _
    $region7: #{bilstm_forward.3} parent=1 // pred_check_branch
      %14 = sbr.rel (0) target = $region9
    $region8: #{bilstm_forward.3} parent=1 // pred_region
      %16 = vsyncadd [#allocation4], 0
      %s17 = sshll.u32 %s1, 4
      %s18 = int_to_ptr.hbm [resolvable:$true] %s17
      %s19 = sshll.u32 [#allocation3], 4
      %s20 = int_to_ptr.vmem [resolvable:$true] %s19
      %25 = dma.hbm_to_vmem [thread:$0]  %s18, 1024, %s20, [#allocation4], 128, 128, 8
    $region9: #{bilstm_forward.3} parent=1 // pred_fallthru
      _
    // Predicated region
    $region10: #{bilstm_forward.3} parent=1 // pred_check
      _
    $region11: #{bilstm_forward.3} parent=1 // pred_check_branch
      %27 = sbr.rel (0) target = $region13
    $region12: #{bilstm_forward.3} parent=1 // pred_region
      %29 = vsyncadd [#allocation6], 0
      %s30 = sshll.u32 %s2, 4
      %s31 = int_to_ptr.hbm [resolvable:$true] %s30
      %s32 = sshll.u32 [#allocation5], 4
      %s33 = int_to_ptr.vmem [resolvable:$true] %s32
      %38 = dma.hbm_to_vmem [thread:$0]  %s31, 1024, %s33, [#allocation6], 128, 128, 8
    $region13: #{bilstm_forward.3} parent=1 // pred_fallthru
      _
    // Predicated region
    $region14: #{bilstm_forward.3} parent=1 // pred_check
      _
    $region15: #{bilstm_forward.3} parent=1 // pred_check_branch
      %40 = sbr.rel (0) target = $region17
    $region16: #{bilstm_forward.3} parent=1 // pred_region
      _
    $region17: #{bilstm_forward.3} parent=1 // pred_fallthru
      _
    // Predicated region
    $region18: #{bilstm_forward.3} parent=1 // pred_check
      _
    $region19: #{bilstm_forward.3} parent=1 // pred_check_branch
      %42 = sbr.rel (0) target = $region21
    $region20: #{bilstm_forward.3} parent=1 // pred_region
      %44 = dma.done [#allocation4], 1024
    $region21: #{bilstm_forward.3} parent=1 // pred_fallthru
      _
    // Predicated region
    $region22: #{bilstm_forward.3} parent=1 // pred_check
      _
    $region23: #{bilstm_forward.3} parent=1 // pred_check_branch
      %46 = sbr.rel (0) target = $region25
    $region24: #{bilstm_forward.3} parent=1 // pred_region
      %48 = dma.done [#allocation6], 1024
    $region25: #{bilstm_forward.3} parent=1 // pred_fallthru
      _
    %v50 = vld [vmem:[%s0] sm:$0xff]
    %v51 = vld [vmem:[%s0 + $0x8] sm:$0xff]
    %v52 = vld [vmem:[%s0 + $0x10] sm:$0xff]
    %v53 = vld [vmem:[%s0 + $0x18] sm:$0xff]
    %v54 = vld [vmem:[%s0 + $0x20] sm:$0xff]
    %v55 = vld [vmem:[%s0 + $0x28] sm:$0xff]
    %v56 = vld [vmem:[%s0 + $0x30] sm:$0xff]
    %v57 = vld [vmem:[%s0 + $0x38] sm:$0xff]
    %v58 = vpack.c.bf16 %v51, %v50
    %v59 = vpack.c.bf16 %v53, %v52
    %v60 = vpack.c.bf16 %v55, %v54
    %v61 = vpack.c.bf16 %v57, %v56
    %v62 = vld [vmem:[#allocation3] sm:$0xff]
    %v63 = vld [vmem:[#allocation3 + $0x8] sm:$0xff]
    %v64 = vld [vmem:[#allocation3 + $0x10] sm:$0xff]
    %v65 = vld [vmem:[#allocation3 + $0x18] sm:$0xff]
    %v66 = vld [vmem:[#allocation3 + $0x20] sm:$0xff]
    %v67 = vld [vmem:[#allocation3 + $0x28] sm:$0xff]
    %v68 = vld [vmem:[#allocation3 + $0x30] sm:$0xff]
    %v69 = vld [vmem:[#allocation3 + $0x38] sm:$0xff]
    %v70 = vld [vmem:[%s3] sm:$0x3]
    %v72 = vperm.slane %v70, 0
    %v73 = vperm.slane %v70, 1
    %v84 = vunpack.c.l.b16 %v62
    %v85 = vunpack.c.h.b16 %v62
    %v86 = vunpack.c.l.b16 %v63
    %v87 = vunpack.c.h.b16 %v63
    %v88 = vunpack.c.l.b16 %v64
    %v89 = vunpack.c.h.b16 %v64
    %v90 = vunpack.c.l.b16 %v65
    %v91 = vunpack.c.h.b16 %v65
    %v92 = vunpack.c.l.b16 %v66
    %v93 = vunpack.c.h.b16 %v66
    %v94 = vunpack.c.l.b16 %v67
    %v95 = vunpack.c.h.b16 %v67
    %v96 = vunpack.c.l.b16 %v68
    %v97 = vunpack.c.h.b16 %v68
    %v98 = vunpack.c.l.b16 %v69
    %v99 = vunpack.c.h.b16 %v69
    %v100 = vpack.c.b16 %v86, %v84
    %v101 = vpack.c.b16 %v87, %v85
    %v102 = vpack.c.b16 %v90, %v88
    %v103 = vpack.c.b16 %v91, %v89
    %v104 = vpack.c.b16 %v94, %v92
    %v105 = vpack.c.b16 %v95, %v93
    %v106 = vpack.c.b16 %v98, %v96
    %v107 = vpack.c.b16 %v99, %v97
    %vm116 = vcmask 523264
    %v118 = vsel %vm116, %v58, 0
    %v121 = vsel %vm116, %v59, 0
    %v124 = vsel %vm116, %v60, 0
    %v127 = vsel %vm116, %v61, 0
    %129 = vmatpush.bf16.msra.mxu0 0
    %130 = vmatpush.bf16.msra.mxu0 0
    %131 = vmatpush.bf16.msra.mxu0 0
    %132 = vmatpush.bf16.msra.mxu0 0
    %133 = vmatpush.bf16.msra.mxu0 %v106
    %134 = vmatpush.bf16.msra.mxu0 %v104
    %135 = vmatpush.bf16.msra.mxu0 %v102
    %136 = vmatpush.bf16.msra.mxu0 %v100
    %137 = vmatmul.bf16.gmra.mxu0 %v118
    %v138 = vpop.f32.mrf.mxu0
    %v139 = vadd.f32 %v72, %v138
    %v140 = vpop.f32.mrf.mxu0
    %v141 = vadd.f32 %v72, %v140
    %142 = vmatmul.bf16.gmra.mxu0 %v121
    %v143 = vpop.f32.mrf.mxu0
    %v144 = vadd.f32 %v72, %v143
    %v145 = vpop.f32.mrf.mxu0
    %v146 = vadd.f32 %v72, %v145
    %147 = vmatmul.bf16.gmra.mxu0 %v124
    %v148 = vpop.f32.mrf.mxu0
    %v149 = vadd.f32 %v72, %v148
    %v150 = vpop.f32.mrf.mxu0
    %v151 = vadd.f32 %v72, %v150
    %152 = vmatmul.bf16.gmra.mxu0 %v127
    %v153 = vpop.f32.mrf.mxu0
    %v154 = vadd.f32 %v72, %v153
    %v155 = vpop.f32.mrf.mxu0
    %v156 = vadd.f32 %v72, %v155
    %157 = vdwg.mxu0
    %158 = vmatpush.bf16.msra.mxu0 0
    %159 = vmatpush.bf16.msra.mxu0 0
    %160 = vmatpush.bf16.msra.mxu0 0
    %161 = vmatpush.bf16.msra.mxu0 0
    %162 = vmatpush.bf16.msra.mxu0 %v107
    %163 = vmatpush.bf16.msra.mxu0 %v105
    %164 = vmatpush.bf16.msra.mxu0 %v103
    %165 = vmatpush.bf16.msra.mxu0 %v101
    %166 = vmatmul.bf16.gmra.mxu0 %v118
    %v167 = vpop.f32.mrf.mxu0
    %v168 = vadd.f32 %v73, %v167
    %v169 = vpop.f32.mrf.mxu0
    %v170 = vadd.f32 %v73, %v169
    %171 = vmatmul.bf16.gmra.mxu0 %v121
    %v172 = vpop.f32.mrf.mxu0
    %v173 = vadd.f32 %v73, %v172
    %v174 = vpop.f32.mrf.mxu0
    %v175 = vadd.f32 %v73, %v174
    %176 = vmatmul.bf16.gmra.mxu0 %v124
    %v177 = vpop.f32.mrf.mxu0
    %v178 = vadd.f32 %v73, %v177
    %v179 = vpop.f32.mrf.mxu0
    %v180 = vadd.f32 %v73, %v179
    %181 = vmatmul.bf16.gmra.mxu0 %v127
    %v182 = vpop.f32.mrf.mxu0
    %v183 = vadd.f32 %v73, %v182
    %v184 = vpop.f32.mrf.mxu0
    %v185 = vadd.f32 %v73, %v184
    %186 = vdwg.mxu0
    %187 = vst [vmem:[#allocation2] sm:$0xff] %v139
    %188 = vst [vmem:[#allocation2 + $0x8] sm:$0xff] %v168
    %189 = vst [vmem:[#allocation2 + $0x10] sm:$0xff] %v141
    %190 = vst [vmem:[#allocation2 + $0x18] sm:$0xff] %v170
    %191 = vst [vmem:[#allocation2 + $0x20] sm:$0xff] %v144
    %192 = vst [vmem:[#allocation2 + $0x28] sm:$0xff] %v173
    %193 = vst [vmem:[#allocation2 + $0x30] sm:$0xff] %v146
    %194 = vst [vmem:[#allocation2 + $0x38] sm:$0xff] %v175
    %195 = vst [vmem:[#allocation2 + $0x40] sm:$0xff] %v149
    %196 = vst [vmem:[#allocation2 + $0x48] sm:$0xff] %v178
    %197 = vst [vmem:[#allocation2 + $0x50] sm:$0xff] %v151
    %198 = vst [vmem:[#allocation2 + $0x58] sm:$0xff] %v180
    %199 = vst [vmem:[#allocation2 + $0x60] sm:$0xff] %v154
    %200 = vst [vmem:[#allocation2 + $0x68] sm:$0xff] %v183
    %201 = vst [vmem:[#allocation2 + $0x70] sm:$0xff] %v156
    %202 = vst [vmem:[#allocation2 + $0x78] sm:$0xff] %v185
    %v203 = vld [vmem:[#allocation5] sm:$0xff]
    %v204 = vld [vmem:[#allocation5 + $0x8] sm:$0xff]
    %v205 = vld [vmem:[#allocation5 + $0x10] sm:$0xff]
    %v206 = vld [vmem:[#allocation5 + $0x18] sm:$0xff]
    %v207 = vld [vmem:[#allocation5 + $0x20] sm:$0xff]
    %v208 = vld [vmem:[#allocation5 + $0x28] sm:$0xff]
    %v209 = vld [vmem:[#allocation5 + $0x30] sm:$0xff]
    %v210 = vld [vmem:[#allocation5 + $0x38] sm:$0xff]
    %v219 = vunpack.c.l.b16 %v203
    %v220 = vunpack.c.h.b16 %v203
    %v221 = vunpack.c.l.b16 %v204
    %v222 = vunpack.c.h.b16 %v204
    %v223 = vunpack.c.l.b16 %v205
    %v224 = vunpack.c.h.b16 %v205
    %v225 = vunpack.c.l.b16 %v206
    %v226 = vunpack.c.h.b16 %v206
    %v227 = vunpack.c.l.b16 %v207
    %v228 = vunpack.c.h.b16 %v207
    %v229 = vunpack.c.l.b16 %v208
    %v230 = vunpack.c.h.b16 %v208
    %v231 = vunpack.c.l.b16 %v209
    %v232 = vunpack.c.h.b16 %v209
    %v233 = vunpack.c.l.b16 %v210
    %v234 = vunpack.c.h.b16 %v210
    %v235 = vpack.c.b16 %v221, %v219
    %v236 = vpack.c.b16 %v222, %v220
    %v237 = vpack.c.b16 %v225, %v223
    %v238 = vpack.c.b16 %v226, %v224
    %v239 = vpack.c.b16 %v229, %v227
    %v240 = vpack.c.b16 %v230, %v228
    %v241 = vpack.c.b16 %v233, %v231
    %v242 = vpack.c.b16 %v234, %v232
    %v252 = vsel %vm116, 0, 0
    %254 = vmatpush.bf16.msra.mxu0 0
    %255 = vmatpush.bf16.msra.mxu0 0
    %256 = vmatpush.bf16.msra.mxu0 0
    %257 = vmatpush.bf16.msra.mxu0 0
    %258 = vmatpush.bf16.msra.mxu0 %v241
    %259 = vmatpush.bf16.msra.mxu0 %v239
    %260 = vmatpush.bf16.msra.mxu0 %v237
    %261 = vmatpush.bf16.msra.mxu0 %v235
    %262 = vmatmul.bf16.gmra.mxu0 %v252
    %v263 = vpop.f32.mrf.mxu0
    %v264 = vadd.f32 0.0, %v263
    %v265 = vpop.f32.mrf.mxu0
    %266 = vdwg.mxu0
    %267 = vmatpush.bf16.msra.mxu0 0
    %268 = vmatpush.bf16.msra.mxu0 0
    %269 = vmatpush.bf16.msra.mxu0 0
    %270 = vmatpush.bf16.msra.mxu0 0
    %271 = vmatpush.bf16.msra.mxu0 %v242
    %272 = vmatpush.bf16.msra.mxu0 %v240
    %273 = vmatpush.bf16.msra.mxu0 %v238
    %274 = vmatpush.bf16.msra.mxu0 %v236
    %275 = vmatmul.bf16.gmra.mxu0 %v252
    %v276 = vpop.f32.mrf.mxu0
    %v277 = vadd.f32 0.0, %v276
    %v278 = vpop.f32.mrf.mxu0
    %279 = vdwg.mxu0
    %s280 = smul.u32 0, 2
    %s281 = smul.addr %s280, 8
    %s282 = scalar_lea.vmem [#allocation2], %s281
    %v283 = vld [vmem:[%s282] sm:$0xff]
    %v284 = vadd.f32 %v283, %v264
    %s285 = smul.u32 7, 2
    %s286 = smul.addr %s285, 8
    %s287 = scalar_lea.vmem [#allocation2], %s286
    %v288 = vld [vmem:[%s287 + $0x8] sm:$0xff]
    %v289 = vadd.f32 %v288, %v277
    %v290 = vxor.u32 %v284, 2147483648
    %v291 = vmul.f32 %v290, 1.442695
    %v292 = vpow.pop %v291
    %v293 = vadd.f32 %v292, 1.0
    %v294 = vrcp.pop %v293
    %v295 = vmul.f32 %v293, %v294
    %v296 = vsub.f32 1.0, %v295
    %v297 = vmul.f32 %v294, %v296
    %v298 = vadd.f32 %v294, %v297
    %vm299 = vweird.f32 %v293
    %vm300 = vweird.f32 %v294
    %vm301 = vmor %vm299, %vm300
    %v302 = vsel %vm301, %v294, %v298
    %v303 = vand.u32 2147483647, %v293
    %vm304 = vcmp.eq.f32.partialorder %v303, 8.507059e+37
    %v305 = vand.u32 %v293, 2147483648
    %v306 = vor.u32 1.1754944e-38, %v305
    %v307 = vsel %vm304, %v306, %v302
    %v308 = vmul.f32 1.0, %v307
    %v309 = vxor.u32 %v289, 2147483648
    %v310 = vmul.f32 %v309, 1.442695
    %v311 = vpow.pop %v310
    %v312 = vadd.f32 %v311, 1.0
    %v313 = vrcp.pop %v312
    %v314 = vmul.f32 %v312, %v313
    %v315 = vsub.f32 1.0, %v314
    %v316 = vmul.f32 %v313, %v315
    %v317 = vadd.f32 %v313, %v316
    %vm318 = vweird.f32 %v312
    %vm319 = vweird.f32 %v313
    %vm320 = vmor %vm318, %vm319
    %v321 = vsel %vm320, %v313, %v317
    %v322 = vand.u32 2147483647, %v312
    %vm323 = vcmp.eq.f32.partialorder %v322, 8.507059e+37
    %v324 = vand.u32 %v312, 2147483648
    %v325 = vor.u32 1.1754944e-38, %v324
    %v326 = vsel %vm323, %v325, %v321
    %v327 = vmul.f32 1.0, %v326
    %v328 = vtanh.pop %v284
    %v329 = vtanh.pop %v289
    %v330 = vmul.f32 %v308, 0.0
    %332 = vrot.lane.b32.xlu0 %v328, 32
    %v333 = vpop.permute.xlu0 %332
    %v335 = vmul.f32 %v308, %v333
    %337 = vrot.lane.b32.xlu0 %v335, 32
    %v338 = vpop.permute.xlu0 %337
    %v340 = vadd.f32 %v330, %v338
    %v341 = vmul.f32 %v327, 0.0
    %343 = vrot.lane.b32.xlu0 %v329, 32
    %v344 = vpop.permute.xlu0 %343
    %v346 = vmul.f32 %v327, %v344
    %348 = vrot.lane.b32.xlu0 %v346, 32
    %v349 = vpop.permute.xlu0 %348
    %v351 = vadd.f32 %v341, %v349
    %v352 = vtanh.pop %v340
    %354 = vrot.lane.b32.xlu0 %v352, 32
    %v355 = vpop.permute.xlu0 %354
    %v357 = vmul.f32 %v308, %v355
    %v358 = vtanh.pop %v351
    %360 = vrot.lane.b32.xlu0 %v358, 32
    %v361 = vpop.permute.xlu0 %360
    %v363 = vmul.f32 %v327, %v361
    %365 = vrot.lane.b32.xlu0 %v357, 64
    %v366 = vpop.permute.xlu0 %365
    %vm368 = vcmask 261120
    %369 = vst.msk [vmem:[%s4] sm:$0xff] %vm368, %v366
    %371 = vrot.lane.b32.xlu0 %v363, 96
    %v372 = vpop.permute.xlu0 %371
    %s374 = scalar_lea.vmem %s4, 56
    %vm375 = vcmask 523520
    %376 = vst.msk [vmem:[%s374] sm:$0xff] %vm375, %v372
    %v377 = vsel %vm368, %v366, %v372
    %v378 = vpack.c.bf16 %v377, %v377
    %v379 = vld [vmem:[#allocation5] sm:$0xff]
    %v380 = vld [vmem:[#allocation5 + $0x8] sm:$0xff]
    %v381 = vld [vmem:[#allocation5 + $0x10] sm:$0xff]
    %v382 = vld [vmem:[#allocation5 + $0x18] sm:$0xff]
    %v383 = vld [vmem:[#allocation5 + $0x20] sm:$0xff]
    %v384 = vld [vmem:[#allocation5 + $0x28] sm:$0xff]
    %v385 = vld [vmem:[#allocation5 + $0x30] sm:$0xff]
    %v386 = vld [vmem:[#allocation5 + $0x38] sm:$0xff]
    %v395 = vunpack.c.l.b16 %v379
    %v396 = vunpack.c.h.b16 %v379
    %v397 = vunpack.c.l.b16 %v380
    %v398 = vunpack.c.h.b16 %v380
    %v399 = vunpack.c.l.b16 %v381
    %v400 = vunpack.c.h.b16 %v381
    %v401 = vunpack.c.l.b16 %v382
    %v402 = vunpack.c.h.b16 %v382
    %v403 = vunpack.c.l.b16 %v383
    %v404 = vunpack.c.h.b16 %v383
    %v405 = vunpack.c.l.b16 %v384
    %v406 = vunpack.c.h.b16 %v384
    %v407 = vunpack.c.l.b16 %v385
    %v408 = vunpack.c.h.b16 %v385
    %v409 = vunpack.c.l.b16 %v386
    %v410 = vunpack.c.h.b16 %v386
    %v411 = vpack.c.b16 %v397, %v395
    %v412 = vpack.c.b16 %v398, %v396
    %v413 = vpack.c.b16 %v401, %v399
    %v414 = vpack.c.b16 %v402, %v400
    %v415 = vpack.c.b16 %v405, %v403
    %v416 = vpack.c.b16 %v406, %v404
    %v417 = vpack.c.b16 %v409, %v407
    %v418 = vpack.c.b16 %v410, %v408
    %v428 = vsel %vm116, %v378, 0
    %430 = vmatpush.bf16.msra.mxu0 0
    %431 = vmatpush.bf16.msra.mxu0 0
    %432 = vmatpush.bf16.msra.mxu0 0
    %433 = vmatpush.bf16.msra.mxu0 0
    %434 = vmatpush.bf16.msra.mxu0 %v417
    %435 = vmatpush.bf16.msra.mxu0 %v415
    %436 = vmatpush.bf16.msra.mxu0 %v413
    %437 = vmatpush.bf16.msra.mxu0 %v411
    %438 = vmatmul.bf16.gmra.mxu0 %v428
    %v439 = vpop.f32.mrf.mxu0
    %v440 = vadd.f32 0.0, %v439
    %v441 = vpop.f32.mrf.mxu0
    %442 = vdwg.mxu0
    %443 = vmatpush.bf16.msra.mxu0 0
    %444 = vmatpush.bf16.msra.mxu0 0
    %445 = vmatpush.bf16.msra.mxu0 0
    %446 = vmatpush.bf16.msra.mxu0 0
    %447 = vmatpush.bf16.msra.mxu0 %v418
    %448 = vmatpush.bf16.msra.mxu0 %v416
    %449 = vmatpush.bf16.msra.mxu0 %v414
    %450 = vmatpush.bf16.msra.mxu0 %v412
    %451 = vmatmul.bf16.gmra.mxu0 %v428
    %v452 = vpop.f32.mrf.mxu0
    %v453 = vadd.f32 0.0, %v452
    %v454 = vpop.f32.mrf.mxu0
    %455 = vdwg.mxu0
    %s456 = smul.u32 1, 2
    %s457 = smul.addr %s456, 8
    %s458 = scalar_lea.vmem [#allocation2], %s457
    %v459 = vld [vmem:[%s458] sm:$0xff]
    %v460 = vadd.f32 %v459, %v440
    %s461 = smul.u32 6, 2
    %s462 = smul.addr %s461, 8
    %s463 = scalar_lea.vmem [#allocation2], %s462
    %v464 = vld [vmem:[%s463 + $0x8] sm:$0xff]
    %v465 = vadd.f32 %v464, %v453
    %v466 = vxor.u32 %v460, 2147483648
    %v467 = vmul.f32 %v466, 1.442695
    %v468 = vpow.pop %v467
    %v469 = vadd.f32 %v468, 1.0
    %v470 = vrcp.pop %v469
    %v471 = vmul.f32 %v469, %v470
    %v472 = vsub.f32 1.0, %v471
    %v473 = vmul.f32 %v470, %v472
    %v474 = vadd.f32 %v470, %v473
    %vm475 = vweird.f32 %v469
    %vm476 = vweird.f32 %v470
    %vm477 = vmor %vm475, %vm476
    %v478 = vsel %vm477, %v470, %v474
    %v479 = vand.u32 2147483647, %v469
    %vm480 = vcmp.eq.f32.partialorder %v479, 8.507059e+37
    %v481 = vand.u32 %v469, 2147483648
    %v482 = vor.u32 1.1754944e-38, %v481
    %v483 = vsel %vm480, %v482, %v478
    %v484 = vmul.f32 1.0, %v483
    %v485 = vxor.u32 %v465, 2147483648
    %v486 = vmul.f32 %v485, 1.442695
    %v487 = vpow.pop %v486
    %v488 = vadd.f32 %v487, 1.0
    %v489 = vrcp.pop %v488
    %v490 = vmul.f32 %v488, %v489
    %v491 = vsub.f32 1.0, %v490
    %v492 = vmul.f32 %v489, %v491
    %v493 = vadd.f32 %v489, %v492
    %vm494 = vweird.f32 %v488
    %vm495 = vweird.f32 %v489
    %vm496 = vmor %vm494, %vm495
    %v497 = vsel %vm496, %v489, %v493
    %v498 = vand.u32 2147483647, %v488
    %vm499 = vcmp.eq.f32.partialorder %v498, 8.507059e+37
    %v500 = vand.u32 %v488, 2147483648
    %v501 = vor.u32 1.1754944e-38, %v500
    %v502 = vsel %vm499, %v501, %v497
    %v503 = vmul.f32 1.0, %v502
    %v504 = vtanh.pop %v460
    %v505 = vtanh.pop %v465
    %v506 = vmul.f32 %v484, %v340
    %508 = vrot.lane.b32.xlu0 %v504, 32
    %v509 = vpop.permute.xlu0 %508
    %v511 = vmul.f32 %v484, %v509
    %513 = vrot.lane.b32.xlu0 %v511, 32
    %v514 = vpop.permute.xlu0 %513
    %v516 = vadd.f32 %v506, %v514
    %v517 = vmul.f32 %v503, %v351
    %519 = vrot.lane.b32.xlu0 %v505, 32
    %v520 = vpop.permute.xlu0 %519
    %v522 = vmul.f32 %v503, %v520
    %524 = vrot.lane.b32.xlu0 %v522, 32
    %v525 = vpop.permute.xlu0 %524
    %v527 = vadd.f32 %v517, %v525
    %v528 = vtanh.pop %v516
    %530 = vrot.lane.b32.xlu0 %v528, 32
    %v531 = vpop.permute.xlu0 %530
    %v533 = vmul.f32 %v484, %v531
    %v534 = vtanh.pop %v527
    %536 = vrot.lane.b32.xlu0 %v534, 32
    %v537 = vpop.permute.xlu0 %536
    %v539 = vmul.f32 %v503, %v537
    %541 = vrot.lane.b32.xlu0 %v533, 64
    %v542 = vpop.permute.xlu0 %541
    %s544 = scalar_lea.vmem %s4, 8
    %545 = vst.msk [vmem:[%s544] sm:$0xff] %vm368, %v542
    %547 = vrot.lane.b32.xlu0 %v539, 96
    %v548 = vpop.permute.xlu0 %547
    %s550 = scalar_lea.vmem %s4, 48
    %551 = vst.msk [vmem:[%s550] sm:$0xff] %vm375, %v548
    %v552 = vsel %vm368, %v542, %v548
    %v553 = vpack.c.bf16 %v552, %v552
    %v554 = vld [vmem:[#allocation5] sm:$0xff]
    %v555 = vld [vmem:[#allocation5 + $0x8] sm:$0xff]
    %v556 = vld [vmem:[#allocation5 + $0x10] sm:$0xff]
    %v557 = vld [vmem:[#allocation5 + $0x18] sm:$0xff]
    %v558 = vld [vmem:[#allocation5 + $0x20] sm:$0xff]
    %v559 = vld [vmem:[#allocation5 + $0x28] sm:$0xff]
    %v560 = vld [vmem:[#allocation5 + $0x30] sm:$0xff]
    %v561 = vld [vmem:[#allocation5 + $0x38] sm:$0xff]
    %v570 = vunpack.c.l.b16 %v554
    %v571 = vunpack.c.h.b16 %v554
    %v572 = vunpack.c.l.b16 %v555
    %v573 = vunpack.c.h.b16 %v555
    %v574 = vunpack.c.l.b16 %v556
    %v575 = vunpack.c.h.b16 %v556
    %v576 = vunpack.c.l.b16 %v557
    %v577 = vunpack.c.h.b16 %v557
    %v578 = vunpack.c.l.b16 %v558
    %v579 = vunpack.c.h.b16 %v558
    %v580 = vunpack.c.l.b16 %v559
    %v581 = vunpack.c.h.b16 %v559
    %v582 = vunpack.c.l.b16 %v560
    %v583 = vunpack.c.h.b16 %v560
    %v584 = vunpack.c.l.b16 %v561
    %v585 = vunpack.c.h.b16 %v561
    %v586 = vpack.c.b16 %v572, %v570
    %v587 = vpack.c.b16 %v573, %v571
    %v588 = vpack.c.b16 %v576, %v574
    %v589 = vpack.c.b16 %v577, %v575
    %v590 = vpack.c.b16 %v580, %v578
    %v591 = vpack.c.b16 %v581, %v579
    %v592 = vpack.c.b16 %v584, %v582
    %v593 = vpack.c.b16 %v585, %v583
    %v603 = vsel %vm116, %v553, 0
    %605 = vmatpush.bf16.msra.mxu0 0
    %606 = vmatpush.bf16.msra.mxu0 0
    %607 = vmatpush.bf16.msra.mxu0 0
    %608 = vmatpush.bf16.msra.mxu0 0
    %609 = vmatpush.bf16.msra.mxu0 %v592
    %610 = vmatpush.bf16.msra.mxu0 %v590
    %611 = vmatpush.bf16.msra.mxu0 %v588
    %612 = vmatpush.bf16.msra.mxu0 %v586
    %613 = vmatmul.bf16.gmra.mxu0 %v603
    %v614 = vpop.f32.mrf.mxu0
    %v615 = vadd.f32 0.0, %v614
    %v616 = vpop.f32.mrf.mxu0
    %617 = vdwg.mxu0
    %618 = vmatpush.bf16.msra.mxu0 0
    %619 = vmatpush.bf16.msra.mxu0 0
    %620 = vmatpush.bf16.msra.mxu0 0
    %621 = vmatpush.bf16.msra.mxu0 0
    %622 = vmatpush.bf16.msra.mxu0 %v593
    %623 = vmatpush.bf16.msra.mxu0 %v591
    %624 = vmatpush.bf16.msra.mxu0 %v589
    %625 = vmatpush.bf16.msra.mxu0 %v587
    %626 = vmatmul.bf16.gmra.mxu0 %v603
    %v627 = vpop.f32.mrf.mxu0
    %v628 = vadd.f32 0.0, %v627
    %v629 = vpop.f32.mrf.mxu0
    %630 = vdwg.mxu0
    %s631 = smul.u32 2, 2
    %s632 = smul.addr %s631, 8
    %s633 = scalar_lea.vmem [#allocation2], %s632
    %v634 = vld [vmem:[%s633] sm:$0xff]
    %v635 = vadd.f32 %v634, %v615
    %s636 = smul.u32 5, 2
    %s637 = smul.addr %s636, 8
    %s638 = scalar_lea.vmem [#allocation2], %s637
    %v639 = vld [vmem:[%s638 + $0x8] sm:$0xff]
    %v640 = vadd.f32 %v639, %v628
    %v641 = vxor.u32 %v635, 2147483648
    %v642 = vmul.f32 %v641, 1.442695
    %v643 = vpow.pop %v642
    %v644 = vadd.f32 %v643, 1.0
    %v645 = vrcp.pop %v644
    %v646 = vmul.f32 %v644, %v645
    %v647 = vsub.f32 1.0, %v646
    %v648 = vmul.f32 %v645, %v647
    %v649 = vadd.f32 %v645, %v648
    %vm650 = vweird.f32 %v644
    %vm651 = vweird.f32 %v645
    %vm652 = vmor %vm650, %vm651
    %v653 = vsel %vm652, %v645, %v649
    %v654 = vand.u32 2147483647, %v644
    %vm655 = vcmp.eq.f32.partialorder %v654, 8.507059e+37
    %v656 = vand.u32 %v644, 2147483648
    %v657 = vor.u32 1.1754944e-38, %v656
    %v658 = vsel %vm655, %v657, %v653
    %v659 = vmul.f32 1.0, %v658
    %v660 = vxor.u32 %v640, 2147483648
    %v661 = vmul.f32 %v660, 1.442695
    %v662 = vpow.pop %v661
    %v663 = vadd.f32 %v662, 1.0
    %v664 = vrcp.pop %v663
    %v665 = vmul.f32 %v663, %v664
    %v666 = vsub.f32 1.0, %v665
    %v667 = vmul.f32 %v664, %v666
    %v668 = vadd.f32 %v664, %v667
    %vm669 = vweird.f32 %v663
    %vm670 = vweird.f32 %v664
    %vm671 = vmor %vm669, %vm670
    %v672 = vsel %vm671, %v664, %v668
    %v673 = vand.u32 2147483647, %v663
    %vm674 = vcmp.eq.f32.partialorder %v673, 8.507059e+37
    %v675 = vand.u32 %v663, 2147483648
    %v676 = vor.u32 1.1754944e-38, %v675
    %v677 = vsel %vm674, %v676, %v672
    %v678 = vmul.f32 1.0, %v677
    %v679 = vtanh.pop %v635
    %v680 = vtanh.pop %v640
    %v681 = vmul.f32 %v659, %v516
    %683 = vrot.lane.b32.xlu0 %v679, 32
    %v684 = vpop.permute.xlu0 %683
    %v686 = vmul.f32 %v659, %v684
    %688 = vrot.lane.b32.xlu0 %v686, 32
    %v689 = vpop.permute.xlu0 %688
    %v691 = vadd.f32 %v681, %v689
    %v692 = vmul.f32 %v678, %v527
    %694 = vrot.lane.b32.xlu0 %v680, 32
    %v695 = vpop.permute.xlu0 %694
    %v697 = vmul.f32 %v678, %v695
    %699 = vrot.lane.b32.xlu0 %v697, 32
    %v700 = vpop.permute.xlu0 %699
    %v702 = vadd.f32 %v692, %v700
    %v703 = vtanh.pop %v691
    %705 = vrot.lane.b32.xlu0 %v703, 32
    %v706 = vpop.permute.xlu0 %705
    %v708 = vmul.f32 %v659, %v706
    %v709 = vtanh.pop %v702
    %711 = vrot.lane.b32.xlu0 %v709, 32
    %v712 = vpop.permute.xlu0 %711
    %v714 = vmul.f32 %v678, %v712
    %716 = vrot.lane.b32.xlu0 %v708, 64
    %v717 = vpop.permute.xlu0 %716
    %s719 = scalar_lea.vmem %s4, 16
    %720 = vst.msk [vmem:[%s719] sm:$0xff] %vm368, %v717
    %722 = vrot.lane.b32.xlu0 %v714, 96
    %v723 = vpop.permute.xlu0 %722
    %s725 = scalar_lea.vmem %s4, 40
    %726 = vst.msk [vmem:[%s725] sm:$0xff] %vm375, %v723
    %v727 = vsel %vm368, %v717, %v723
    %v728 = vpack.c.bf16 %v727, %v727
    %v729 = vld [vmem:[#allocation5] sm:$0xff]
    %v730 = vld [vmem:[#allocation5 + $0x8] sm:$0xff]
    %v731 = vld [vmem:[#allocation5 + $0x10] sm:$0xff]
    %v732 = vld [vmem:[#allocation5 + $0x18] sm:$0xff]
    %v733 = vld [vmem:[#allocation5 + $0x20] sm:$0xff]
    %v734 = vld [vmem:[#allocation5 + $0x28] sm:$0xff]
    %v735 = vld [vmem:[#allocation5 + $0x30] sm:$0xff]
    %v736 = vld [vmem:[#allocation5 + $0x38] sm:$0xff]
    %v745 = vunpack.c.l.b16 %v729
    %v746 = vunpack.c.h.b16 %v729
    %v747 = vunpack.c.l.b16 %v730
    %v748 = vunpack.c.h.b16 %v730
    %v749 = vunpack.c.l.b16 %v731
    %v750 = vunpack.c.h.b16 %v731
    %v751 = vunpack.c.l.b16 %v732
    %v752 = vunpack.c.h.b16 %v732
    %v753 = vunpack.c.l.b16 %v733
    %v754 = vunpack.c.h.b16 %v733
    %v755 = vunpack.c.l.b16 %v734
    %v756 = vunpack.c.h.b16 %v734
    %v757 = vunpack.c.l.b16 %v735
    %v758 = vunpack.c.h.b16 %v735
    %v759 = vunpack.c.l.b16 %v736
    %v760 = vunpack.c.h.b16 %v736
    %v761 = vpack.c.b16 %v747, %v745
    %v762 = vpack.c.b16 %v748, %v746
    %v763 = vpack.c.b16 %v751, %v749
    %v764 = vpack.c.b16 %v752, %v750
    %v765 = vpack.c.b16 %v755, %v753
    %v766 = vpack.c.b16 %v756, %v754
    %v767 = vpack.c.b16 %v759, %v757
    %v768 = vpack.c.b16 %v760, %v758
    %v778 = vsel %vm116, %v728, 0
    %780 = vmatpush.bf16.msra.mxu0 0
    %781 = vmatpush.bf16.msra.mxu0 0
    %782 = vmatpush.bf16.msra.mxu0 0
    %783 = vmatpush.bf16.msra.mxu0 0
    %784 = vmatpush.bf16.msra.mxu0 %v767
    %785 = vmatpush.bf16.msra.mxu0 %v765
    %786 = vmatpush.bf16.msra.mxu0 %v763
    %787 = vmatpush.bf16.msra.mxu0 %v761
    %788 = vmatmul.bf16.gmra.mxu0 %v778
    %v789 = vpop.f32.mrf.mxu0
    %v790 = vadd.f32 0.0, %v789
    %v791 = vpop.f32.mrf.mxu0
    %792 = vdwg.mxu0
    %793 = vmatpush.bf16.msra.mxu0 0
    %794 = vmatpush.bf16.msra.mxu0 0
    %795 = vmatpush.bf16.msra.mxu0 0
    %796 = vmatpush.bf16.msra.mxu0 0
    %797 = vmatpush.bf16.msra.mxu0 %v768
    %798 = vmatpush.bf16.msra.mxu0 %v766
    %799 = vmatpush.bf16.msra.mxu0 %v764
    %800 = vmatpush.bf16.msra.mxu0 %v762
    %801 = vmatmul.bf16.gmra.mxu0 %v778
    %v802 = vpop.f32.mrf.mxu0
    %v803 = vadd.f32 0.0, %v802
    %v804 = vpop.f32.mrf.mxu0
    %805 = vdwg.mxu0
    %s806 = smul.u32 3, 2
    %s807 = smul.addr %s806, 8
    %s808 = scalar_lea.vmem [#allocation2], %s807
    %v809 = vld [vmem:[%s808] sm:$0xff]
    %v810 = vadd.f32 %v809, %v790
    %s811 = smul.u32 4, 2
    %s812 = smul.addr %s811, 8
    %s813 = scalar_lea.vmem [#allocation2], %s812
    %v814 = vld [vmem:[%s813 + $0x8] sm:$0xff]
    %v815 = vadd.f32 %v814, %v803
    %v816 = vxor.u32 %v810, 2147483648
    %v817 = vmul.f32 %v816, 1.442695
    %v818 = vpow.pop %v817
    %v819 = vadd.f32 %v818, 1.0
    %v820 = vrcp.pop %v819
    %v821 = vmul.f32 %v819, %v820
    %v822 = vsub.f32 1.0, %v821
    %v823 = vmul.f32 %v820, %v822
    %v824 = vadd.f32 %v820, %v823
    %vm825 = vweird.f32 %v819
    %vm826 = vweird.f32 %v820
    %vm827 = vmor %vm825, %vm826
    %v828 = vsel %vm827, %v820, %v824
    %v829 = vand.u32 2147483647, %v819
    %vm830 = vcmp.eq.f32.partialorder %v829, 8.507059e+37
    %v831 = vand.u32 %v819, 2147483648
    %v832 = vor.u32 1.1754944e-38, %v831
    %v833 = vsel %vm830, %v832, %v828
    %v834 = vmul.f32 1.0, %v833
    %v835 = vxor.u32 %v815, 2147483648
    %v836 = vmul.f32 %v835, 1.442695
    %v837 = vpow.pop %v836
    %v838 = vadd.f32 %v837, 1.0
    %v839 = vrcp.pop %v838
    %v840 = vmul.f32 %v838, %v839
    %v841 = vsub.f32 1.0, %v840
    %v842 = vmul.f32 %v839, %v841
    %v843 = vadd.f32 %v839, %v842
    %vm844 = vweird.f32 %v838
    %vm845 = vweird.f32 %v839
    %vm846 = vmor %vm844, %vm845
    %v847 = vsel %vm846, %v839, %v843
    %v848 = vand.u32 2147483647, %v838
    %vm849 = vcmp.eq.f32.partialorder %v848, 8.507059e+37
    %v850 = vand.u32 %v838, 2147483648
    %v851 = vor.u32 1.1754944e-38, %v850
    %v852 = vsel %vm849, %v851, %v847
    %v853 = vmul.f32 1.0, %v852
    %v854 = vtanh.pop %v810
    %v855 = vtanh.pop %v815
    %v856 = vmul.f32 %v834, %v691
    %858 = vrot.lane.b32.xlu0 %v854, 32
    %v859 = vpop.permute.xlu0 %858
    %v861 = vmul.f32 %v834, %v859
    %863 = vrot.lane.b32.xlu0 %v861, 32
    %v864 = vpop.permute.xlu0 %863
    %v866 = vadd.f32 %v856, %v864
    %v867 = vmul.f32 %v853, %v702
    %869 = vrot.lane.b32.xlu0 %v855, 32
    %v870 = vpop.permute.xlu0 %869
    %v872 = vmul.f32 %v853, %v870
    %874 = vrot.lane.b32.xlu0 %v872, 32
    %v875 = vpop.permute.xlu0 %874
    %v877 = vadd.f32 %v867, %v875
    %v878 = vtanh.pop %v866
    %880 = vrot.lane.b32.xlu0 %v878, 32
    %v881 = vpop.permute.xlu0 %880
    %v883 = vmul.f32 %v834, %v881
    %v884 = vtanh.pop %v877
    %886 = vrot.lane.b32.xlu0 %v884, 32
    %v887 = vpop.permute.xlu0 %886
    %v889 = vmul.f32 %v853, %v887
    %891 = vrot.lane.b32.xlu0 %v883, 64
    %v892 = vpop.permute.xlu0 %891
    %s894 = scalar_lea.vmem %s4, 24
    %895 = vst.msk [vmem:[%s894] sm:$0xff] %vm368, %v892
    %897 = vrot.lane.b32.xlu0 %v889, 96
    %v898 = vpop.permute.xlu0 %897
    %s900 = scalar_lea.vmem %s4, 32
    %901 = vst.msk [vmem:[%s900] sm:$0xff] %vm375, %v898
    %v902 = vsel %vm368, %v892, %v898
    %v903 = vpack.c.bf16 %v902, %v902
    %v904 = vld [vmem:[#allocation5] sm:$0xff]
    %v905 = vld [vmem:[#allocation5 + $0x8] sm:$0xff]
    %v906 = vld [vmem:[#allocation5 + $0x10] sm:$0xff]
    %v907 = vld [vmem:[#allocation5 + $0x18] sm:$0xff]
    %v908 = vld [vmem:[#allocation5 + $0x20] sm:$0xff]
    %v909 = vld [vmem:[#allocation5 + $0x28] sm:$0xff]
    %v910 = vld [vmem:[#allocation5 + $0x30] sm:$0xff]
    %v911 = vld [vmem:[#allocation5 + $0x38] sm:$0xff]
    %v920 = vunpack.c.l.b16 %v904
    %v921 = vunpack.c.h.b16 %v904
    %v922 = vunpack.c.l.b16 %v905
    %v923 = vunpack.c.h.b16 %v905
    %v924 = vunpack.c.l.b16 %v906
    %v925 = vunpack.c.h.b16 %v906
    %v926 = vunpack.c.l.b16 %v907
    %v927 = vunpack.c.h.b16 %v907
    %v928 = vunpack.c.l.b16 %v908
    %v929 = vunpack.c.h.b16 %v908
    %v930 = vunpack.c.l.b16 %v909
    %v931 = vunpack.c.h.b16 %v909
    %v932 = vunpack.c.l.b16 %v910
    %v933 = vunpack.c.h.b16 %v910
    %v934 = vunpack.c.l.b16 %v911
    %v935 = vunpack.c.h.b16 %v911
    %v936 = vpack.c.b16 %v922, %v920
    %v937 = vpack.c.b16 %v923, %v921
    %v938 = vpack.c.b16 %v926, %v924
    %v939 = vpack.c.b16 %v927, %v925
    %v940 = vpack.c.b16 %v930, %v928
    %v941 = vpack.c.b16 %v931, %v929
    %v942 = vpack.c.b16 %v934, %v932
    %v943 = vpack.c.b16 %v935, %v933
    %v953 = vsel %vm116, %v903, 0
    %955 = vmatpush.bf16.msra.mxu0 0
    %956 = vmatpush.bf16.msra.mxu0 0
    %957 = vmatpush.bf16.msra.mxu0 0
    %958 = vmatpush.bf16.msra.mxu0 0
    %959 = vmatpush.bf16.msra.mxu0 %v942
    %960 = vmatpush.bf16.msra.mxu0 %v940
    %961 = vmatpush.bf16.msra.mxu0 %v938
    %962 = vmatpush.bf16.msra.mxu0 %v936
    %963 = vmatmul.bf16.gmra.mxu0 %v953
    %v964 = vpop.f32.mrf.mxu0
    %v965 = vadd.f32 0.0, %v964
    %v966 = vpop.f32.mrf.mxu0
    %967 = vdwg.mxu0
    %968 = vmatpush.bf16.msra.mxu0 0
    %969 = vmatpush.bf16.msra.mxu0 0
    %970 = vmatpush.bf16.msra.mxu0 0
    %971 = vmatpush.bf16.msra.mxu0 0
    %972 = vmatpush.bf16.msra.mxu0 %v943
    %973 = vmatpush.bf16.msra.mxu0 %v941
    %974 = vmatpush.bf16.msra.mxu0 %v939
    %975 = vmatpush.bf16.msra.mxu0 %v937
    %976 = vmatmul.bf16.gmra.mxu0 %v953
    %v977 = vpop.f32.mrf.mxu0
    %v978 = vadd.f32 0.0, %v977
    %v979 = vpop.f32.mrf.mxu0
    %980 = vdwg.mxu0
    %v981 = vld [vmem:[%s813] sm:$0xff]
    %v982 = vadd.f32 %v981, %v965
    %v983 = vld [vmem:[%s808 + $0x8] sm:$0xff]
    %v984 = vadd.f32 %v983, %v978
    %v985 = vxor.u32 %v982, 2147483648
    %v986 = vmul.f32 %v985, 1.442695
    %v987 = vpow.pop %v986
    %v988 = vadd.f32 %v987, 1.0
    %v989 = vrcp.pop %v988
    %v990 = vmul.f32 %v988, %v989
    %v991 = vsub.f32 1.0, %v990
    %v992 = vmul.f32 %v989, %v991
    %v993 = vadd.f32 %v989, %v992
    %vm994 = vweird.f32 %v988
    %vm995 = vweird.f32 %v989
    %vm996 = vmor %vm994, %vm995
    %v997 = vsel %vm996, %v989, %v993
    %v998 = vand.u32 2147483647, %v988
    %vm999 = vcmp.eq.f32.partialorder %v998, 8.507059e+37
    %v1000 = vand.u32 %v988, 2147483648
    %v1001 = vor.u32 1.1754944e-38, %v1000
    %v1002 = vsel %vm999, %v1001, %v997
    %v1003 = vmul.f32 1.0, %v1002
    %v1004 = vxor.u32 %v984, 2147483648
    %v1005 = vmul.f32 %v1004, 1.442695
    %v1006 = vpow.pop %v1005
    %v1007 = vadd.f32 %v1006, 1.0
    %v1008 = vrcp.pop %v1007
    %v1009 = vmul.f32 %v1007, %v1008
    %v1010 = vsub.f32 1.0, %v1009
    %v1011 = vmul.f32 %v1008, %v1010
    %v1012 = vadd.f32 %v1008, %v1011
    %vm1013 = vweird.f32 %v1007
    %vm1014 = vweird.f32 %v1008
    %vm1015 = vmor %vm1013, %vm1014
    %v1016 = vsel %vm1015, %v1008, %v1012
    %v1017 = vand.u32 2147483647, %v1007
    %vm1018 = vcmp.eq.f32.partialorder %v1017, 8.507059e+37
    %v1019 = vand.u32 %v1007, 2147483648
    %v1020 = vor.u32 1.1754944e-38, %v1019
    %v1021 = vsel %vm1018, %v1020, %v1016
    %v1022 = vmul.f32 1.0, %v1021
    %v1023 = vtanh.pop %v982
    %v1024 = vtanh.pop %v984
    %v1025 = vmul.f32 %v1003, %v866
    %1027 = vrot.lane.b32.xlu0 %v1023, 32
    %v1028 = vpop.permute.xlu0 %1027
    %v1030 = vmul.f32 %v1003, %v1028
    %1032 = vrot.lane.b32.xlu0 %v1030, 32
    %v1033 = vpop.permute.xlu0 %1032
    %v1035 = vadd.f32 %v1025, %v1033
    %v1036 = vmul.f32 %v1022, %v877
    %1038 = vrot.lane.b32.xlu0 %v1024, 32
    %v1039 = vpop.permute.xlu0 %1038
    %v1041 = vmul.f32 %v1022, %v1039
    %1043 = vrot.lane.b32.xlu0 %v1041, 32
    %v1044 = vpop.permute.xlu0 %1043
    %v1046 = vadd.f32 %v1036, %v1044
    %v1047 = vtanh.pop %v1035
    %1049 = vrot.lane.b32.xlu0 %v1047, 32
    %v1050 = vpop.permute.xlu0 %1049
    %v1052 = vmul.f32 %v1003, %v1050
    %v1053 = vtanh.pop %v1046
    %1055 = vrot.lane.b32.xlu0 %v1053, 32
    %v1056 = vpop.permute.xlu0 %1055
    %v1058 = vmul.f32 %v1022, %v1056
    %1060 = vrot.lane.b32.xlu0 %v1052, 64
    %v1061 = vpop.permute.xlu0 %1060
    %1063 = vst.msk [vmem:[%s900] sm:$0xff] %vm368, %v1061
    %1065 = vrot.lane.b32.xlu0 %v1058, 96
    %v1066 = vpop.permute.xlu0 %1065
    %1068 = vst.msk [vmem:[%s894] sm:$0xff] %vm375, %v1066
    %v1069 = vsel %vm368, %v1061, %v1066
    %v1070 = vpack.c.bf16 %v1069, %v1069
    %v1071 = vld [vmem:[#allocation5] sm:$0xff]
    %v1072 = vld [vmem:[#allocation5 + $0x8] sm:$0xff]
    %v1073 = vld [vmem:[#allocation5 + $0x10] sm:$0xff]
    %v1074 = vld [vmem:[#allocation5 + $0x18] sm:$0xff]
    %v1075 = vld [vmem:[#allocation5 + $0x20] sm:$0xff]
    %v1076 = vld [vmem:[#allocation5 + $0x28] sm:$0xff]
    %v1077 = vld [vmem:[#allocation5 + $0x30] sm:$0xff]
    %v1078 = vld [vmem:[#allocation5 + $0x38] sm:$0xff]
    %v1087 = vunpack.c.l.b16 %v1071
    %v1088 = vunpack.c.h.b16 %v1071
    %v1089 = vunpack.c.l.b16 %v1072
    %v1090 = vunpack.c.h.b16 %v1072
    %v1091 = vunpack.c.l.b16 %v1073
    %v1092 = vunpack.c.h.b16 %v1073
    %v1093 = vunpack.c.l.b16 %v1074
    %v1094 = vunpack.c.h.b16 %v1074
    %v1095 = vunpack.c.l.b16 %v1075
    %v1096 = vunpack.c.h.b16 %v1075
    %v1097 = vunpack.c.l.b16 %v1076
    %v1098 = vunpack.c.h.b16 %v1076
    %v1099 = vunpack.c.l.b16 %v1077
    %v1100 = vunpack.c.h.b16 %v1077
    %v1101 = vunpack.c.l.b16 %v1078
    %v1102 = vunpack.c.h.b16 %v1078
    %v1103 = vpack.c.b16 %v1089, %v1087
    %v1104 = vpack.c.b16 %v1090, %v1088
    %v1105 = vpack.c.b16 %v1093, %v1091
    %v1106 = vpack.c.b16 %v1094, %v1092
    %v1107 = vpack.c.b16 %v1097, %v1095
    %v1108 = vpack.c.b16 %v1098, %v1096
    %v1109 = vpack.c.b16 %v1101, %v1099
    %v1110 = vpack.c.b16 %v1102, %v1100
    %v1120 = vsel %vm116, %v1070, 0
    %1122 = vmatpush.bf16.msra.mxu0 0
    %1123 = vmatpush.bf16.msra.mxu0 0
    %1124 = vmatpush.bf16.msra.mxu0 0
    %1125 = vmatpush.bf16.msra.mxu0 0
    %1126 = vmatpush.bf16.msra.mxu0 %v1109
    %1127 = vmatpush.bf16.msra.mxu0 %v1107
    %1128 = vmatpush.bf16.msra.mxu0 %v1105
    %1129 = vmatpush.bf16.msra.mxu0 %v1103
    %1130 = vmatmul.bf16.gmra.mxu0 %v1120
    %v1131 = vpop.f32.mrf.mxu0
    %v1132 = vadd.f32 0.0, %v1131
    %v1133 = vpop.f32.mrf.mxu0
    %1134 = vdwg.mxu0
    %1135 = vmatpush.bf16.msra.mxu0 0
    %1136 = vmatpush.bf16.msra.mxu0 0
    %1137 = vmatpush.bf16.msra.mxu0 0
    %1138 = vmatpush.bf16.msra.mxu0 0
    %1139 = vmatpush.bf16.msra.mxu0 %v1110
    %1140 = vmatpush.bf16.msra.mxu0 %v1108
    %1141 = vmatpush.bf16.msra.mxu0 %v1106
    %1142 = vmatpush.bf16.msra.mxu0 %v1104
    %1143 = vmatmul.bf16.gmra.mxu0 %v1120
    %v1144 = vpop.f32.mrf.mxu0
    %v1145 = vadd.f32 0.0, %v1144
    %v1146 = vpop.f32.mrf.mxu0
    %1147 = vdwg.mxu0
    %v1148 = vld [vmem:[%s638] sm:$0xff]
    %v1149 = vadd.f32 %v1148, %v1132
    %v1150 = vld [vmem:[%s633 + $0x8] sm:$0xff]
    %v1151 = vadd.f32 %v1150, %v1145
    %v1152 = vxor.u32 %v1149, 2147483648
    %v1153 = vmul.f32 %v1152, 1.442695
    %v1154 = vpow.pop %v1153
    %v1155 = vadd.f32 %v1154, 1.0
    %v1156 = vrcp.pop %v1155
    %v1157 = vmul.f32 %v1155, %v1156
    %v1158 = vsub.f32 1.0, %v1157
    %v1159 = vmul.f32 %v1156, %v1158
    %v1160 = vadd.f32 %v1156, %v1159
    %vm1161 = vweird.f32 %v1155
    %vm1162 = vweird.f32 %v1156
    %vm1163 = vmor %vm1161, %vm1162
    %v1164 = vsel %vm1163, %v1156, %v1160
    %v1165 = vand.u32 2147483647, %v1155
    %vm1166 = vcmp.eq.f32.partialorder %v1165, 8.507059e+37
    %v1167 = vand.u32 %v1155, 2147483648
    %v1168 = vor.u32 1.1754944e-38, %v1167
    %v1169 = vsel %vm1166, %v1168, %v1164
    %v1170 = vmul.f32 1.0, %v1169
    %v1171 = vxor.u32 %v1151, 2147483648
    %v1172 = vmul.f32 %v1171, 1.442695
    %v1173 = vpow.pop %v1172
    %v1174 = vadd.f32 %v1173, 1.0
    %v1175 = vrcp.pop %v1174
    %v1176 = vmul.f32 %v1174, %v1175
    %v1177 = vsub.f32 1.0, %v1176
    %v1178 = vmul.f32 %v1175, %v1177
    %v1179 = vadd.f32 %v1175, %v1178
    %vm1180 = vweird.f32 %v1174
    %vm1181 = vweird.f32 %v1175
    %vm1182 = vmor %vm1180, %vm1181
    %v1183 = vsel %vm1182, %v1175, %v1179
    %v1184 = vand.u32 2147483647, %v1174
    %vm1185 = vcmp.eq.f32.partialorder %v1184, 8.507059e+37
    %v1186 = vand.u32 %v1174, 2147483648
    %v1187 = vor.u32 1.1754944e-38, %v1186
    %v1188 = vsel %vm1185, %v1187, %v1183
    %v1189 = vmul.f32 1.0, %v1188
    %v1190 = vtanh.pop %v1149
    %v1191 = vtanh.pop %v1151
    %v1192 = vmul.f32 %v1170, %v1035
    %1194 = vrot.lane.b32.xlu0 %v1190, 32
    %v1195 = vpop.permute.xlu0 %1194
    %v1197 = vmul.f32 %v1170, %v1195
    %1199 = vrot.lane.b32.xlu0 %v1197, 32
    %v1200 = vpop.permute.xlu0 %1199
    %v1202 = vadd.f32 %v1192, %v1200
    %v1203 = vmul.f32 %v1189, %v1046
    %1205 = vrot.lane.b32.xlu0 %v1191, 32
    %v1206 = vpop.permute.xlu0 %1205
    %v1208 = vmul.f32 %v1189, %v1206
    %1210 = vrot.lane.b32.xlu0 %v1208, 32
    %v1211 = vpop.permute.xlu0 %1210
    %v1213 = vadd.f32 %v1203, %v1211
    %v1214 = vtanh.pop %v1202
    %1216 = vrot.lane.b32.xlu0 %v1214, 32
    %v1217 = vpop.permute.xlu0 %1216
    %v1219 = vmul.f32 %v1170, %v1217
    %v1220 = vtanh.pop %v1213
    %1222 = vrot.lane.b32.xlu0 %v1220, 32
    %v1223 = vpop.permute.xlu0 %1222
    %v1225 = vmul.f32 %v1189, %v1223
    %1227 = vrot.lane.b32.xlu0 %v1219, 64
    %v1228 = vpop.permute.xlu0 %1227
    %1230 = vst.msk [vmem:[%s725] sm:$0xff] %vm368, %v1228
    %1232 = vrot.lane.b32.xlu0 %v1225, 96
    %v1233 = vpop.permute.xlu0 %1232
    %1235 = vst.msk [vmem:[%s719] sm:$0xff] %vm375, %v1233
    %v1236 = vsel %vm368, %v1228, %v1233
    %v1237 = vpack.c.bf16 %v1236, %v1236
    %v1238 = vld [vmem:[#allocation5] sm:$0xff]
    %v1239 = vld [vmem:[#allocation5 + $0x8] sm:$0xff]
    %v1240 = vld [vmem:[#allocation5 + $0x10] sm:$0xff]
    %v1241 = vld [vmem:[#allocation5 + $0x18] sm:$0xff]
    %v1242 = vld [vmem:[#allocation5 + $0x20] sm:$0xff]
    %v1243 = vld [vmem:[#allocation5 + $0x28] sm:$0xff]
    %v1244 = vld [vmem:[#allocation5 + $0x30] sm:$0xff]
    %v1245 = vld [vmem:[#allocation5 + $0x38] sm:$0xff]
    %v1254 = vunpack.c.l.b16 %v1238
    %v1255 = vunpack.c.h.b16 %v1238
    %v1256 = vunpack.c.l.b16 %v1239
    %v1257 = vunpack.c.h.b16 %v1239
    %v1258 = vunpack.c.l.b16 %v1240
    %v1259 = vunpack.c.h.b16 %v1240
    %v1260 = vunpack.c.l.b16 %v1241
    %v1261 = vunpack.c.h.b16 %v1241
    %v1262 = vunpack.c.l.b16 %v1242
    %v1263 = vunpack.c.h.b16 %v1242
    %v1264 = vunpack.c.l.b16 %v1243
    %v1265 = vunpack.c.h.b16 %v1243
    %v1266 = vunpack.c.l.b16 %v1244
    %v1267 = vunpack.c.h.b16 %v1244
    %v1268 = vunpack.c.l.b16 %v1245
    %v1269 = vunpack.c.h.b16 %v1245
    %v1270 = vpack.c.b16 %v1256, %v1254
    %v1271 = vpack.c.b16 %v1257, %v1255
    %v1272 = vpack.c.b16 %v1260, %v1258
    %v1273 = vpack.c.b16 %v1261, %v1259
    %v1274 = vpack.c.b16 %v1264, %v1262
    %v1275 = vpack.c.b16 %v1265, %v1263
    %v1276 = vpack.c.b16 %v1268, %v1266
    %v1277 = vpack.c.b16 %v1269, %v1267
    %v1287 = vsel %vm116, %v1237, 0
    %1289 = vmatpush.bf16.msra.mxu0 0
    %1290 = vmatpush.bf16.msra.mxu0 0
    %1291 = vmatpush.bf16.msra.mxu0 0
    %1292 = vmatpush.bf16.msra.mxu0 0
    %1293 = vmatpush.bf16.msra.mxu0 %v1276
    %1294 = vmatpush.bf16.msra.mxu0 %v1274
    %1295 = vmatpush.bf16.msra.mxu0 %v1272
    %1296 = vmatpush.bf16.msra.mxu0 %v1270
    %1297 = vmatmul.bf16.gmra.mxu0 %v1287
    %v1298 = vpop.f32.mrf.mxu0
    %v1299 = vadd.f32 0.0, %v1298
    %v1300 = vpop.f32.mrf.mxu0
    %1301 = vdwg.mxu0
    %1302 = vmatpush.bf16.msra.mxu0 0
    %1303 = vmatpush.bf16.msra.mxu0 0
    %1304 = vmatpush.bf16.msra.mxu0 0
    %1305 = vmatpush.bf16.msra.mxu0 0
    %1306 = vmatpush.bf16.msra.mxu0 %v1277
    %1307 = vmatpush.bf16.msra.mxu0 %v1275
    %1308 = vmatpush.bf16.msra.mxu0 %v1273
    %1309 = vmatpush.bf16.msra.mxu0 %v1271
    %1310 = vmatmul.bf16.gmra.mxu0 %v1287
    %v1311 = vpop.f32.mrf.mxu0
    %v1312 = vadd.f32 0.0, %v1311
    %v1313 = vpop.f32.mrf.mxu0
    %1314 = vdwg.mxu0
    %v1315 = vld [vmem:[%s463] sm:$0xff]
    %v1316 = vadd.f32 %v1315, %v1299
    %v1317 = vld [vmem:[%s458 + $0x8] sm:$0xff]
    %v1318 = vadd.f32 %v1317, %v1312
    %v1319 = vxor.u32 %v1316, 2147483648
    %v1320 = vmul.f32 %v1319, 1.442695
    %v1321 = vpow.pop %v1320
    %v1322 = vadd.f32 %v1321, 1.0
    %v1323 = vrcp.pop %v1322
    %v1324 = vmul.f32 %v1322, %v1323
    %v1325 = vsub.f32 1.0, %v1324
    %v1326 = vmul.f32 %v1323, %v1325
    %v1327 = vadd.f32 %v1323, %v1326
    %vm1328 = vweird.f32 %v1322
    %vm1329 = vweird.f32 %v1323
    %vm1330 = vmor %vm1328, %vm1329
    %v1331 = vsel %vm1330, %v1323, %v1327
    %v1332 = vand.u32 2147483647, %v1322
    %vm1333 = vcmp.eq.f32.partialorder %v1332, 8.507059e+37
    %v1334 = vand.u32 %v1322, 2147483648
    %v1335 = vor.u32 1.1754944e-38, %v1334
    %v1336 = vsel %vm1333, %v1335, %v1331
    %v1337 = vmul.f32 1.0, %v1336
    %v1338 = vxor.u32 %v1318, 2147483648
    %v1339 = vmul.f32 %v1338, 1.442695
    %v1340 = vpow.pop %v1339
    %v1341 = vadd.f32 %v1340, 1.0
    %v1342 = vrcp.pop %v1341
    %v1343 = vmul.f32 %v1341, %v1342
    %v1344 = vsub.f32 1.0, %v1343
    %v1345 = vmul.f32 %v1342, %v1344
    %v1346 = vadd.f32 %v1342, %v1345
    %vm1347 = vweird.f32 %v1341
    %vm1348 = vweird.f32 %v1342
    %vm1349 = vmor %vm1347, %vm1348
    %v1350 = vsel %vm1349, %v1342, %v1346
    %v1351 = vand.u32 2147483647, %v1341
    %vm1352 = vcmp.eq.f32.partialorder %v1351, 8.507059e+37
    %v1353 = vand.u32 %v1341, 2147483648
    %v1354 = vor.u32 1.1754944e-38, %v1353
    %v1355 = vsel %vm1352, %v1354, %v1350
    %v1356 = vmul.f32 1.0, %v1355
    %v1357 = vtanh.pop %v1316
    %v1358 = vtanh.pop %v1318
    %v1359 = vmul.f32 %v1337, %v1202
    %1361 = vrot.lane.b32.xlu0 %v1357, 32
    %v1362 = vpop.permute.xlu0 %1361
    %v1364 = vmul.f32 %v1337, %v1362
    %1366 = vrot.lane.b32.xlu0 %v1364, 32
    %v1367 = vpop.permute.xlu0 %1366
    %v1369 = vadd.f32 %v1359, %v1367
    %v1370 = vmul.f32 %v1356, %v1213
    %1372 = vrot.lane.b32.xlu0 %v1358, 32
    %v1373 = vpop.permute.xlu0 %1372
    %v1375 = vmul.f32 %v1356, %v1373
    %1377 = vrot.lane.b32.xlu0 %v1375, 32
    %v1378 = vpop.permute.xlu0 %1377
    %v1380 = vadd.f32 %v1370, %v1378
    %v1381 = vtanh.pop %v1369
    %1383 = vrot.lane.b32.xlu0 %v1381, 32
    %v1384 = vpop.permute.xlu0 %1383
    %v1386 = vmul.f32 %v1337, %v1384
    %v1387 = vtanh.pop %v1380
    %1389 = vrot.lane.b32.xlu0 %v1387, 32
    %v1390 = vpop.permute.xlu0 %1389
    %v1392 = vmul.f32 %v1356, %v1390
    %1394 = vrot.lane.b32.xlu0 %v1386, 64
    %v1395 = vpop.permute.xlu0 %1394
    %1397 = vst.msk [vmem:[%s550] sm:$0xff] %vm368, %v1395
    %1399 = vrot.lane.b32.xlu0 %v1392, 96
    %v1400 = vpop.permute.xlu0 %1399
    %1402 = vst.msk [vmem:[%s544] sm:$0xff] %vm375, %v1400
    %v1403 = vsel %vm368, %v1395, %v1400
    %v1404 = vpack.c.bf16 %v1403, %v1403
    %v1405 = vld [vmem:[#allocation5] sm:$0xff]
    %v1406 = vld [vmem:[#allocation5 + $0x8] sm:$0xff]
    %v1407 = vld [vmem:[#allocation5 + $0x10] sm:$0xff]
    %v1408 = vld [vmem:[#allocation5 + $0x18] sm:$0xff]
    %v1409 = vld [vmem:[#allocation5 + $0x20] sm:$0xff]
    %v1410 = vld [vmem:[#allocation5 + $0x28] sm:$0xff]
    %v1411 = vld [vmem:[#allocation5 + $0x30] sm:$0xff]
    %v1412 = vld [vmem:[#allocation5 + $0x38] sm:$0xff]
    %v1421 = vunpack.c.l.b16 %v1405
    %v1422 = vunpack.c.h.b16 %v1405
    %v1423 = vunpack.c.l.b16 %v1406
    %v1424 = vunpack.c.h.b16 %v1406
    %v1425 = vunpack.c.l.b16 %v1407
    %v1426 = vunpack.c.h.b16 %v1407
    %v1427 = vunpack.c.l.b16 %v1408
    %v1428 = vunpack.c.h.b16 %v1408
    %v1429 = vunpack.c.l.b16 %v1409
    %v1430 = vunpack.c.h.b16 %v1409
    %v1431 = vunpack.c.l.b16 %v1410
    %v1432 = vunpack.c.h.b16 %v1410
    %v1433 = vunpack.c.l.b16 %v1411
    %v1434 = vunpack.c.h.b16 %v1411
    %v1435 = vunpack.c.l.b16 %v1412
    %v1436 = vunpack.c.h.b16 %v1412
    %v1437 = vpack.c.b16 %v1423, %v1421
    %v1438 = vpack.c.b16 %v1424, %v1422
    %v1439 = vpack.c.b16 %v1427, %v1425
    %v1440 = vpack.c.b16 %v1428, %v1426
    %v1441 = vpack.c.b16 %v1431, %v1429
    %v1442 = vpack.c.b16 %v1432, %v1430
    %v1443 = vpack.c.b16 %v1435, %v1433
    %v1444 = vpack.c.b16 %v1436, %v1434
    %v1454 = vsel %vm116, %v1404, 0
    %1456 = vmatpush.bf16.msra.mxu0 0
    %1457 = vmatpush.bf16.msra.mxu0 0
    %1458 = vmatpush.bf16.msra.mxu0 0
    %1459 = vmatpush.bf16.msra.mxu0 0
    %1460 = vmatpush.bf16.msra.mxu0 %v1443
    %1461 = vmatpush.bf16.msra.mxu0 %v1441
    %1462 = vmatpush.bf16.msra.mxu0 %v1439
    %1463 = vmatpush.bf16.msra.mxu0 %v1437
    %1464 = vmatmul.bf16.gmra.mxu0 %v1454
    %v1465 = vpop.f32.mrf.mxu0
    %v1466 = vadd.f32 0.0, %v1465
    %v1467 = vpop.f32.mrf.mxu0
    %1468 = vdwg.mxu0
    %1469 = vmatpush.bf16.msra.mxu0 0
    %1470 = vmatpush.bf16.msra.mxu0 0
    %1471 = vmatpush.bf16.msra.mxu0 0
    %1472 = vmatpush.bf16.msra.mxu0 0
    %1473 = vmatpush.bf16.msra.mxu0 %v1444
    %1474 = vmatpush.bf16.msra.mxu0 %v1442
    %1475 = vmatpush.bf16.msra.mxu0 %v1440
    %1476 = vmatpush.bf16.msra.mxu0 %v1438
    %1477 = vmatmul.bf16.gmra.mxu0 %v1454
    %v1478 = vpop.f32.mrf.mxu0
    %v1479 = vadd.f32 0.0, %v1478
    %v1480 = vpop.f32.mrf.mxu0
    %1481 = vdwg.mxu0
    %v1482 = vld [vmem:[%s287] sm:$0xff]
    %v1483 = vadd.f32 %v1482, %v1466
    %v1484 = vld [vmem:[%s282 + $0x8] sm:$0xff]
    %v1485 = vadd.f32 %v1484, %v1479
    %v1486 = vxor.u32 %v1483, 2147483648
    %v1487 = vmul.f32 %v1486, 1.442695
    %v1488 = vpow.pop %v1487
    %v1489 = vadd.f32 %v1488, 1.0
    %v1490 = vrcp.pop %v1489
    %v1491 = vmul.f32 %v1489, %v1490
    %v1492 = vsub.f32 1.0, %v1491
    %v1493 = vmul.f32 %v1490, %v1492
    %v1494 = vadd.f32 %v1490, %v1493
    %vm1495 = vweird.f32 %v1489
    %vm1496 = vweird.f32 %v1490
    %vm1497 = vmor %vm1495, %vm1496
    %v1498 = vsel %vm1497, %v1490, %v1494
    %v1499 = vand.u32 2147483647, %v1489
    %vm1500 = vcmp.eq.f32.partialorder %v1499, 8.507059e+37
    %v1501 = vand.u32 %v1489, 2147483648
    %v1502 = vor.u32 1.1754944e-38, %v1501
    %v1503 = vsel %vm1500, %v1502, %v1498
    %v1504 = vmul.f32 1.0, %v1503
    %v1505 = vxor.u32 %v1485, 2147483648
    %v1506 = vmul.f32 %v1505, 1.442695
    %v1507 = vpow.pop %v1506
    %v1508 = vadd.f32 %v1507, 1.0
    %v1509 = vrcp.pop %v1508
    %v1510 = vmul.f32 %v1508, %v1509
    %v1511 = vsub.f32 1.0, %v1510
    %v1512 = vmul.f32 %v1509, %v1511
    %v1513 = vadd.f32 %v1509, %v1512
    %vm1514 = vweird.f32 %v1508
    %vm1515 = vweird.f32 %v1509
    %vm1516 = vmor %vm1514, %vm1515
    %v1517 = vsel %vm1516, %v1509, %v1513
    %v1518 = vand.u32 2147483647, %v1508
    %vm1519 = vcmp.eq.f32.partialorder %v1518, 8.507059e+37
    %v1520 = vand.u32 %v1508, 2147483648
    %v1521 = vor.u32 1.1754944e-38, %v1520
    %v1522 = vsel %vm1519, %v1521, %v1517
    %v1523 = vmul.f32 1.0, %v1522
    %v1524 = vtanh.pop %v1483
    %v1525 = vtanh.pop %v1485
    %v1526 = vmul.f32 %v1504, %v1369
    %1528 = vrot.lane.b32.xlu0 %v1524, 32
    %v1529 = vpop.permute.xlu0 %1528
    %v1531 = vmul.f32 %v1504, %v1529
    %1533 = vrot.lane.b32.xlu0 %v1531, 32
    %v1534 = vpop.permute.xlu0 %1533
    %v1536 = vadd.f32 %v1526, %v1534
    %v1537 = vmul.f32 %v1523, %v1380
    %1539 = vrot.lane.b32.xlu0 %v1525, 32
    %v1540 = vpop.permute.xlu0 %1539
    %v1542 = vmul.f32 %v1523, %v1540
    %1544 = vrot.lane.b32.xlu0 %v1542, 32
    %v1545 = vpop.permute.xlu0 %1544
    %v1547 = vadd.f32 %v1537, %v1545
    %v1548 = vtanh.pop %v1536
    %1550 = vrot.lane.b32.xlu0 %v1548, 32
    %v1551 = vpop.permute.xlu0 %1550
    %v1553 = vmul.f32 %v1504, %v1551
    %v1554 = vtanh.pop %v1547
    %1556 = vrot.lane.b32.xlu0 %v1554, 32
    %v1557 = vpop.permute.xlu0 %1556
    %v1559 = vmul.f32 %v1523, %v1557
    %1561 = vrot.lane.b32.xlu0 %v1553, 64
    %v1562 = vpop.permute.xlu0 %1561
    %1564 = vst.msk [vmem:[%s374] sm:$0xff] %vm368, %v1562
    %1566 = vrot.lane.b32.xlu0 %v1559, 96
    %v1567 = vpop.permute.xlu0 %1566
    %1569 = vst.msk [vmem:[%s4] sm:$0xff] %vm375, %v1567
    // Predicated region
    $region26: #{bilstm_forward.3} parent=1 // pred_check
      _
    $region27: #{bilstm_forward.3} parent=1 // pred_check_branch
      %1571 = sbr.rel (0) target = $region29
    $region28: #{bilstm_forward.3} parent=1 // pred_region
      _
    $region29: #{bilstm_forward.3} parent=1 // pred_fallthru
      _
    // Predicated region
    $region30: #{bilstm_forward.3} parent=1 // pred_check
      _
    $region31: #{bilstm_forward.3} parent=1 // pred_check_branch
      %1573 = sbr.rel (0) target = $region33
    $region32: #{bilstm_forward.3} parent=1 // pred_region
      _
    $region33: #{bilstm_forward.3} parent=1 // pred_fallthru
      _
    %1574 = vsyncpa [#allocation4], 1
    %1575 = vsyncpa [#allocation6], 1

// kernel: bilstm_forward.2
$region0: #{bilstm_forward.2}
  #allocation0 [shape = 'u32[]', space=smem, size = 0x4, offset = 0x4, fixed_abs, tag = 'smem constant byte address 0x4 - core index']
  #allocation1 [shape = 'u32[72,128]{1,0:T(1,128)}', space=vmem, size = 0x9000, scoped, tag = 'internal scratch']
  #allocation2 [shape = 'f32[64,256]{1,0:T(8,128)}', space=vmem, size = 0x10000, scoped, tag = 'scratch operand']
  %s0 = inlined_call_operand.vmem [shape: f32[64,4], index: 0, kind: input, shape index: {}]
  %s1 = inlined_call_operand.vmem [shape: bf16[4,256], index: 1, kind: input, shape index: {}]
  %s2 = inlined_call_operand.vmem [shape: bf16[64,256], index: 2, kind: input, shape index: {}]
  %s3 = inlined_call_operand.vmem [shape: f32[1,256], index: 3, kind: input, shape index: {}]
  %s4 = inlined_call_operand.vmem [shape: f32[64,64], index: 4, kind: output, shape index: {}]
  %s5 = sld [smem:[#allocation0]]
  $region26: #{bilstm_forward.2} parent=0
    _
  %s7 = ssub.s32 1, %s5
  %s8 = scalar_select 0, %s7, %s5
  // Predicated region
  $region2: #{bilstm_forward.2} parent=0 // pred_check
    _
  $region3: #{bilstm_forward.2} parent=0 // pred_check_branch
    %10 = sbr.rel (0) target = $region5
  $region4: #{bilstm_forward.2} parent=0 // pred_region
    _
  $region5: #{bilstm_forward.2} parent=0 // pred_fallthru
    _
  // Predicated region
  $region6: #{bilstm_forward.2} parent=0 // pred_check
    _
  $region7: #{bilstm_forward.2} parent=0 // pred_check_branch
    %12 = sbr.rel (0) target = $region9
  $region8: #{bilstm_forward.2} parent=0 // pred_region
    _
  $region9: #{bilstm_forward.2} parent=0 // pred_fallthru
    _
  // Predicated region
  $region10: #{bilstm_forward.2} parent=0 // pred_check
    _
  $region11: #{bilstm_forward.2} parent=0 // pred_check_branch
    %14 = sbr.rel (0) target = $region13
  $region12: #{bilstm_forward.2} parent=0 // pred_region
    _
  $region13: #{bilstm_forward.2} parent=0 // pred_fallthru
    _
  // Predicated region
  $region14: #{bilstm_forward.2} parent=0 // pred_check
    _
  $region15: #{bilstm_forward.2} parent=0 // pred_check_branch
    %16 = sbr.rel (0) target = $region17
  $region16: #{bilstm_forward.2} parent=0 // pred_region
    _
  $region17: #{bilstm_forward.2} parent=0 // pred_fallthru
    _
  %v18 = vld [vmem:[%s0] sm:$0xff]
  %v19 = vld [vmem:[%s0 + $0x8] sm:$0xff]
  %v20 = vld [vmem:[%s0 + $0x10] sm:$0xff]
  %v21 = vld [vmem:[%s0 + $0x18] sm:$0xff]
  %v22 = vld [vmem:[%s0 + $0x20] sm:$0xff]
  %v23 = vld [vmem:[%s0 + $0x28] sm:$0xff]
  %v24 = vld [vmem:[%s0 + $0x30] sm:$0xff]
  %v25 = vld [vmem:[%s0 + $0x38] sm:$0xff]
  %v26 = vpack.c.bf16 %v19, %v18
  %v27 = vpack.c.bf16 %v21, %v20
  %v28 = vpack.c.bf16 %v23, %v22
  %v29 = vpack.c.bf16 %v25, %v24
  %v30 = vld [vmem:[%s1] sm:$0xf]
  %v31 = vld [vmem:[%s3] sm:$0x3]
  %v33 = vperm.slane %v31, 0
  %v34 = vperm.slane %v31, 1
  %38 = vst [vmem:[#allocation1] ss:$4 sm:$0xff] %v30
  %v39 = vld.sshfl [vmem:[#allocation1] sm:$0xff pattern:$0x73625140]
  %v40 = vld.sshfl [vmem:[#allocation1 + $0x8] sm:$0xff pattern:$0x73625140]
  %vm41 = vcmask 31744
  %v43 = vsel %vm41, %v26, 0
  %v46 = vsel %vm41, %v27, 0
  %v49 = vsel %vm41, %v28, 0
  %v52 = vsel %vm41, %v29, 0
  %vm54 = vcmask 1041408
  %v55 = vsel %vm54, %v39, 0
  %v57 = vsel %vm54, %v40, 0
  %59 = vmatpush.bf16.msra.mxu0 0
  %60 = vmatpush.bf16.msra.mxu0 0
  %61 = vmatpush.bf16.msra.mxu0 0
  %62 = vmatpush.bf16.msra.mxu0 0
  %63 = vmatpush.bf16.msra.mxu0 0
  %64 = vmatpush.bf16.msra.mxu0 0
  %65 = vmatpush.bf16.msra.mxu0 0
  %66 = vmatpush.bf16.msra.mxu0 %v55
  %67 = vmatmul.bf16.gmra.mxu0 %v43
  %v68 = vpop.f32.mrf.mxu0
  %v69 = vadd.f32 %v33, %v68
  %v70 = vpop.f32.mrf.mxu0
  %v71 = vadd.f32 %v33, %v70
  %72 = vmatmul.bf16.gmra.mxu0 %v46
  %v73 = vpop.f32.mrf.mxu0
  %v74 = vadd.f32 %v33, %v73
  %v75 = vpop.f32.mrf.mxu0
  %v76 = vadd.f32 %v33, %v75
  %77 = vmatmul.bf16.gmra.mxu0 %v49
  %v78 = vpop.f32.mrf.mxu0
  %v79 = vadd.f32 %v33, %v78
  %v80 = vpop.f32.mrf.mxu0
  %v81 = vadd.f32 %v33, %v80
  %82 = vmatmul.bf16.gmra.mxu0 %v52
  %v83 = vpop.f32.mrf.mxu0
  %v84 = vadd.f32 %v33, %v83
  %v85 = vpop.f32.mrf.mxu0
  %v86 = vadd.f32 %v33, %v85
  %87 = vdwg.mxu0
  %88 = vmatpush.bf16.msra.mxu0 0
  %89 = vmatpush.bf16.msra.mxu0 0
  %90 = vmatpush.bf16.msra.mxu0 0
  %91 = vmatpush.bf16.msra.mxu0 0
  %92 = vmatpush.bf16.msra.mxu0 0
  %93 = vmatpush.bf16.msra.mxu0 0
  %94 = vmatpush.bf16.msra.mxu0 0
  %95 = vmatpush.bf16.msra.mxu0 %v57
  %96 = vmatmul.bf16.gmra.mxu0 %v43
  %v97 = vpop.f32.mrf.mxu0
  %v98 = vadd.f32 %v34, %v97
  %v99 = vpop.f32.mrf.mxu0
  %v100 = vadd.f32 %v34, %v99
  %101 = vmatmul.bf16.gmra.mxu0 %v46
  %v102 = vpop.f32.mrf.mxu0
  %v103 = vadd.f32 %v34, %v102
  %v104 = vpop.f32.mrf.mxu0
  %v105 = vadd.f32 %v34, %v104
  %106 = vmatmul.bf16.gmra.mxu0 %v49
  %v107 = vpop.f32.mrf.mxu0
  %v108 = vadd.f32 %v34, %v107
  %v109 = vpop.f32.mrf.mxu0
  %v110 = vadd.f32 %v34, %v109
  %111 = vmatmul.bf16.gmra.mxu0 %v52
  %v112 = vpop.f32.mrf.mxu0
  %v113 = vadd.f32 %v34, %v112
  %v114 = vpop.f32.mrf.mxu0
  %v115 = vadd.f32 %v34, %v114
  %116 = vdwg.mxu0
  %117 = vst [vmem:[#allocation2] sm:$0xff] %v69
  %118 = vst [vmem:[#allocation2 + $0x8] sm:$0xff] %v98
  %119 = vst [vmem:[#allocation2 + $0x10] sm:$0xff] %v71
  %120 = vst [vmem:[#allocation2 + $0x18] sm:$0xff] %v100
  %121 = vst [vmem:[#allocation2 + $0x20] sm:$0xff] %v74
  %122 = vst [vmem:[#allocation2 + $0x28] sm:$0xff] %v103
  %123 = vst [vmem:[#allocation2 + $0x30] sm:$0xff] %v76
  %124 = vst [vmem:[#allocation2 + $0x38] sm:$0xff] %v105
  %125 = vst [vmem:[#allocation2 + $0x40] sm:$0xff] %v79
  %126 = vst [vmem:[#allocation2 + $0x48] sm:$0xff] %v108
  %127 = vst [vmem:[#allocation2 + $0x50] sm:$0xff] %v81
  %128 = vst [vmem:[#allocation2 + $0x58] sm:$0xff] %v110
  %129 = vst [vmem:[#allocation2 + $0x60] sm:$0xff] %v84
  %130 = vst [vmem:[#allocation2 + $0x68] sm:$0xff] %v113
  %131 = vst [vmem:[#allocation2 + $0x70] sm:$0xff] %v86
  %132 = vst [vmem:[#allocation2 + $0x78] sm:$0xff] %v115
  %v133 = vld [vmem:[%s2] sm:$0xff]
  %v134 = vld [vmem:[%s2 + $0x8] sm:$0xff]
  %v135 = vld [vmem:[%s2 + $0x10] sm:$0xff]
  %v136 = vld [vmem:[%s2 + $0x18] sm:$0xff]
  %v137 = vld [vmem:[%s2 + $0x20] sm:$0xff]
  %v138 = vld [vmem:[%s2 + $0x28] sm:$0xff]
  %v139 = vld [vmem:[%s2 + $0x30] sm:$0xff]
  %v140 = vld [vmem:[%s2 + $0x38] sm:$0xff]
  %v149 = vunpack.c.l.b16 %v133
  %v150 = vunpack.c.h.b16 %v133
  %v151 = vunpack.c.l.b16 %v134
  %v152 = vunpack.c.h.b16 %v134
  %v153 = vunpack.c.l.b16 %v135
  %v154 = vunpack.c.h.b16 %v135
  %v155 = vunpack.c.l.b16 %v136
  %v156 = vunpack.c.h.b16 %v136
  %v157 = vunpack.c.l.b16 %v137
  %v158 = vunpack.c.h.b16 %v137
  %v159 = vunpack.c.l.b16 %v138
  %v160 = vunpack.c.h.b16 %v138
  %v161 = vunpack.c.l.b16 %v139
  %v162 = vunpack.c.h.b16 %v139
  %v163 = vunpack.c.l.b16 %v140
  %v164 = vunpack.c.h.b16 %v140
  %v165 = vpack.c.b16 %v151, %v149
  %v166 = vpack.c.b16 %v152, %v150
  %v167 = vpack.c.b16 %v155, %v153
  %v168 = vpack.c.b16 %v156, %v154
  %v169 = vpack.c.b16 %v159, %v157
  %v170 = vpack.c.b16 %v160, %v158
  %v171 = vpack.c.b16 %v163, %v161
  %v172 = vpack.c.b16 %v164, %v162
  %vm181 = vcmask 523264
  %v183 = vsel %vm181, 0, 0
  %185 = vmatpush.bf16.msra.mxu0 0
  %186 = vmatpush.bf16.msra.mxu0 0
  %187 = vmatpush.bf16.msra.mxu0 0
  %188 = vmatpush.bf16.msra.mxu0 0
  %189 = vmatpush.bf16.msra.mxu0 %v171
  %190 = vmatpush.bf16.msra.mxu0 %v169
  %191 = vmatpush.bf16.msra.mxu0 %v167
  %192 = vmatpush.bf16.msra.mxu0 %v165
  %193 = vmatmul.bf16.gmra.mxu0 %v183
  %v194 = vpop.f32.mrf.mxu0
  %v195 = vadd.f32 0.0, %v194
  %v196 = vpop.f32.mrf.mxu0
  %197 = vdwg.mxu0
  %198 = vmatpush.bf16.msra.mxu0 0
  %199 = vmatpush.bf16.msra.mxu0 0
  %200 = vmatpush.bf16.msra.mxu0 0
  %201 = vmatpush.bf16.msra.mxu0 0
  %202 = vmatpush.bf16.msra.mxu0 %v172
  %203 = vmatpush.bf16.msra.mxu0 %v170
  %204 = vmatpush.bf16.msra.mxu0 %v168
  %205 = vmatpush.bf16.msra.mxu0 %v166
  %206 = vmatmul.bf16.gmra.mxu0 %v183
  %v207 = vpop.f32.mrf.mxu0
  %v208 = vadd.f32 0.0, %v207
  %v209 = vpop.f32.mrf.mxu0
  %210 = vdwg.mxu0
  %s211 = smul.u32 0, 2
  %s212 = smul.addr %s211, 8
  %s213 = scalar_lea.vmem [#allocation2], %s212
  %v214 = vld [vmem:[%s213] sm:$0xff]
  %v215 = vadd.f32 %v214, %v195
  %s216 = smul.u32 7, 2
  %s217 = smul.addr %s216, 8
  %s218 = scalar_lea.vmem [#allocation2], %s217
  %v219 = vld [vmem:[%s218 + $0x8] sm:$0xff]
  %v220 = vadd.f32 %v219, %v208
  %v221 = vxor.u32 %v215, 2147483648
  %v222 = vmul.f32 %v221, 1.442695
  %v223 = vpow.pop %v222
  %v224 = vadd.f32 %v223, 1.0
  %v225 = vrcp.pop %v224
  %v226 = vmul.f32 %v224, %v225
  %v227 = vsub.f32 1.0, %v226
  %v228 = vmul.f32 %v225, %v227
  %v229 = vadd.f32 %v225, %v228
  %vm230 = vweird.f32 %v224
  %vm231 = vweird.f32 %v225
  %vm232 = vmor %vm230, %vm231
  %v233 = vsel %vm232, %v225, %v229
  %v234 = vand.u32 2147483647, %v224
  %vm235 = vcmp.eq.f32.partialorder %v234, 8.507059e+37
  %v236 = vand.u32 %v224, 2147483648
  %v237 = vor.u32 1.1754944e-38, %v236
  %v238 = vsel %vm235, %v237, %v233
  %v239 = vmul.f32 1.0, %v238
  %v240 = vxor.u32 %v220, 2147483648
  %v241 = vmul.f32 %v240, 1.442695
  %v242 = vpow.pop %v241
  %v243 = vadd.f32 %v242, 1.0
  %v244 = vrcp.pop %v243
  %v245 = vmul.f32 %v243, %v244
  %v246 = vsub.f32 1.0, %v245
  %v247 = vmul.f32 %v244, %v246
  %v248 = vadd.f32 %v244, %v247
  %vm249 = vweird.f32 %v243
  %vm250 = vweird.f32 %v244
  %vm251 = vmor %vm249, %vm250
  %v252 = vsel %vm251, %v244, %v248
  %v253 = vand.u32 2147483647, %v243
  %vm254 = vcmp.eq.f32.partialorder %v253, 8.507059e+37
  %v255 = vand.u32 %v243, 2147483648
  %v256 = vor.u32 1.1754944e-38, %v255
  %v257 = vsel %vm254, %v256, %v252
  %v258 = vmul.f32 1.0, %v257
  %v259 = vtanh.pop %v215
  %v260 = vtanh.pop %v220
  %v261 = vmul.f32 %v239, 0.0
  %263 = vrot.lane.b32.xlu0 %v259, 32
  %v264 = vpop.permute.xlu0 %263
  %v266 = vmul.f32 %v239, %v264
  %268 = vrot.lane.b32.xlu0 %v266, 32
  %v269 = vpop.permute.xlu0 %268
  %v271 = vadd.f32 %v261, %v269
  %v272 = vmul.f32 %v258, 0.0
  %274 = vrot.lane.b32.xlu0 %v260, 32
  %v275 = vpop.permute.xlu0 %274
  %v277 = vmul.f32 %v258, %v275
  %279 = vrot.lane.b32.xlu0 %v277, 32
  %v280 = vpop.permute.xlu0 %279
  %v282 = vadd.f32 %v272, %v280
  %v283 = vtanh.pop %v271
  %285 = vrot.lane.b32.xlu0 %v283, 32
  %v286 = vpop.permute.xlu0 %285
  %v288 = vmul.f32 %v239, %v286
  %v289 = vtanh.pop %v282
  %291 = vrot.lane.b32.xlu0 %v289, 32
  %v292 = vpop.permute.xlu0 %291
  %v294 = vmul.f32 %v258, %v292
  %296 = vrot.lane.b32.xlu0 %v288, 64
  %v297 = vpop.permute.xlu0 %296
  %vm299 = vcmask 261120
  %300 = vst.msk [vmem:[%s4] sm:$0xff] %vm299, %v297
  %302 = vrot.lane.b32.xlu0 %v294, 96
  %v303 = vpop.permute.xlu0 %302
  %s305 = scalar_lea.vmem %s4, 56
  %vm306 = vcmask 523520
  %307 = vst.msk [vmem:[%s305] sm:$0xff] %vm306, %v303
  %v308 = vsel %vm299, %v297, %v303
  %v309 = vpack.c.bf16 %v308, %v308
  %v310 = vld [vmem:[%s2] sm:$0xff]
  %v311 = vld [vmem:[%s2 + $0x8] sm:$0xff]
  %v312 = vld [vmem:[%s2 + $0x10] sm:$0xff]
  %v313 = vld [vmem:[%s2 + $0x18] sm:$0xff]
  %v314 = vld [vmem:[%s2 + $0x20] sm:$0xff]
  %v315 = vld [vmem:[%s2 + $0x28] sm:$0xff]
  %v316 = vld [vmem:[%s2 + $0x30] sm:$0xff]
  %v317 = vld [vmem:[%s2 + $0x38] sm:$0xff]
  %v326 = vunpack.c.l.b16 %v310
  %v327 = vunpack.c.h.b16 %v310
  %v328 = vunpack.c.l.b16 %v311
  %v329 = vunpack.c.h.b16 %v311
  %v330 = vunpack.c.l.b16 %v312
  %v331 = vunpack.c.h.b16 %v312
  %v332 = vunpack.c.l.b16 %v313
  %v333 = vunpack.c.h.b16 %v313
  %v334 = vunpack.c.l.b16 %v314
  %v335 = vunpack.c.h.b16 %v314
  %v336 = vunpack.c.l.b16 %v315
  %v337 = vunpack.c.h.b16 %v315
  %v338 = vunpack.c.l.b16 %v316
  %v339 = vunpack.c.h.b16 %v316
  %v340 = vunpack.c.l.b16 %v317
  %v341 = vunpack.c.h.b16 %v317
  %v342 = vpack.c.b16 %v328, %v326
  %v343 = vpack.c.b16 %v329, %v327
  %v344 = vpack.c.b16 %v332, %v330
  %v345 = vpack.c.b16 %v333, %v331
  %v346 = vpack.c.b16 %v336, %v334
  %v347 = vpack.c.b16 %v337, %v335
  %v348 = vpack.c.b16 %v340, %v338
  %v349 = vpack.c.b16 %v341, %v339
  %v359 = vsel %vm181, %v309, 0
  %361 = vmatpush.bf16.msra.mxu0 0
  %362 = vmatpush.bf16.msra.mxu0 0
  %363 = vmatpush.bf16.msra.mxu0 0
  %364 = vmatpush.bf16.msra.mxu0 0
  %365 = vmatpush.bf16.msra.mxu0 %v348
  %366 = vmatpush.bf16.msra.mxu0 %v346
  %367 = vmatpush.bf16.msra.mxu0 %v344
  %368 = vmatpush.bf16.msra.mxu0 %v342
  %369 = vmatmul.bf16.gmra.mxu0 %v359
  %v370 = vpop.f32.mrf.mxu0
  %v371 = vadd.f32 0.0, %v370
  %v372 = vpop.f32.mrf.mxu0
  %373 = vdwg.mxu0
  %374 = vmatpush.bf16.msra.mxu0 0
  %375 = vmatpush.bf16.msra.mxu0 0
  %376 = vmatpush.bf16.msra.mxu0 0
  %377 = vmatpush.bf16.msra.mxu0 0
  %378 = vmatpush.bf16.msra.mxu0 %v349
  %379 = vmatpush.bf16.msra.mxu0 %v347
  %380 = vmatpush.bf16.msra.mxu0 %v345
  %381 = vmatpush.bf16.msra.mxu0 %v343
  %382 = vmatmul.bf16.gmra.mxu0 %v359
  %v383 = vpop.f32.mrf.mxu0
  %v384 = vadd.f32 0.0, %v383
  %v385 = vpop.f32.mrf.mxu0
  %386 = vdwg.mxu0
  %s387 = smul.u32 1, 2
  %s388 = smul.addr %s387, 8
  %s389 = scalar_lea.vmem [#allocation2], %s388
  %v390 = vld [vmem:[%s389] sm:$0xff]
  %v391 = vadd.f32 %v390, %v371
  %s392 = smul.u32 6, 2
  %s393 = smul.addr %s392, 8
  %s394 = scalar_lea.vmem [#allocation2], %s393
  %v395 = vld [vmem:[%s394 + $0x8] sm:$0xff]
  %v396 = vadd.f32 %v395, %v384
  %v397 = vxor.u32 %v391, 2147483648
  %v398 = vmul.f32 %v397, 1.442695
  %v399 = vpow.pop %v398
  %v400 = vadd.f32 %v399, 1.0
  %v401 = vrcp.pop %v400
  %v402 = vmul.f32 %v400, %v401
  %v403 = vsub.f32 1.0, %v402
  %v404 = vmul.f32 %v401, %v403
  %v405 = vadd.f32 %v401, %v404
  %vm406 = vweird.f32 %v400
  %vm407 = vweird.f32 %v401
  %vm408 = vmor %vm406, %vm407
  %v409 = vsel %vm408, %v401, %v405
  %v410 = vand.u32 2147483647, %v400
  %vm411 = vcmp.eq.f32.partialorder %v410, 8.507059e+37
  %v412 = vand.u32 %v400, 2147483648
  %v413 = vor.u32 1.1754944e-38, %v412
  %v414 = vsel %vm411, %v413, %v409
  %v415 = vmul.f32 1.0, %v414
  %v416 = vxor.u32 %v396, 2147483648
  %v417 = vmul.f32 %v416, 1.442695
  %v418 = vpow.pop %v417
  %v419 = vadd.f32 %v418, 1.0
  %v420 = vrcp.pop %v419
  %v421 = vmul.f32 %v419, %v420
  %v422 = vsub.f32 1.0, %v421
  %v423 = vmul.f32 %v420, %v422
  %v424 = vadd.f32 %v420, %v423
  %vm425 = vweird.f32 %v419
  %vm426 = vweird.f32 %v420
  %vm427 = vmor %vm425, %vm426
  %v428 = vsel %vm427, %v420, %v424
  %v429 = vand.u32 2147483647, %v419
  %vm430 = vcmp.eq.f32.partialorder %v429, 8.507059e+37
  %v431 = vand.u32 %v419, 2147483648
  %v432 = vor.u32 1.1754944e-38, %v431
  %v433 = vsel %vm430, %v432, %v428
  %v434 = vmul.f32 1.0, %v433
  %v435 = vtanh.pop %v391
  %v436 = vtanh.pop %v396
  %v437 = vmul.f32 %v415, %v271
  %439 = vrot.lane.b32.xlu0 %v435, 32
  %v440 = vpop.permute.xlu0 %439
  %v442 = vmul.f32 %v415, %v440
  %444 = vrot.lane.b32.xlu0 %v442, 32
  %v445 = vpop.permute.xlu0 %444
  %v447 = vadd.f32 %v437, %v445
  %v448 = vmul.f32 %v434, %v282
  %450 = vrot.lane.b32.xlu0 %v436, 32
  %v451 = vpop.permute.xlu0 %450
  %v453 = vmul.f32 %v434, %v451
  %455 = vrot.lane.b32.xlu0 %v453, 32
  %v456 = vpop.permute.xlu0 %455
  %v458 = vadd.f32 %v448, %v456
  %v459 = vtanh.pop %v447
  %461 = vrot.lane.b32.xlu0 %v459, 32
  %v462 = vpop.permute.xlu0 %461
  %v464 = vmul.f32 %v415, %v462
  %v465 = vtanh.pop %v458
  %467 = vrot.lane.b32.xlu0 %v465, 32
  %v468 = vpop.permute.xlu0 %467
  %v470 = vmul.f32 %v434, %v468
  %472 = vrot.lane.b32.xlu0 %v464, 64
  %v473 = vpop.permute.xlu0 %472
  %s475 = scalar_lea.vmem %s4, 8
  %476 = vst.msk [vmem:[%s475] sm:$0xff] %vm299, %v473
  %478 = vrot.lane.b32.xlu0 %v470, 96
  %v479 = vpop.permute.xlu0 %478
  %s481 = scalar_lea.vmem %s4, 48
  %482 = vst.msk [vmem:[%s481] sm:$0xff] %vm306, %v479
  %v483 = vsel %vm299, %v473, %v479
  %v484 = vpack.c.bf16 %v483, %v483
  %v485 = vld [vmem:[%s2] sm:$0xff]
  %v486 = vld [vmem:[%s2 + $0x8] sm:$0xff]
  %v487 = vld [vmem:[%s2 + $0x10] sm:$0xff]
  %v488 = vld [vmem:[%s2 + $0x18] sm:$0xff]
  %v489 = vld [vmem:[%s2 + $0x20] sm:$0xff]
  %v490 = vld [vmem:[%s2 + $0x28] sm:$0xff]
  %v491 = vld [vmem:[%s2 + $0x30] sm:$0xff]
  %v492 = vld [vmem:[%s2 + $0x38] sm:$0xff]
  %v501 = vunpack.c.l.b16 %v485
  %v502 = vunpack.c.h.b16 %v485
  %v503 = vunpack.c.l.b16 %v486
  %v504 = vunpack.c.h.b16 %v486
  %v505 = vunpack.c.l.b16 %v487
  %v506 = vunpack.c.h.b16 %v487
  %v507 = vunpack.c.l.b16 %v488
  %v508 = vunpack.c.h.b16 %v488
  %v509 = vunpack.c.l.b16 %v489
  %v510 = vunpack.c.h.b16 %v489
  %v511 = vunpack.c.l.b16 %v490
  %v512 = vunpack.c.h.b16 %v490
  %v513 = vunpack.c.l.b16 %v491
  %v514 = vunpack.c.h.b16 %v491
  %v515 = vunpack.c.l.b16 %v492
  %v516 = vunpack.c.h.b16 %v492
  %v517 = vpack.c.b16 %v503, %v501
  %v518 = vpack.c.b16 %v504, %v502
  %v519 = vpack.c.b16 %v507, %v505
  %v520 = vpack.c.b16 %v508, %v506
  %v521 = vpack.c.b16 %v511, %v509
  %v522 = vpack.c.b16 %v512, %v510
  %v523 = vpack.c.b16 %v515, %v513
  %v524 = vpack.c.b16 %v516, %v514
  %v534 = vsel %vm181, %v484, 0
  %536 = vmatpush.bf16.msra.mxu0 0
  %537 = vmatpush.bf16.msra.mxu0 0
  %538 = vmatpush.bf16.msra.mxu0 0
  %539 = vmatpush.bf16.msra.mxu0 0
  %540 = vmatpush.bf16.msra.mxu0 %v523
  %541 = vmatpush.bf16.msra.mxu0 %v521
  %542 = vmatpush.bf16.msra.mxu0 %v519
  %543 = vmatpush.bf16.msra.mxu0 %v517
  %544 = vmatmul.bf16.gmra.mxu0 %v534
  %v545 = vpop.f32.mrf.mxu0
  %v546 = vadd.f32 0.0, %v545
  %v547 = vpop.f32.mrf.mxu0
  %548 = vdwg.mxu0
  %549 = vmatpush.bf16.msra.mxu0 0
  %550 = vmatpush.bf16.msra.mxu0 0
  %551 = vmatpush.bf16.msra.mxu0 0
  %552 = vmatpush.bf16.msra.mxu0 0
  %553 = vmatpush.bf16.msra.mxu0 %v524
  %554 = vmatpush.bf16.msra.mxu0 %v522
  %555 = vmatpush.bf16.msra.mxu0 %v520
  %556 = vmatpush.bf16.msra.mxu0 %v518
  %557 = vmatmul.bf16.gmra.mxu0 %v534
  %v558 = vpop.f32.mrf.mxu0
  %v559 = vadd.f32 0.0, %v558
  %v560 = vpop.f32.mrf.mxu0
  %561 = vdwg.mxu0
  %s562 = smul.u32 2, 2
  %s563 = smul.addr %s562, 8
  %s564 = scalar_lea.vmem [#allocation2], %s563
  %v565 = vld [vmem:[%s564] sm:$0xff]
  %v566 = vadd.f32 %v565, %v546
  %s567 = smul.u32 5, 2
  %s568 = smul.addr %s567, 8
  %s569 = scalar_lea.vmem [#allocation2], %s568
  %v570 = vld [vmem:[%s569 + $0x8] sm:$0xff]
  %v571 = vadd.f32 %v570, %v559
  %v572 = vxor.u32 %v566, 2147483648
  %v573 = vmul.f32 %v572, 1.442695
  %v574 = vpow.pop %v573
  %v575 = vadd.f32 %v574, 1.0
  %v576 = vrcp.pop %v575
  %v577 = vmul.f32 %v575, %v576
  %v578 = vsub.f32 1.0, %v577
  %v579 = vmul.f32 %v576, %v578
  %v580 = vadd.f32 %v576, %v579
  %vm581 = vweird.f32 %v575
  %vm582 = vweird.f32 %v576
  %vm583 = vmor %vm581, %vm582
  %v584 = vsel %vm583, %v576, %v580
  %v585 = vand.u32 2147483647, %v575
  %vm586 = vcmp.eq.f32.partialorder %v585, 8.507059e+37
  %v587 = vand.u32 %v575, 2147483648
  %v588 = vor.u32 1.1754944e-38, %v587
  %v589 = vsel %vm586, %v588, %v584
  %v590 = vmul.f32 1.0, %v589
  %v591 = vxor.u32 %v571, 2147483648
  %v592 = vmul.f32 %v591, 1.442695
  %v593 = vpow.pop %v592
  %v594 = vadd.f32 %v593, 1.0
  %v595 = vrcp.pop %v594
  %v596 = vmul.f32 %v594, %v595
  %v597 = vsub.f32 1.0, %v596
  %v598 = vmul.f32 %v595, %v597
  %v599 = vadd.f32 %v595, %v598
  %vm600 = vweird.f32 %v594
  %vm601 = vweird.f32 %v595
  %vm602 = vmor %vm600, %vm601
  %v603 = vsel %vm602, %v595, %v599
  %v604 = vand.u32 2147483647, %v594
  %vm605 = vcmp.eq.f32.partialorder %v604, 8.507059e+37
  %v606 = vand.u32 %v594, 2147483648
  %v607 = vor.u32 1.1754944e-38, %v606
  %v608 = vsel %vm605, %v607, %v603
  %v609 = vmul.f32 1.0, %v608
  %v610 = vtanh.pop %v566
  %v611 = vtanh.pop %v571
  %v612 = vmul.f32 %v590, %v447
  %614 = vrot.lane.b32.xlu0 %v610, 32
  %v615 = vpop.permute.xlu0 %614
  %v617 = vmul.f32 %v590, %v615
  %619 = vrot.lane.b32.xlu0 %v617, 32
  %v620 = vpop.permute.xlu0 %619
  %v622 = vadd.f32 %v612, %v620
  %v623 = vmul.f32 %v609, %v458
  %625 = vrot.lane.b32.xlu0 %v611, 32
  %v626 = vpop.permute.xlu0 %625
  %v628 = vmul.f32 %v609, %v626
  %630 = vrot.lane.b32.xlu0 %v628, 32
  %v631 = vpop.permute.xlu0 %630
  %v633 = vadd.f32 %v623, %v631
  %v634 = vtanh.pop %v622
  %636 = vrot.lane.b32.xlu0 %v634, 32
  %v637 = vpop.permute.xlu0 %636
  %v639 = vmul.f32 %v590, %v637
  %v640 = vtanh.pop %v633
  %642 = vrot.lane.b32.xlu0 %v640, 32
  %v643 = vpop.permute.xlu0 %642
  %v645 = vmul.f32 %v609, %v643
  %647 = vrot.lane.b32.xlu0 %v639, 64
  %v648 = vpop.permute.xlu0 %647
  %s650 = scalar_lea.vmem %s4, 16
  %651 = vst.msk [vmem:[%s650] sm:$0xff] %vm299, %v648
  %653 = vrot.lane.b32.xlu0 %v645, 96
  %v654 = vpop.permute.xlu0 %653
  %s656 = scalar_lea.vmem %s4, 40
  %657 = vst.msk [vmem:[%s656] sm:$0xff] %vm306, %v654
  %v658 = vsel %vm299, %v648, %v654
  %v659 = vpack.c.bf16 %v658, %v658
  %v660 = vld [vmem:[%s2] sm:$0xff]
  %v661 = vld [vmem:[%s2 + $0x8] sm:$0xff]
  %v662 = vld [vmem:[%s2 + $0x10] sm:$0xff]
  %v663 = vld [vmem:[%s2 + $0x18] sm:$0xff]
  %v664 = vld [vmem:[%s2 + $0x20] sm:$0xff]
  %v665 = vld [vmem:[%s2 + $0x28] sm:$0xff]
  %v666 = vld [vmem:[%s2 + $0x30] sm:$0xff]
  %v667 = vld [vmem:[%s2 + $0x38] sm:$0xff]
  %v676 = vunpack.c.l.b16 %v660
  %v677 = vunpack.c.h.b16 %v660
  %v678 = vunpack.c.l.b16 %v661
  %v679 = vunpack.c.h.b16 %v661
  %v680 = vunpack.c.l.b16 %v662
  %v681 = vunpack.c.h.b16 %v662
  %v682 = vunpack.c.l.b16 %v663
  %v683 = vunpack.c.h.b16 %v663
  %v684 = vunpack.c.l.b16 %v664
  %v685 = vunpack.c.h.b16 %v664
  %v686 = vunpack.c.l.b16 %v665
  %v687 = vunpack.c.h.b16 %v665
  %v688 = vunpack.c.l.b16 %v666
  %v689 = vunpack.c.h.b16 %v666
  %v690 = vunpack.c.l.b16 %v667
  %v691 = vunpack.c.h.b16 %v667
  %v692 = vpack.c.b16 %v678, %v676
  %v693 = vpack.c.b16 %v679, %v677
  %v694 = vpack.c.b16 %v682, %v680
  %v695 = vpack.c.b16 %v683, %v681
  %v696 = vpack.c.b16 %v686, %v684
  %v697 = vpack.c.b16 %v687, %v685
  %v698 = vpack.c.b16 %v690, %v688
  %v699 = vpack.c.b16 %v691, %v689
  %v709 = vsel %vm181, %v659, 0
  %711 = vmatpush.bf16.msra.mxu0 0
  %712 = vmatpush.bf16.msra.mxu0 0
  %713 = vmatpush.bf16.msra.mxu0 0
  %714 = vmatpush.bf16.msra.mxu0 0
  %715 = vmatpush.bf16.msra.mxu0 %v698
  %716 = vmatpush.bf16.msra.mxu0 %v696
  %717 = vmatpush.bf16.msra.mxu0 %v694
  %718 = vmatpush.bf16.msra.mxu0 %v692
  %719 = vmatmul.bf16.gmra.mxu0 %v709
  %v720 = vpop.f32.mrf.mxu0
  %v721 = vadd.f32 0.0, %v720
  %v722 = vpop.f32.mrf.mxu0
  %723 = vdwg.mxu0
  %724 = vmatpush.bf16.msra.mxu0 0
  %725 = vmatpush.bf16.msra.mxu0 0
  %726 = vmatpush.bf16.msra.mxu0 0
  %727 = vmatpush.bf16.msra.mxu0 0
  %728 = vmatpush.bf16.msra.mxu0 %v699
  %729 = vmatpush.bf16.msra.mxu0 %v697
  %730 = vmatpush.bf16.msra.mxu0 %v695
  %731 = vmatpush.bf16.msra.mxu0 %v693
  %732 = vmatmul.bf16.gmra.mxu0 %v709
  %v733 = vpop.f32.mrf.mxu0
  %v734 = vadd.f32 0.0, %v733
  %v735 = vpop.f32.mrf.mxu0
  %736 = vdwg.mxu0
  %s737 = smul.u32 3, 2
  %s738 = smul.addr %s737, 8
  %s739 = scalar_lea.vmem [#allocation2], %s738
  %v740 = vld [vmem:[%s739] sm:$0xff]
  %v741 = vadd.f32 %v740, %v721
  %s742 = smul.u32 4, 2
  %s743 = smul.addr %s742, 8
  %s744 = scalar_lea.vmem [#allocation2], %s743
  %v745 = vld [vmem:[%s744 + $0x8] sm:$0xff]
  %v746 = vadd.f32 %v745, %v734
  %v747 = vxor.u32 %v741, 2147483648
  %v748 = vmul.f32 %v747, 1.442695
  %v749 = vpow.pop %v748
  %v750 = vadd.f32 %v749, 1.0
  %v751 = vrcp.pop %v750
  %v752 = vmul.f32 %v750, %v751
  %v753 = vsub.f32 1.0, %v752
  %v754 = vmul.f32 %v751, %v753
  %v755 = vadd.f32 %v751, %v754
  %vm756 = vweird.f32 %v750
  %vm757 = vweird.f32 %v751
  %vm758 = vmor %vm756, %vm757
  %v759 = vsel %vm758, %v751, %v755
  %v760 = vand.u32 2147483647, %v750
  %vm761 = vcmp.eq.f32.partialorder %v760, 8.507059e+37
  %v762 = vand.u32 %v750, 2147483648
  %v763 = vor.u32 1.1754944e-38, %v762
  %v764 = vsel %vm761, %v763, %v759
  %v765 = vmul.f32 1.0, %v764
  %v766 = vxor.u32 %v746, 2147483648
  %v767 = vmul.f32 %v766, 1.442695
  %v768 = vpow.pop %v767
  %v769 = vadd.f32 %v768, 1.0
  %v770 = vrcp.pop %v769
  %v771 = vmul.f32 %v769, %v770
  %v772 = vsub.f32 1.0, %v771
  %v773 = vmul.f32 %v770, %v772
  %v774 = vadd.f32 %v770, %v773
  %vm775 = vweird.f32 %v769
  %vm776 = vweird.f32 %v770
  %vm777 = vmor %vm775, %vm776
  %v778 = vsel %vm777, %v770, %v774
  %v779 = vand.u32 2147483647, %v769
  %vm780 = vcmp.eq.f32.partialorder %v779, 8.507059e+37
  %v781 = vand.u32 %v769, 2147483648
  %v782 = vor.u32 1.1754944e-38, %v781
  %v783 = vsel %vm780, %v782, %v778
  %v784 = vmul.f32 1.0, %v783
  %v785 = vtanh.pop %v741
  %v786 = vtanh.pop %v746
  %v787 = vmul.f32 %v765, %v622
  %789 = vrot.lane.b32.xlu0 %v785, 32
  %v790 = vpop.permute.xlu0 %789
  %v792 = vmul.f32 %v765, %v790
  %794 = vrot.lane.b32.xlu0 %v792, 32
  %v795 = vpop.permute.xlu0 %794
  %v797 = vadd.f32 %v787, %v795
  %v798 = vmul.f32 %v784, %v633
  %800 = vrot.lane.b32.xlu0 %v786, 32
  %v801 = vpop.permute.xlu0 %800
  %v803 = vmul.f32 %v784, %v801
  %805 = vrot.lane.b32.xlu0 %v803, 32
  %v806 = vpop.permute.xlu0 %805
  %v808 = vadd.f32 %v798, %v806
  %v809 = vtanh.pop %v797
  %811 = vrot.lane.b32.xlu0 %v809, 32
  %v812 = vpop.permute.xlu0 %811
  %v814 = vmul.f32 %v765, %v812
  %v815 = vtanh.pop %v808
  %817 = vrot.lane.b32.xlu0 %v815, 32
  %v818 = vpop.permute.xlu0 %817
  %v820 = vmul.f32 %v784, %v818
  %822 = vrot.lane.b32.xlu0 %v814, 64
  %v823 = vpop.permute.xlu0 %822
  %s825 = scalar_lea.vmem %s4, 24
  %826 = vst.msk [vmem:[%s825] sm:$0xff] %vm299, %v823
  %828 = vrot.lane.b32.xlu0 %v820, 96
  %v829 = vpop.permute.xlu0 %828
  %s831 = scalar_lea.vmem %s4, 32
  %832 = vst.msk [vmem:[%s831] sm:$0xff] %vm306, %v829
  %v833 = vsel %vm299, %v823, %v829
  %v834 = vpack.c.bf16 %v833, %v833
  %v835 = vld [vmem:[%s2] sm:$0xff]
  %v836 = vld [vmem:[%s2 + $0x8] sm:$0xff]
  %v837 = vld [vmem:[%s2 + $0x10] sm:$0xff]
  %v838 = vld [vmem:[%s2 + $0x18] sm:$0xff]
  %v839 = vld [vmem:[%s2 + $0x20] sm:$0xff]
  %v840 = vld [vmem:[%s2 + $0x28] sm:$0xff]
  %v841 = vld [vmem:[%s2 + $0x30] sm:$0xff]
  %v842 = vld [vmem:[%s2 + $0x38] sm:$0xff]
  %v851 = vunpack.c.l.b16 %v835
  %v852 = vunpack.c.h.b16 %v835
  %v853 = vunpack.c.l.b16 %v836
  %v854 = vunpack.c.h.b16 %v836
  %v855 = vunpack.c.l.b16 %v837
  %v856 = vunpack.c.h.b16 %v837
  %v857 = vunpack.c.l.b16 %v838
  %v858 = vunpack.c.h.b16 %v838
  %v859 = vunpack.c.l.b16 %v839
  %v860 = vunpack.c.h.b16 %v839
  %v861 = vunpack.c.l.b16 %v840
  %v862 = vunpack.c.h.b16 %v840
  %v863 = vunpack.c.l.b16 %v841
  %v864 = vunpack.c.h.b16 %v841
  %v865 = vunpack.c.l.b16 %v842
  %v866 = vunpack.c.h.b16 %v842
  %v867 = vpack.c.b16 %v853, %v851
  %v868 = vpack.c.b16 %v854, %v852
  %v869 = vpack.c.b16 %v857, %v855
  %v870 = vpack.c.b16 %v858, %v856
  %v871 = vpack.c.b16 %v861, %v859
  %v872 = vpack.c.b16 %v862, %v860
  %v873 = vpack.c.b16 %v865, %v863
  %v874 = vpack.c.b16 %v866, %v864
  %v884 = vsel %vm181, %v834, 0
  %886 = vmatpush.bf16.msra.mxu0 0
  %887 = vmatpush.bf16.msra.mxu0 0
  %888 = vmatpush.bf16.msra.mxu0 0
  %889 = vmatpush.bf16.msra.mxu0 0
  %890 = vmatpush.bf16.msra.mxu0 %v873
  %891 = vmatpush.bf16.msra.mxu0 %v871
  %892 = vmatpush.bf16.msra.mxu0 %v869
  %893 = vmatpush.bf16.msra.mxu0 %v867
  %894 = vmatmul.bf16.gmra.mxu0 %v884
  %v895 = vpop.f32.mrf.mxu0
  %v896 = vadd.f32 0.0, %v895
  %v897 = vpop.f32.mrf.mxu0
  %898 = vdwg.mxu0
  %899 = vmatpush.bf16.msra.mxu0 0
  %900 = vmatpush.bf16.msra.mxu0 0
  %901 = vmatpush.bf16.msra.mxu0 0
  %902 = vmatpush.bf16.msra.mxu0 0
  %903 = vmatpush.bf16.msra.mxu0 %v874
  %904 = vmatpush.bf16.msra.mxu0 %v872
  %905 = vmatpush.bf16.msra.mxu0 %v870
  %906 = vmatpush.bf16.msra.mxu0 %v868
  %907 = vmatmul.bf16.gmra.mxu0 %v884
  %v908 = vpop.f32.mrf.mxu0
  %v909 = vadd.f32 0.0, %v908
  %v910 = vpop.f32.mrf.mxu0
  %911 = vdwg.mxu0
  %v912 = vld [vmem:[%s744] sm:$0xff]
  %v913 = vadd.f32 %v912, %v896
  %v914 = vld [vmem:[%s739 + $0x8] sm:$0xff]
  %v915 = vadd.f32 %v914, %v909
  %v916 = vxor.u32 %v913, 2147483648
  %v917 = vmul.f32 %v916, 1.442695
  %v918 = vpow.pop %v917
  %v919 = vadd.f32 %v918, 1.0
  %v920 = vrcp.pop %v919
  %v921 = vmul.f32 %v919, %v920
  %v922 = vsub.f32 1.0, %v921
  %v923 = vmul.f32 %v920, %v922
  %v924 = vadd.f32 %v920, %v923
  %vm925 = vweird.f32 %v919
  %vm926 = vweird.f32 %v920
  %vm927 = vmor %vm925, %vm926
  %v928 = vsel %vm927, %v920, %v924
  %v929 = vand.u32 2147483647, %v919
  %vm930 = vcmp.eq.f32.partialorder %v929, 8.507059e+37
  %v931 = vand.u32 %v919, 2147483648
  %v932 = vor.u32 1.1754944e-38, %v931
  %v933 = vsel %vm930, %v932, %v928
  %v934 = vmul.f32 1.0, %v933
  %v935 = vxor.u32 %v915, 2147483648
  %v936 = vmul.f32 %v935, 1.442695
  %v937 = vpow.pop %v936
  %v938 = vadd.f32 %v937, 1.0
  %v939 = vrcp.pop %v938
  %v940 = vmul.f32 %v938, %v939
  %v941 = vsub.f32 1.0, %v940
  %v942 = vmul.f32 %v939, %v941
  %v943 = vadd.f32 %v939, %v942
  %vm944 = vweird.f32 %v938
  %vm945 = vweird.f32 %v939
  %vm946 = vmor %vm944, %vm945
  %v947 = vsel %vm946, %v939, %v943
  %v948 = vand.u32 2147483647, %v938
  %vm949 = vcmp.eq.f32.partialorder %v948, 8.507059e+37
  %v950 = vand.u32 %v938, 2147483648
  %v951 = vor.u32 1.1754944e-38, %v950
  %v952 = vsel %vm949, %v951, %v947
  %v953 = vmul.f32 1.0, %v952
  %v954 = vtanh.pop %v913
  %v955 = vtanh.pop %v915
  %v956 = vmul.f32 %v934, %v797
  %958 = vrot.lane.b32.xlu0 %v954, 32
  %v959 = vpop.permute.xlu0 %958
  %v961 = vmul.f32 %v934, %v959
  %963 = vrot.lane.b32.xlu0 %v961, 32
  %v964 = vpop.permute.xlu0 %963
  %v966 = vadd.f32 %v956, %v964
  %v967 = vmul.f32 %v953, %v808
  %969 = vrot.lane.b32.xlu0 %v955, 32
  %v970 = vpop.permute.xlu0 %969
  %v972 = vmul.f32 %v953, %v970
  %974 = vrot.lane.b32.xlu0 %v972, 32
  %v975 = vpop.permute.xlu0 %974
  %v977 = vadd.f32 %v967, %v975
  %v978 = vtanh.pop %v966
  %980 = vrot.lane.b32.xlu0 %v978, 32
  %v981 = vpop.permute.xlu0 %980
  %v983 = vmul.f32 %v934, %v981
  %v984 = vtanh.pop %v977
  %986 = vrot.lane.b32.xlu0 %v984, 32
  %v987 = vpop.permute.xlu0 %986
  %v989 = vmul.f32 %v953, %v987
  %991 = vrot.lane.b32.xlu0 %v983, 64
  %v992 = vpop.permute.xlu0 %991
  %994 = vst.msk [vmem:[%s831] sm:$0xff] %vm299, %v992
  %996 = vrot.lane.b32.xlu0 %v989, 96
  %v997 = vpop.permute.xlu0 %996
  %999 = vst.msk [vmem:[%s825] sm:$0xff] %vm306, %v997
  %v1000 = vsel %vm299, %v992, %v997
  %v1001 = vpack.c.bf16 %v1000, %v1000
  %v1002 = vld [vmem:[%s2] sm:$0xff]
  %v1003 = vld [vmem:[%s2 + $0x8] sm:$0xff]
  %v1004 = vld [vmem:[%s2 + $0x10] sm:$0xff]
  %v1005 = vld [vmem:[%s2 + $0x18] sm:$0xff]
  %v1006 = vld [vmem:[%s2 + $0x20] sm:$0xff]
  %v1007 = vld [vmem:[%s2 + $0x28] sm:$0xff]
  %v1008 = vld [vmem:[%s2 + $0x30] sm:$0xff]
  %v1009 = vld [vmem:[%s2 + $0x38] sm:$0xff]
  %v1018 = vunpack.c.l.b16 %v1002
  %v1019 = vunpack.c.h.b16 %v1002
  %v1020 = vunpack.c.l.b16 %v1003
  %v1021 = vunpack.c.h.b16 %v1003
  %v1022 = vunpack.c.l.b16 %v1004
  %v1023 = vunpack.c.h.b16 %v1004
  %v1024 = vunpack.c.l.b16 %v1005
  %v1025 = vunpack.c.h.b16 %v1005
  %v1026 = vunpack.c.l.b16 %v1006
  %v1027 = vunpack.c.h.b16 %v1006
  %v1028 = vunpack.c.l.b16 %v1007
  %v1029 = vunpack.c.h.b16 %v1007
  %v1030 = vunpack.c.l.b16 %v1008
  %v1031 = vunpack.c.h.b16 %v1008
  %v1032 = vunpack.c.l.b16 %v1009
  %v1033 = vunpack.c.h.b16 %v1009
  %v1034 = vpack.c.b16 %v1020, %v1018
  %v1035 = vpack.c.b16 %v1021, %v1019
  %v1036 = vpack.c.b16 %v1024, %v1022
  %v1037 = vpack.c.b16 %v1025, %v1023
  %v1038 = vpack.c.b16 %v1028, %v1026
  %v1039 = vpack.c.b16 %v1029, %v1027
  %v1040 = vpack.c.b16 %v1032, %v1030
  %v1041 = vpack.c.b16 %v1033, %v1031
  %v1051 = vsel %vm181, %v1001, 0
  %1053 = vmatpush.bf16.msra.mxu0 0
  %1054 = vmatpush.bf16.msra.mxu0 0
  %1055 = vmatpush.bf16.msra.mxu0 0
  %1056 = vmatpush.bf16.msra.mxu0 0
  %1057 = vmatpush.bf16.msra.mxu0 %v1040
  %1058 = vmatpush.bf16.msra.mxu0 %v1038
  %1059 = vmatpush.bf16.msra.mxu0 %v1036
  %1060 = vmatpush.bf16.msra.mxu0 %v1034
  %1061 = vmatmul.bf16.gmra.mxu0 %v1051
  %v1062 = vpop.f32.mrf.mxu0
  %v1063 = vadd.f32 0.0, %v1062
  %v1064 = vpop.f32.mrf.mxu0
  %1065 = vdwg.mxu0
  %1066 = vmatpush.bf16.msra.mxu0 0
  %1067 = vmatpush.bf16.msra.mxu0 0
  %1068 = vmatpush.bf16.msra.mxu0 0
  %1069 = vmatpush.bf16.msra.mxu0 0
  %1070 = vmatpush.bf16.msra.mxu0 %v1041
  %1071 = vmatpush.bf16.msra.mxu0 %v1039
  %1072 = vmatpush.bf16.msra.mxu0 %v1037
  %1073 = vmatpush.bf16.msra.mxu0 %v1035
  %1074 = vmatmul.bf16.gmra.mxu0 %v1051
  %v1075 = vpop.f32.mrf.mxu0
  %v1076 = vadd.f32 0.0, %v1075
  %v1077 = vpop.f32.mrf.mxu0
  %1078 = vdwg.mxu0
  %v1079 = vld [vmem:[%s569] sm:$0xff]
  %v1080 = vadd.f32 %v1079, %v1063
  %v1081 = vld [vmem:[%s564 + $0x8] sm:$0xff]
  %v1082 = vadd.f32 %v1081, %v1076
  %v1083 = vxor.u32 %v1080, 2147483648
  %v1084 = vmul.f32 %v1083, 1.442695
  %v1085 = vpow.pop %v1084
  %v1086 = vadd.f32 %v1085, 1.0
  %v1087 = vrcp.pop %v1086
  %v1088 = vmul.f32 %v1086, %v1087
  %v1089 = vsub.f32 1.0, %v1088
  %v1090 = vmul.f32 %v1087, %v1089
  %v1091 = vadd.f32 %v1087, %v1090
  %vm1092 = vweird.f32 %v1086
  %vm1093 = vweird.f32 %v1087
  %vm1094 = vmor %vm1092, %vm1093
  %v1095 = vsel %vm1094, %v1087, %v1091
  %v1096 = vand.u32 2147483647, %v1086
  %vm1097 = vcmp.eq.f32.partialorder %v1096, 8.507059e+37
  %v1098 = vand.u32 %v1086, 2147483648
  %v1099 = vor.u32 1.1754944e-38, %v1098
  %v1100 = vsel %vm1097, %v1099, %v1095
  %v1101 = vmul.f32 1.0, %v1100
  %v1102 = vxor.u32 %v1082, 2147483648
  %v1103 = vmul.f32 %v1102, 1.442695
  %v1104 = vpow.pop %v1103
  %v1105 = vadd.f32 %v1104, 1.0
  %v1106 = vrcp.pop %v1105
  %v1107 = vmul.f32 %v1105, %v1106
  %v1108 = vsub.f32 1.0, %v1107
  %v1109 = vmul.f32 %v1106, %v1108
  %v1110 = vadd.f32 %v1106, %v1109
  %vm1111 = vweird.f32 %v1105
  %vm1112 = vweird.f32 %v1106
  %vm1113 = vmor %vm1111, %vm1112
  %v1114 = vsel %vm1113, %v1106, %v1110
  %v1115 = vand.u32 2147483647, %v1105
  %vm1116 = vcmp.eq.f32.partialorder %v1115, 8.507059e+37
  %v1117 = vand.u32 %v1105, 2147483648
  %v1118 = vor.u32 1.1754944e-38, %v1117
  %v1119 = vsel %vm1116, %v1118, %v1114
  %v1120 = vmul.f32 1.0, %v1119
  %v1121 = vtanh.pop %v1080
  %v1122 = vtanh.pop %v1082
  %v1123 = vmul.f32 %v1101, %v966
  %1125 = vrot.lane.b32.xlu0 %v1121, 32
  %v1126 = vpop.permute.xlu0 %1125
  %v1128 = vmul.f32 %v1101, %v1126
  %1130 = vrot.lane.b32.xlu0 %v1128, 32
  %v1131 = vpop.permute.xlu0 %1130
  %v1133 = vadd.f32 %v1123, %v1131
  %v1134 = vmul.f32 %v1120, %v977
  %1136 = vrot.lane.b32.xlu0 %v1122, 32
  %v1137 = vpop.permute.xlu0 %1136
  %v1139 = vmul.f32 %v1120, %v1137
  %1141 = vrot.lane.b32.xlu0 %v1139, 32
  %v1142 = vpop.permute.xlu0 %1141
  %v1144 = vadd.f32 %v1134, %v1142
  %v1145 = vtanh.pop %v1133
  %1147 = vrot.lane.b32.xlu0 %v1145, 32
  %v1148 = vpop.permute.xlu0 %1147
  %v1150 = vmul.f32 %v1101, %v1148
  %v1151 = vtanh.pop %v1144
  %1153 = vrot.lane.b32.xlu0 %v1151, 32
  %v1154 = vpop.permute.xlu0 %1153
  %v1156 = vmul.f32 %v1120, %v1154
  %1158 = vrot.lane.b32.xlu0 %v1150, 64
  %v1159 = vpop.permute.xlu0 %1158
  %1161 = vst.msk [vmem:[%s656] sm:$0xff] %vm299, %v1159
  %1163 = vrot.lane.b32.xlu0 %v1156, 96
  %v1164 = vpop.permute.xlu0 %1163
  %1166 = vst.msk [vmem:[%s650] sm:$0xff] %vm306, %v1164
  %v1167 = vsel %vm299, %v1159, %v1164
  %v1168 = vpack.c.bf16 %v1167, %v1167
  %v1169 = vld [vmem:[%s2] sm:$0xff]
  %v1170 = vld [vmem:[%s2 + $0x8] sm:$0xff]
  %v1171 = vld [vmem:[%s2 + $0x10] sm:$0xff]
  %v1172 = vld [vmem:[%s2 + $0x18] sm:$0xff]
  %v1173 = vld [vmem:[%s2 + $0x20] sm:$0xff]
  %v1174 = vld [vmem:[%s2 + $0x28] sm:$0xff]
  %v1175 = vld [vmem:[%s2 + $0x30] sm:$0xff]
  %v1176 = vld [vmem:[%s2 + $0x38] sm:$0xff]
  %v1185 = vunpack.c.l.b16 %v1169
  %v1186 = vunpack.c.h.b16 %v1169
  %v1187 = vunpack.c.l.b16 %v1170
  %v1188 = vunpack.c.h.b16 %v1170
  %v1189 = vunpack.c.l.b16 %v1171
  %v1190 = vunpack.c.h.b16 %v1171
  %v1191 = vunpack.c.l.b16 %v1172
  %v1192 = vunpack.c.h.b16 %v1172
  %v1193 = vunpack.c.l.b16 %v1173
  %v1194 = vunpack.c.h.b16 %v1173
  %v1195 = vunpack.c.l.b16 %v1174
  %v1196 = vunpack.c.h.b16 %v1174
  %v1197 = vunpack.c.l.b16 %v1175
  %v1198 = vunpack.c.h.b16 %v1175
  %v1199 = vunpack.c.l.b16 %v1176
  %v1200 = vunpack.c.h.b16 %v1176
  %v1201 = vpack.c.b16 %v1187, %v1185
  %v1202 = vpack.c.b16 %v1188, %v1186
  %v1203 = vpack.c.b16 %v1191, %v1189
  %v1204 = vpack.c.b16 %v1192, %v1190
  %v1205 = vpack.c.b16 %v1195, %v1193
  %v1206 = vpack.c.b16 %v1196, %v1194
  %v1207 = vpack.c.b16 %v1199, %v1197
  %v1208 = vpack.c.b16 %v1200, %v1198
  %v1218 = vsel %vm181, %v1168, 0
  %1220 = vmatpush.bf16.msra.mxu0 0
  %1221 = vmatpush.bf16.msra.mxu0 0
  %1222 = vmatpush.bf16.msra.mxu0 0
  %1223 = vmatpush.bf16.msra.mxu0 0
  %1224 = vmatpush.bf16.msra.mxu0 %v1207
  %1225 = vmatpush.bf16.msra.mxu0 %v1205
  %1226 = vmatpush.bf16.msra.mxu0 %v1203
  %1227 = vmatpush.bf16.msra.mxu0 %v1201
  %1228 = vmatmul.bf16.gmra.mxu0 %v1218
  %v1229 = vpop.f32.mrf.mxu0
  %v1230 = vadd.f32 0.0, %v1229
  %v1231 = vpop.f32.mrf.mxu0
  %1232 = vdwg.mxu0
  %1233 = vmatpush.bf16.msra.mxu0 0
  %1234 = vmatpush.bf16.msra.mxu0 0
  %1235 = vmatpush.bf16.msra.mxu0 0
  %1236 = vmatpush.bf16.msra.mxu0 0
  %1237 = vmatpush.bf16.msra.mxu0 %v1208
  %1238 = vmatpush.bf16.msra.mxu0 %v1206
  %1239 = vmatpush.bf16.msra.mxu0 %v1204
  %1240 = vmatpush.bf16.msra.mxu0 %v1202
  %1241 = vmatmul.bf16.gmra.mxu0 %v1218
  %v1242 = vpop.f32.mrf.mxu0
  %v1243 = vadd.f32 0.0, %v1242
  %v1244 = vpop.f32.mrf.mxu0
  %1245 = vdwg.mxu0
  %v1246 = vld [vmem:[%s394] sm:$0xff]
  %v1247 = vadd.f32 %v1246, %v1230
  %v1248 = vld [vmem:[%s389 + $0x8] sm:$0xff]
  %v1249 = vadd.f32 %v1248, %v1243
  %v1250 = vxor.u32 %v1247, 2147483648
  %v1251 = vmul.f32 %v1250, 1.442695
  %v1252 = vpow.pop %v1251
  %v1253 = vadd.f32 %v1252, 1.0
  %v1254 = vrcp.pop %v1253
  %v1255 = vmul.f32 %v1253, %v1254
  %v1256 = vsub.f32 1.0, %v1255
  %v1257 = vmul.f32 %v1254, %v1256
  %v1258 = vadd.f32 %v1254, %v1257
  %vm1259 = vweird.f32 %v1253
  %vm1260 = vweird.f32 %v1254
  %vm1261 = vmor %vm1259, %vm1260
  %v1262 = vsel %vm1261, %v1254, %v1258
  %v1263 = vand.u32 2147483647, %v1253
  %vm1264 = vcmp.eq.f32.partialorder %v1263, 8.507059e+37
  %v1265 = vand.u32 %v1253, 2147483648
  %v1266 = vor.u32 1.1754944e-38, %v1265
  %v1267 = vsel %vm1264, %v1266, %v1262
  %v1268 = vmul.f32 1.0, %v1267
  %v1269 = vxor.u32 %v1249, 2147483648
  %v1270 = vmul.f32 %v1269, 1.442695
  %v1271 = vpow.pop %v1270
  %v1272 = vadd.f32 %v1271, 1.0
  %v1273 = vrcp.pop %v1272
  %v1274 = vmul.f32 %v1272, %v1273
  %v1275 = vsub.f32 1.0, %v1274
  %v1276 = vmul.f32 %v1273, %v1275
  %v1277 = vadd.f32 %v1273, %v1276
  %vm1278 = vweird.f32 %v1272
  %vm1279 = vweird.f32 %v1273
  %vm1280 = vmor %vm1278, %vm1279
  %v1281 = vsel %vm1280, %v1273, %v1277
  %v1282 = vand.u32 2147483647, %v1272
  %vm1283 = vcmp.eq.f32.partialorder %v1282, 8.507059e+37
  %v1284 = vand.u32 %v1272, 2147483648
  %v1285 = vor.u32 1.1754944e-38, %v1284
  %v1286 = vsel %vm1283, %v1285, %v1281
  %v1287 = vmul.f32 1.0, %v1286
  %v1288 = vtanh.pop %v1247
  %v1289 = vtanh.pop %v1249
  %v1290 = vmul.f32 %v1268, %v1133
  %1292 = vrot.lane.b32.xlu0 %v1288, 32
  %v1293 = vpop.permute.xlu0 %1292
  %v1295 = vmul.f32 %v1268, %v1293
  %1297 = vrot.lane.b32.xlu0 %v1295, 32
  %v1298 = vpop.permute.xlu0 %1297
  %v1300 = vadd.f32 %v1290, %v1298
  %v1301 = vmul.f32 %v1287, %v1144
  %1303 = vrot.lane.b32.xlu0 %v1289, 32
  %v1304 = vpop.permute.xlu0 %1303
  %v1306 = vmul.f32 %v1287, %v1304
  %1308 = vrot.lane.b32.xlu0 %v1306, 32
  %v1309 = vpop.permute.xlu0 %1308
  %v1311 = vadd.f32 %v1301, %v1309
  %v1312 = vtanh.pop %v1300
  %1314 = vrot.lane.b32.xlu0 %v1312, 32
  %v1315 = vpop.permute.xlu0 %1314
  %v1317 = vmul.f32 %v1268, %v1315
  %v1318 = vtanh.pop %v1311
  %1320 = vrot.lane.b32.xlu0 %v1318, 32
  %v1321 = vpop.permute.xlu0 %1320
  %v1323 = vmul.f32 %v1287, %v1321
  %1325 = vrot.lane.b32.xlu0 %v1317, 64
  %v1326 = vpop.permute.xlu0 %1325
  %1328 = vst.msk [vmem:[%s481] sm:$0xff] %vm299, %v1326
  %1330 = vrot.lane.b32.xlu0 %v1323, 96
  %v1331 = vpop.permute.xlu0 %1330
  %1333 = vst.msk [vmem:[%s475] sm:$0xff] %vm306, %v1331
  %v1334 = vsel %vm299, %v1326, %v1331
  %v1335 = vpack.c.bf16 %v1334, %v1334
  %v1336 = vld [vmem:[%s2] sm:$0xff]
  %v1337 = vld [vmem:[%s2 + $0x8] sm:$0xff]
  %v1338 = vld [vmem:[%s2 + $0x10] sm:$0xff]
  %v1339 = vld [vmem:[%s2 + $0x18] sm:$0xff]
  %v1340 = vld [vmem:[%s2 + $0x20] sm:$0xff]
  %v1341 = vld [vmem:[%s2 + $0x28] sm:$0xff]
  %v1342 = vld [vmem:[%s2 + $0x30] sm:$0xff]
  %v1343 = vld [vmem:[%s2 + $0x38] sm:$0xff]
  %v1352 = vunpack.c.l.b16 %v1336
  %v1353 = vunpack.c.h.b16 %v1336
  %v1354 = vunpack.c.l.b16 %v1337
  %v1355 = vunpack.c.h.b16 %v1337
  %v1356 = vunpack.c.l.b16 %v1338
  %v1357 = vunpack.c.h.b16 %v1338
  %v1358 = vunpack.c.l.b16 %v1339
  %v1359 = vunpack.c.h.b16 %v1339
  %v1360 = vunpack.c.l.b16 %v1340
  %v1361 = vunpack.c.h.b16 %v1340
  %v1362 = vunpack.c.l.b16 %v1341
  %v1363 = vunpack.c.h.b16 %v1341
  %v1364 = vunpack.c.l.b16 %v1342
  %v1365 = vunpack.c.h.b16 %v1342
  %v1366 = vunpack.c.l.b16 %v1343
  %v1367 = vunpack.c.h.b16 %v1343
  %v1368 = vpack.c.b16 %v1354, %v1352
  %v1369 = vpack.c.b16 %v1355, %v1353
  %v1370 = vpack.c.b16 %v1358, %v1356
  %v1371 = vpack.c.b16 %v1359, %v1357
  %v1372 = vpack.c.b16 %v1362, %v1360
  %v1373 = vpack.c.b16 %v1363, %v1361
  %v1374 = vpack.c.b16 %v1366, %v1364
  %v1375 = vpack.c.b16 %v1367, %v1365
  %v1385 = vsel %vm181, %v1335, 0
  %1387 = vmatpush.bf16.msra.mxu0 0
  %1388 = vmatpush.bf16.msra.mxu0 0
  %1389 = vmatpush.bf16.msra.mxu0 0
  %1390 = vmatpush.bf16.msra.mxu0 0
  %1391 = vmatpush.bf16.msra.mxu0 %v1374
  %1392 = vmatpush.bf16.msra.mxu0 %v1372
  %1393 = vmatpush.bf16.msra.mxu0 %v1370
  %1394 = vmatpush.bf16.msra.mxu0 %v1368
  %1395 = vmatmul.bf16.gmra.mxu0 %v1385
  %v1396 = vpop.f32.mrf.mxu0
  %v1397 = vadd.f32 0.0, %v1396
  %v1398 = vpop.f32.mrf.mxu0
  %1399 = vdwg.mxu0
  %1400 = vmatpush.bf16.msra.mxu0 0
  %1401 = vmatpush.bf16.msra.mxu0 0
  %1402 = vmatpush.bf16.msra.mxu0 0
  %1403 = vmatpush.bf16.msra.mxu0 0
  %1404 = vmatpush.bf16.msra.mxu0 %v1375
  %1405 = vmatpush.bf16.msra.mxu0 %v1373
  %1406 = vmatpush.bf16.msra.mxu0 %v1371
  %1407 = vmatpush.bf16.msra.mxu0 %v1369
  %1408 = vmatmul.bf16.gmra.mxu0 %v1385
  %v1409 = vpop.f32.mrf.mxu0
  %v1410 = vadd.f32 0.0, %v1409
  %v1411 = vpop.f32.mrf.mxu0
  %1412 = vdwg.mxu0
  %v1413 = vld [vmem:[%s218] sm:$0xff]
  %v1414 = vadd.f32 %v1413, %v1397
  %v1415 = vld [vmem:[%s213 + $0x8] sm:$0xff]
  %v1416 = vadd.f32 %v1415, %v1410
  %v1417 = vxor.u32 %v1414, 2147483648
  %v1418 = vmul.f32 %v1417, 1.442695
  %v1419 = vpow.pop %v1418
  %v1420 = vadd.f32 %v1419, 1.0
  %v1421 = vrcp.pop %v1420
  %v1422 = vmul.f32 %v1420, %v1421
  %v1423 = vsub.f32 1.0, %v1422
  %v1424 = vmul.f32 %v1421, %v1423
  %v1425 = vadd.f32 %v1421, %v1424
  %vm1426 = vweird.f32 %v1420
  %vm1427 = vweird.f32 %v1421
  %vm1428 = vmor %vm1426, %vm1427
  %v1429 = vsel %vm1428, %v1421, %v1425
  %v1430 = vand.u32 2147483647, %v1420
  %vm1431 = vcmp.eq.f32.partialorder %v1430, 8.507059e+37
  %v1432 = vand.u32 %v1420, 2147483648
  %v1433 = vor.u32 1.1754944e-38, %v1432
  %v1434 = vsel %vm1431, %v1433, %v1429
  %v1435 = vmul.f32 1.0, %v1434
  %v1436 = vxor.u32 %v1416, 2147483648
  %v1437 = vmul.f32 %v1436, 1.442695
  %v1438 = vpow.pop %v1437
  %v1439 = vadd.f32 %v1438, 1.0
  %v1440 = vrcp.pop %v1439
  %v1441 = vmul.f32 %v1439, %v1440
  %v1442 = vsub.f32 1.0, %v1441
  %v1443 = vmul.f32 %v1440, %v1442
  %v1444 = vadd.f32 %v1440, %v1443
  %vm1445 = vweird.f32 %v1439
  %vm1446 = vweird.f32 %v1440
  %vm1447 = vmor %vm1445, %vm1446
  %v1448 = vsel %vm1447, %v1440, %v1444
  %v1449 = vand.u32 2147483647, %v1439
  %vm1450 = vcmp.eq.f32.partialorder %v1449, 8.507059e+37
  %v1451 = vand.u32 %v1439, 2147483648
  %v1452 = vor.u32 1.1754944e-38, %v1451
  %v1453 = vsel %vm1450, %v1452, %v1448
  %v1454 = vmul.f32 1.0, %v1453
  %v1455 = vtanh.pop %v1414
  %v1456 = vtanh.pop %v1416
  %v1457 = vmul.f32 %v1435, %v1300
  %1459 = vrot.lane.b32.xlu0 %v1455, 32
  %v1460 = vpop.permute.xlu0 %1459
  %v1462 = vmul.f32 %v1435, %v1460
  %1464 = vrot.lane.b32.xlu0 %v1462, 32
  %v1465 = vpop.permute.xlu0 %1464
  %v1467 = vadd.f32 %v1457, %v1465
  %v1468 = vmul.f32 %v1454, %v1311
  %1470 = vrot.lane.b32.xlu0 %v1456, 32
  %v1471 = vpop.permute.xlu0 %1470
  %v1473 = vmul.f32 %v1454, %v1471
  %1475 = vrot.lane.b32.xlu0 %v1473, 32
  %v1476 = vpop.permute.xlu0 %1475
  %v1478 = vadd.f32 %v1468, %v1476
  %v1479 = vtanh.pop %v1467
  %1481 = vrot.lane.b32.xlu0 %v1479, 32
  %v1482 = vpop.permute.xlu0 %1481
  %v1484 = vmul.f32 %v1435, %v1482
  %v1485 = vtanh.pop %v1478
  %1487 = vrot.lane.b32.xlu0 %v1485, 32
  %v1488 = vpop.permute.xlu0 %1487
  %v1490 = vmul.f32 %v1454, %v1488
  %1492 = vrot.lane.b32.xlu0 %v1484, 64
  %v1493 = vpop.permute.xlu0 %1492
  %1495 = vst.msk [vmem:[%s305] sm:$0xff] %vm299, %v1493
  %1497 = vrot.lane.b32.xlu0 %v1490, 96
  %v1498 = vpop.permute.xlu0 %1497
  %1500 = vst.msk [vmem:[%s4] sm:$0xff] %vm306, %v1498
  // Predicated region
  $region18: #{bilstm_forward.2} parent=0 // pred_check
    _
  $region19: #{bilstm_forward.2} parent=0 // pred_check_branch
    %1502 = sbr.rel (0) target = $region21
  $region20: #{bilstm_forward.2} parent=0 // pred_region
    _
  $region21: #{bilstm_forward.2} parent=0 // pred_fallthru
    _
  // Predicated region
  $region22: #{bilstm_forward.2} parent=0 // pred_check
    _
  $region23: #{bilstm_forward.2} parent=0 // pred_check_branch
    %1504 = sbr.rel (0) target = $region25
  $region24: #{bilstm_forward.2} parent=0 // pred_region
    _
  $region25: #{bilstm_forward.2} parent=0 // pred_fallthru
    _

</llo_original>
